<compile_context>
chip_gen: v6e
topology: v6e:2x2x1
jax: 0.10.0
libtpu: 0.0.40
codegen_flags: <defaults>
</compile_context>

<pallas_src>
import functools

import jax
import jax.numpy as jnp
from jax import lax
from jax.experimental import pallas as pl
from jax.experimental.pallas import tpu as pltpu

NEG_SLOPE = 0.01                      # F.leaky_relu default

TM_DEFAULT = 512                      # destination-row panel of the adjacency matmul
TK_DEFAULT = 2048                     # reduction (source-node) tile of the adjacency matmul
TP_DEFAULT = 256                      # row tile for the prologue kernels
XW_RESIDENT_MAX_BYTES = 2 << 20       # keep xw fully VMEM-resident below this size
VMEM_LIMIT_BYTES = 32 * 1024 * 1024   # explicit scoped-VMEM limit (safe on v5e/v6e/v7x)


def _leaky(y):
    return jnp.where(y >= 0, y, NEG_SLOPE * y)


def _l2norm_rows(x):
    # F.normalize(x, p=2, dim=1, eps=1e-12):  x / max(||x||, eps)
    ss = jnp.sum(x * x, axis=1, keepdims=True)
    return x * lax.rsqrt(jnp.maximum(ss, 1e-24))


def _fit_tile(n, target):
    """Largest multiple of 128 that is <= target and divides n (n % 128 == 0)."""
    t = max((min(target, n) // 128) * 128, 128)
    while n % t:
        t -= 128
    return t


def _compiler_params(semantics):
    return pltpu.CompilerParams(dimension_semantics=semantics,
                                vmem_limit_bytes=VMEM_LIMIT_BYTES)


# ----------------------------- Pallas kernels -----------------------------

def _first_layer_pre(x_f32, pw_ref, lin_b_ref, id_ref, xw_ref, xhat_ref):
    """Packed layer-1 pre on an in-register row tile:
         z = x @ [conv1_w | lin1_w];  xw = z[:, :d];  x_hat = leaky(z[:, d:] + b) + id."""
    d = xw_ref.shape[-1]
    z = jnp.dot(x_f32.astype(jnp.bfloat16), pw_ref[...],
                preferred_element_type=jnp.float32)
    xw_ref[...] = z[:, :d].astype(jnp.bfloat16)
    xhat_ref[...] = (_leaky(z[:, d:] + lin_b_ref[...])
                     + id_ref[...].astype(jnp.float32)).astype(jnp.bfloat16)


def prologue_user_kernel(pref_ref, pw_ref, lin_b_ref, id_ref, xw_ref, xhat_ref):
    x = _l2norm_rows(pref_ref[...])
    _first_layer_pre(x, pw_ref, lin_b_ref, id_ref, xw_ref, xhat_ref)


def prologue_item_kernel(feat_ref, mlp_w_ref, mlp_b_ref, pw_ref, lin_b_ref, id_ref,
                         xw_ref, xhat_ref):
    t = jnp.dot(feat_ref[...], mlp_w_ref[...],
                preferred_element_type=jnp.float32) + mlp_b_ref[...]
    x = _l2norm_rows(t)
    _first_layer_pre(x, pw_ref, lin_b_ref, id_ref, xw_ref, xhat_ref)


def _agg_accumulate(adj_ref, xw_ref, acc_ref, *, tk, xw_resident):
    """acc += bf16(adj_int8_tile) @ xw_tile, f32 VMEM accumulator across the k axis."""
    k = pl.program_id(1)

    @pl.when(k == 0)
    def _():
        acc_ref[...] = jnp.zeros_like(acc_ref)

    if xw_resident:                       # whole xw lives in VMEM; slice the k panel
        off = pl.multiple_of(k * tk, tk)
        xw_blk = xw_ref[pl.ds(off, tk), :]
    else:
        xw_blk = xw_ref[...]
    acc_ref[...] += jnp.dot(adj_ref[...].astype(jnp.bfloat16), xw_blk,
                            preferred_element_type=jnp.float32)


def _agg_finalize_x(acc_ref, g_w_ref, g_b_ref, xhat_ref):
    """x = leaky( leaky(acc) @ g_w + g_b + x_hat )  in f32."""
    h = _leaky(acc_ref[...]).astype(jnp.bfloat16)
    y = jnp.dot(h, g_w_ref[...], preferred_element_type=jnp.float32)
    return _leaky(y + g_b_ref[...] + xhat_ref[...].astype(jnp.float32))


def layer_agg_fused_kernel(adj_ref, xw_ref, g_w_ref, g_b_ref, xhat_ref,
                           pw_ref, lin_b_ref, id_ref,
                           xw_next_ref, xhat_next_ref, acc_ref, *, tk, xw_resident):
    """Adjacency aggregation + g_layer epilogue + NEXT layer's pre, fused in finalize."""
    _agg_accumulate(adj_ref, xw_ref, acc_ref, tk=tk, xw_resident=xw_resident)

    @pl.when(pl.program_id(1) == pl.num_programs(1) - 1)
    def _():
        x_new = _agg_finalize_x(acc_ref, g_w_ref, g_b_ref, xhat_ref).astype(jnp.bfloat16)
        d = xw_next_ref.shape[-1]
        z = jnp.dot(x_new, pw_ref[...], preferred_element_type=jnp.float32)
        xw_next_ref[...] = z[:, :d].astype(jnp.bfloat16)
        xhat_next_ref[...] = (_leaky(z[:, d:] + lin_b_ref[...])
                              + id_ref[...].astype(jnp.float32)).astype(jnp.bfloat16)


def layer_agg_final_kernel(adj_ref, xw_ref, g_w_ref, g_b_ref, xhat_ref,
                           x_out_ref, acc_ref, *, tk, xw_resident):
    """Last layer: adjacency aggregation + g_layer epilogue, f32 output."""
    _agg_accumulate(adj_ref, xw_ref, acc_ref, tk=tk, xw_resident=xw_resident)

    @pl.when(pl.program_id(1) == pl.num_programs(1) - 1)
    def _():
        x_out_ref[...] = _agg_finalize_x(acc_ref, g_w_ref, g_b_ref, xhat_ref)


# ------------------------------ call wrappers ------------------------------

def prologue_user(preference, pw1_bf, lin1_b, id_user_bf, *, tp):
    num_user, dim_latent = preference.shape
    d_hat = lin1_b.shape[1]
    d_xw = pw1_bf.shape[1] - d_hat
    return pl.pallas_call(
        prologue_user_kernel,
        out_shape=(jax.ShapeDtypeStruct((num_user, d_xw), jnp.bfloat16),
                   jax.ShapeDtypeStruct((num_user, d_hat), jnp.bfloat16)),
        grid_spec=pltpu.PrefetchScalarGridSpec(
            num_scalar_prefetch=0,
            grid=(num_user // tp,),
            in_specs=[
                pl.BlockSpec((tp, dim_latent), lambda i: (i, 0)),          # preference
                pl.BlockSpec((dim_latent, d_xw + d_hat), lambda i: (0, 0)),  # packed w1
                pl.BlockSpec((1, d_hat), lambda i: (0, 0)),                # lin1_b
                pl.BlockSpec((tp, d_hat), lambda i: (i, 0)),               # id (user rows)
            ],
            out_specs=(pl.BlockSpec((tp, d_xw), lambda i: (i, 0)),
                       pl.BlockSpec((tp, d_hat), lambda i: (i, 0))),
        ),
        compiler_params=_compiler_params(("parallel",)),
    )(preference, pw1_bf, lin1_b, id_user_bf)


def prologue_item(features_bf, mlp_w_bf, mlp_b, pw1_bf, lin1_b, id_item_bf, *, tp):
    num_item, dim_feat = features_bf.shape
    dim_latent = mlp_w_bf.shape[1]
    d_hat = lin1_b.shape[1]
    d_xw = pw1_bf.shape[1] - d_hat
    return pl.pallas_call(
        prologue_item_kernel,
        out_shape=(jax.ShapeDtypeStruct((num_item, d_xw), jnp.bfloat16),
                   jax.ShapeDtypeStruct((num_item, d_hat), jnp.bfloat16)),
        grid_spec=pltpu.PrefetchScalarGridSpec(
            num_scalar_prefetch=0,
            grid=(num_item // tp,),
            in_specs=[
                pl.BlockSpec((tp, dim_feat), lambda i: (i, 0)),              # features
                pl.BlockSpec((dim_feat, dim_latent), lambda i: (0, 0)),      # mlp_w
                pl.BlockSpec((1, dim_latent), lambda i: (0, 0)),             # mlp_b
                pl.BlockSpec((dim_latent, d_xw + d_hat), lambda i: (0, 0)),  # packed w1
                pl.BlockSpec((1, d_hat), lambda i: (0, 0)),                  # lin1_b
                pl.BlockSpec((tp, d_hat), lambda i: (i, 0)),                 # id (item rows)
            ],
            out_specs=(pl.BlockSpec((tp, d_xw), lambda i: (i, 0)),
                       pl.BlockSpec((tp, d_hat), lambda i: (i, 0))),
        ),
        compiler_params=_compiler_params(("parallel",)),
    )(features_bf, mlp_w_bf, mlp_b, pw1_bf, lin1_b, id_item_bf)


def layer_agg(adj_i8, xw_bf, g_w_bf, g_b, xhat_bf, *, tm, tk, xw_resident,
              next_pre=None, id_bf=None):
    n_nodes, d_in = xw_bf.shape
    d_id = g_w_bf.shape[1]
    grid = (n_nodes // tm, n_nodes // tk)

    if xw_resident:   # whole xw stays in VMEM -> no per-row-panel re-stream of xw
        xw_spec = pl.BlockSpec((n_nodes, d_in), lambda i, k: (0, 0))
    else:
        xw_spec = pl.BlockSpec((tk, d_in), lambda i, k: (k, 0))

    common_in_specs = [
        pl.BlockSpec((tm, tk), lambda i, k: (i, k)),        # adjacency (int8)
        xw_spec,                                            # xw (bf16)
        pl.BlockSpec((d_in, d_id), lambda i, k: (0, 0)),    # g_w
        pl.BlockSpec((1, d_id), lambda i, k: (0, 0)),       # g_b
        pl.BlockSpec((tm, d_id), lambda i, k: (i, 0)),      # x_hat
    ]
    scratch = [pltpu.VMEM((tm, d_in), jnp.float32)]
    cp = _compiler_params(("parallel", "arbitrary"))

    if next_pre is None:
        kernel = functools.partial(layer_agg_final_kernel, tk=tk, xw_resident=xw_resident)
        return pl.pallas_call(
            kernel,
            out_shape=jax.ShapeDtypeStruct((n_nodes, d_id), jnp.float32),
            grid_spec=pltpu.PrefetchScalarGridSpec(
                num_scalar_prefetch=0, grid=grid,
                in_specs=common_in_specs,
                out_specs=pl.BlockSpec((tm, d_id), lambda i, k: (i, 0)),
                scratch_shapes=scratch),
            compiler_params=cp,
        )(adj_i8, xw_bf, g_w_bf, g_b, xhat_bf)

    pw_bf, lin_b = next_pre
    d_hat = lin_b.shape[1]
    d_xw_next = pw_bf.shape[1] - d_hat
    kernel = functools.partial(layer_agg_fused_kernel, tk=tk, xw_resident=xw_resident)
    in_specs = common_in_specs + [
        pl.BlockSpec((d_id, d_xw_next + d_hat), lambda i, k: (0, 0)),   # packed next w
        pl.BlockSpec((1, d_hat), lambda i, k: (0, 0)),                  # next lin_b
        pl.BlockSpec((tm, d_hat), lambda i, k: (i, 0)),                 # id_embedding
    ]
    return pl.pallas_call(
        kernel,
        out_shape=(jax.ShapeDtypeStruct((n_nodes, d_xw_next), jnp.bfloat16),
                   jax.ShapeDtypeStruct((n_nodes, d_hat), jnp.bfloat16)),
        grid_spec=pltpu.PrefetchScalarGridSpec(
            num_scalar_prefetch=0, grid=grid,
            in_specs=in_specs,
            out_specs=(pl.BlockSpec((tm, d_xw_next), lambda i, k: (i, 0)),
                       pl.BlockSpec((tm, d_hat), lambda i, k: (i, 0))),
            scratch_shapes=scratch),
        compiler_params=cp,
    )(adj_i8, xw_bf, g_w_bf, g_b, xhat_bf, pw_bf, lin_b, id_bf)


# ------------------------------- GCN forward -------------------------------

def gcn_forward(params, adj_i8, features, id_embedding, *, tm=None, tk=None, tp=None,
                xw_resident_bytes=XW_RESIDENT_MAX_BYTES):
    num_user, dim_latent = params["preference"].shape
    num_item, _ = features.shape
    n_nodes = num_user + num_item
    dim_id = id_embedding.shape[1]

    # TODO(synk): pad node counts to 128 multiples / ragged tiles for arbitrary sizes.
    assert num_user % 128 == 0 and num_item % 128 == 0 and n_nodes % 128 == 0
    assert dim_latent % 128 == 0 and dim_id % 128 == 0

    tm = tm if tm is not None else _fit_tile(n_nodes, TM_DEFAULT)
    tk = tk if tk is not None else _fit_tile(n_nodes, TK_DEFAULT)
    tp_u = tp if tp is not None else _fit_tile(num_user, TP_DEFAULT)
    tp_i = tp if tp is not None else _fit_tile(num_item, TP_DEFAULT)
    assert n_nodes % tm == 0 and n_nodes % tk == 0
    assert num_user % tp_u == 0 and num_item % tp_i == 0

    bf = lambda a: a.astype(jnp.bfloat16)
    id_bf = bf(id_embedding)
    feat_bf = bf(features)
    pack = lambda cw, lw: bf(jnp.concatenate([cw, lw], axis=1))   # [conv_w | lin_w]
    pw1 = pack(params["conv1_w"], params["lin1_w"])
    pw2 = pack(params["conv2_w"], params["lin2_w"])
    pw3 = pack(params["conv3_w"], params["lin3_w"])

    # prologue (+ fused layer-1 pre); user and item rows handled by separate kernels
    xw_u, xh_u = prologue_user(params["preference"], pw1, params["lin1_b"],
                               id_bf[:num_user], tp=tp_u)
    xw_i, xh_i = prologue_item(feat_bf, bf(params["mlp_w"]), params["mlp_b"],
                               pw1, params["lin1_b"], id_bf[num_user:], tp=tp_i)
    xw = jnp.concatenate([xw_u, xw_i], axis=0)
    xhat = jnp.concatenate([xh_u, xh_i], axis=0)

    xw_res = (n_nodes * xw.shape[1] * 2) <= xw_resident_bytes

    # layer 1 aggregation + fused layer-2 pre
    xw, xhat = layer_agg(adj_i8, xw, bf(params["g1_w"]), params["g1_b"], xhat,
                         tm=tm, tk=tk, xw_resident=xw_res,
                         next_pre=(pw2, params["lin2_b"]), id_bf=id_bf)
    # layer 2 aggregation + fused layer-3 pre
    xw, xhat = layer_agg(adj_i8, xw, bf(params["g2_w"]), params["g2_b"], xhat,
                         tm=tm, tk=tk, xw_resident=xw_res,
                         next_pre=(pw3, params["lin3_b"]), id_bf=id_bf)
    # layer 3 aggregation (final, f32 output)
    x = layer_agg(adj_i8, xw, bf(params["g3_w"]), params["g3_b"], xhat,
                  tm=tm, tk=tk, xw_resident=xw_res)
    return x


# ------------------------- pure-JAX reference ------------------------------
# Mirrors the kernel's numerics (bf16 MXU inputs, f32 accumulation, bf16 intermediates)
# so the comparison is tight; op semantics match the torch module's forward.

def gcn_forward_ref(params, adj_i8, features, id_embedding):
    f32 = jnp.float32
    bf = lambda a: a.astype(jnp.bfloat16)
    adj_bf = adj_i8.astype(jnp.bfloat16)
    id_f32 = bf(id_embedding).astype(f32)
    feat_bf = bf(features)

    def pre(x_f32, l):
        x_bf = bf(x_f32)
        xw = bf(jnp.dot(x_bf, bf(params[f"conv{l}_w"]), preferred_element_type=f32))
        xhat = bf(_leaky(jnp.dot(x_bf, bf(params[f"lin{l}_w"]),
                                 preferred_element_type=f32) + params[f"lin{l}_b"])
                  + id_f32)
        return xw, xhat

    xu = _l2norm_rows(params["preference"])
    ti = jnp.dot(feat_bf, bf(params["mlp_w"]), preferred_element_type=f32) + params["mlp_b"]
    xi = _l2norm_rows(ti)
    x = jnp.concatenate([xu, xi], axis=0)
    xw, xhat = pre(x, 1)

    for l in (1, 2, 3):
        h = bf(_leaky(jnp.dot(adj_bf, xw, preferred_element_type=f32)))
        y = jnp.dot(h, bf(params[f"g{l}_w"]), preferred_element_type=f32) \
            + params[f"g{l}_b"] + xhat.astype(f32)
        x = _leaky(y)
        if l < 3:
            xw, xhat = pre(x, l + 1)
    return x


# ------------------------------- setup -------------------------------------

def xavier_normal(key, fan_in, fan_out, shape):
    std = jnp.sqrt(2.0 / (fan_in + fan_out))
    return std * jax.random.normal(key, shape, dtype=jnp.float32)


def make_params(key, num_user, dim_feat, dim_latent, dim_id):
    keys = jax.random.split(key, 16)
    p = {}
    p["preference"] = xavier_normal(keys[0], dim_latent, num_user, (num_user, dim_latent))
    # nn.Linear weights stored pre-transposed as (in, out)
    p["mlp_w"] = xavier_normal(keys[1], dim_feat, dim_latent, (dim_feat, dim_latent))
    p["mlp_b"] = 0.01 * jax.random.normal(keys[2], (1, dim_latent), dtype=jnp.float32)
    p["conv1_w"] = xavier_normal(keys[3], dim_latent, dim_latent, (dim_latent, dim_latent))
    p["lin1_w"] = xavier_normal(keys[4], dim_latent, dim_id, (dim_latent, dim_id))
    p["lin1_b"] = 0.01 * jax.random.normal(keys[5], (1, dim_id), dtype=jnp.float32)
    p["g1_w"] = xavier_normal(keys[6], dim_latent, dim_id, (dim_latent, dim_id))
    p["g1_b"] = 0.01 * jax.random.normal(keys[7], (1, dim_id), dtype=jnp.float32)
    for l, k0 in ((2, 8), (3, 12)):
        p[f"conv{l}_w"] = xavier_normal(keys[k0], dim_id, dim_id, (dim_id, dim_id))
        p[f"lin{l}_w"] = xavier_normal(keys[k0 + 1], dim_id, dim_id, (dim_id, dim_id))
        p[f"lin{l}_b"] = 0.01 * jax.random.normal(keys[k0 + 2], (1, dim_id), dtype=jnp.float32)
        p[f"g{l}_w"] = xavier_normal(keys[k0 + 3], dim_id, dim_id, (dim_id, dim_id))
        p[f"g{l}_b"] = jnp.zeros((1, dim_id), dtype=jnp.float32)
    return p


def make_adjacency(key, num_user, num_item):
    """Dense adjacency for aggr='add' scatter: A[dst, src] += 1 per directed edge."""
    n = num_user + num_item
    users = jax.random.randint(key, (num_item, 3), 0, num_user)
    items = num_user + jnp.arange(num_item)[:, None] * jnp.ones((1, 3), jnp.int32)
    src = jnp.concatenate([users.reshape(-1), items.reshape(-1)])
    dst = jnp.concatenate([items.reshape(-1), users.reshape(-1)])
    return jnp.zeros((n, n), jnp.float32).at[dst, src].add(1.0)


if __name__ == "__main__":
    key = jax.random.PRNGKey(0)
    k_par, k_adj, k_feat, k_id = jax.random.split(key, 4)

    # small, lane-dense shapes: 512 nodes, 128-wide latent/id, 256-wide features
    num_user, num_item = 256, 256
    dim_feat, dim_latent, dim_id = 256, 128, 128
    n_nodes = num_user + num_item

    params = make_params(k_par, num_user, dim_feat, dim_latent, dim_id)
    adj = make_adjacency(k_adj, num_user, num_item)
    adj_i8 = adj.astype(jnp.int8)            # exact: small integer edge multiplicities
    features = jax.random.normal(k_feat, (num_item, dim_feat), dtype=jnp.float32)
    id_embedding = jax.random.normal(k_id, (n_nodes, dim_id), dtype=jnp.float32)

    # (a) tiled-xw path with small tiles -> exercises multi-step accumulator pipeline
    fwd_tiled = jax.jit(functools.partial(gcn_forward, tm=128, tk=256, tp=128,
                                          xw_resident_bytes=0))
    out_tiled = jax.block_until_ready(fwd_tiled(params, adj_i8, features, id_embedding))

    # (b) production defaults: big tiles + VMEM-resident xw
    fwd_default = jax.jit(gcn_forward)
    out_default = jax.block_until_ready(fwd_default(params, adj_i8, features, id_embedding))

    assert out_tiled.shape == (n_nodes, dim_id) and out_tiled.dtype == jnp.float32
    ref = gcn_forward_ref(params, adj_i8, features, id_embedding)
    for out in (out_tiled, out_default):
        assert jnp.allclose(out, ref, atol=2e-2, rtol=2e-2), "mismatch vs reference"

    print("KERNEL_OK")
</pallas_src>

<mosaic_0001>
module attributes {stable_mosaic.version = 11 : i64} {
  func.func @prologue_user_kernel(%arg0: i32, %arg1: memref<128x128xf32, #tpu.memory_space<vmem>>, %arg2: memref<128x256xbf16, #tpu.memory_space<vmem>>, %arg3: memref<1x128xf32, #tpu.memory_space<vmem>>, %arg4: memref<128x128xbf16, #tpu.memory_space<vmem>>, %arg5: memref<128x128xbf16, #tpu.memory_space<vmem>>, %arg6: memref<128x128xbf16, #tpu.memory_space<vmem>>) attributes {dimension_semantics = [#tpu.dimension_semantics<parallel>], iteration_bounds = array<i64: 2>, scalar_prefetch = 0 : i64, scratch_operands = 0 : i64, tpu.core_type = #tpu.core_type<tc>, window_params = [{transform_indices = @transform_0, window_bounds = array<i64: 128, 128>}, {pipeline_mode = #tpu.pipeline_mode<synchronous>, transform_indices = @transform_1, window_bounds = array<i64: 128, 256>}, {pipeline_mode = #tpu.pipeline_mode<synchronous>, transform_indices = @transform_2, window_bounds = array<i64: 1, 128>}, {transform_indices = @transform_3, window_bounds = array<i64: 128, 128>}, {transform_indices = @transform_4, window_bounds = array<i64: 128, 128>}, {transform_indices = @transform_5, window_bounds = array<i64: 128, 128>}]} {
    %c0 = arith.constant 0 : index
    %c0_0 = arith.constant 0 : index
    %0 = vector.load %arg1[%c0, %c0_0] : memref<128x128xf32, #tpu.memory_space<vmem>>, vector<128x128xf32>
    %1 = arith.mulf %0, %0 : vector<128x128xf32>
    %cst = arith.constant dense<0.000000e+00> : vector<128xf32>
    %2 = vector.multi_reduction <add>, %1, %cst [1] : vector<128x128xf32> to vector<128xf32>
    %3 = vector.shape_cast %2 : vector<128xf32> to vector<128x1xf32>
    %cst_1 = arith.constant 1.000000e-24 : f32
    %4 = vector.broadcast %cst_1 : f32 to vector<128x1xf32>
    %5 = arith.maximumf %3, %4 : vector<128x1xf32>
    %6 = math.rsqrt %5 : vector<128x1xf32>
    %7 = vector.broadcast %6 : vector<128x1xf32> to vector<128x128xf32>
    %8 = arith.mulf %0, %7 : vector<128x128xf32>
    %9 = arith.truncf %8 : vector<128x128xf32> to vector<128x128xbf16>
    %c0_2 = arith.constant 0 : index
    %c0_3 = arith.constant 0 : index
    %10 = vector.load %arg2[%c0_2, %c0_3] : memref<128x256xbf16, #tpu.memory_space<vmem>>, vector<128x256xbf16>
    %cst_4 = arith.constant dense<0.000000e+00> : vector<128x256xf32>
    %11 = tpu.matmul %9, %10, %cst_4 {dimension_numbers = #tpu.dot_dimension_numbers<[1], [0], [0], [1], [0, 0, 1, 1], [], []>} : vector<128x128xbf16>, vector<128x256xbf16>, vector<128x256xf32> -> vector<128x256xf32>
    %12 = vector.extract_strided_slice %11 {offsets = [0, 0], sizes = [128, 128], strides = [1, 1]} : vector<128x256xf32> to vector<128x128xf32>
    %13 = arith.truncf %12 : vector<128x128xf32> to vector<128x128xbf16>
    %c0_5 = arith.constant 0 : index
    %c0_6 = arith.constant 0 : index
    %14 = vector.load %arg5[%c0_5, %c0_6] : memref<128x128xbf16, #tpu.memory_space<vmem>>, vector<128x128xbf16>
    tpu.vector_store %arg5[%c0_5, %c0_6], %13 {strides = array<i32>} : memref<128x128xbf16, #tpu.memory_space<vmem>>, vector<128x128xbf16>,
    %15 = vector.extract_strided_slice %11 {offsets = [0, 128], sizes = [128, 128], strides = [1, 1]} : vector<128x256xf32> to vector<128x128xf32>
    %c0_7 = arith.constant 0 : index
    %c0_8 = arith.constant 0 : index
    %16 = vector.load %arg3[%c0_7, %c0_8] : memref<1x128xf32, #tpu.memory_space<vmem>>, vector<1x128xf32>
    %17 = vector.broadcast %16 : vector<1x128xf32> to vector<128x128xf32>
    %18 = arith.addf %15, %17 : vector<128x128xf32>
    %cst_9 = arith.constant 0.000000e+00 : f32
    %19 = vector.broadcast %cst_9 : f32 to vector<128x128xf32>
    %20 = arith.cmpf oge, %18, %19 : vector<128x128xf32>
    %cst_10 = arith.constant 0.00999999977 : f32
    %21 = vector.broadcast %cst_10 : f32 to vector<128x128xf32>
    %22 = arith.mulf %21, %18 : vector<128x128xf32>
    %23 = arith.select %20, %18, %22 : vector<128x128xi1>, vector<128x128xf32>
    %c0_11 = arith.constant 0 : index
    %c0_12 = arith.constant 0 : index
    %24 = vector.load %arg4[%c0_11, %c0_12] : memref<128x128xbf16, #tpu.memory_space<vmem>>, vector<128x128xbf16>
    %25 = arith.extf %24 : vector<128x128xbf16> to vector<128x128xf32>
    %26 = arith.addf %23, %25 : vector<128x128xf32>
    %27 = arith.truncf %26 : vector<128x128xf32> to vector<128x128xbf16>
    %c0_13 = arith.constant 0 : index
    %c0_14 = arith.constant 0 : index
    %28 = vector.load %arg6[%c0_13, %c0_14] : memref<128x128xbf16, #tpu.memory_space<vmem>>, vector<128x128xbf16>
    tpu.vector_store %arg6[%c0_13, %c0_14], %27 {strides = array<i32>} : memref<128x128xbf16, #tpu.memory_space<vmem>>, vector<128x128xbf16>,
    return
  }
  func.func @transform_0(%arg0: i32) -> (i32, i32) {
    %c0_i32 = arith.constant 0 : i32
    %c0_i32_0 = arith.constant 0 : i32
    return %arg0, %c0_i32 : i32, i32
  }
  func.func @transform_1(%arg0: i32) -> (i32, i32) {
    %c0_i32 = arith.constant 0 : i32
    %c0_i32_0 = arith.constant 0 : i32
    %c0_i32_1 = arith.constant 0 : i32
    return %c0_i32, %c0_i32_0 : i32, i32
  }
  func.func @transform_2(%arg0: i32) -> (i32, i32) {
    %c0_i32 = arith.constant 0 : i32
    %c0_i32_0 = arith.constant 0 : i32
    %c0_i32_1 = arith.constant 0 : i32
    return %c0_i32, %c0_i32_0 : i32, i32
  }
  func.func @transform_3(%arg0: i32) -> (i32, i32) {
    %c0_i32 = arith.constant 0 : i32
    %c0_i32_0 = arith.constant 0 : i32
    return %arg0, %c0_i32 : i32, i32
  }
  func.func @transform_4(%arg0: i32) -> (i32, i32) {
    %c0_i32 = arith.constant 0 : i32
    %c0_i32_0 = arith.constant 0 : i32
    return %arg0, %c0_i32 : i32, i32
  }
  func.func @transform_5(%arg0: i32) -> (i32, i32) {
    %c0_i32 = arith.constant 0 : i32
    %c0_i32_0 = arith.constant 0 : i32
    return %arg0, %c0_i32 : i32, i32
  }
}

module attributes {stable_mosaic.version = 11 : i64} {
  func.func @prologue_item_kernel(%arg0: i32, %arg1: memref<128x256xbf16, #tpu.memory_space<vmem>>, %arg2: memref<256x128xbf16, #tpu.memory_space<vmem>>, %arg3: memref<1x128xf32, #tpu.memory_space<vmem>>, %arg4: memref<128x256xbf16, #tpu.memory_space<vmem>>, %arg5: memref<1x128xf32, #tpu.memory_space<vmem>>, %arg6: memref<128x128xbf16, #tpu.memory_space<vmem>>, %arg7: memref<128x128xbf16, #tpu.memory_space<vmem>>, %arg8: memref<128x128xbf16, #tpu.memory_space<vmem>>) attributes {dimension_semantics = [#tpu.dimension_semantics<parallel>], iteration_bounds = array<i64: 2>, scalar_prefetch = 0 : i64, scratch_operands = 0 : i64, tpu.core_type = #tpu.core_type<tc>, window_params = [{transform_indices = @transform_0, window_bounds = array<i64: 128, 256>}, {pipeline_mode = #tpu.pipeline_mode<synchronous>, transform_indices = @transform_1, window_bounds = array<i64: 256, 128>}, {pipeline_mode = #tpu.pipeline_mode<synchronous>, transform_indices = @transform_2, window_bounds = array<i64: 1, 128>}, {pipeline_mode = #tpu.pipeline_mode<synchronous>, transform_indices = @transform_3, window_bounds = array<i64: 128, 256>}, {pipeline_mode = #tpu.pipeline_mode<synchronous>, transform_indices = @transform_4, window_bounds = array<i64: 1, 128>}, {transform_indices = @transform_5, window_bounds = array<i64: 128, 128>}, {transform_indices = @transform_6, window_bounds = array<i64: 128, 128>}, {transform_indices = @transform_7, window_bounds = array<i64: 128, 128>}]} {
    %c0 = arith.constant 0 : index
    %c0_0 = arith.constant 0 : index
    %0 = vector.load %arg1[%c0, %c0_0] : memref<128x256xbf16, #tpu.memory_space<vmem>>, vector<128x256xbf16>
    %c0_1 = arith.constant 0 : index
    %c0_2 = arith.constant 0 : index
    %1 = vector.load %arg2[%c0_1, %c0_2] : memref<256x128xbf16, #tpu.memory_space<vmem>>, vector<256x128xbf16>
    %cst = arith.constant dense<0.000000e+00> : vector<128x128xf32>
    %2 = tpu.matmul %0, %1, %cst {dimension_numbers = #tpu.dot_dimension_numbers<[1], [0], [0], [1], [0, 0, 1, 1], [], []>} : vector<128x256xbf16>, vector<256x128xbf16>, vector<128x128xf32> -> vector<128x128xf32>
    %c0_3 = arith.constant 0 : index
    %c0_4 = arith.constant 0 : index
    %3 = vector.load %arg3[%c0_3, %c0_4] : memref<1x128xf32, #tpu.memory_space<vmem>>, vector<1x128xf32>
    %4 = vector.broadcast %3 : vector<1x128xf32> to vector<128x128xf32>
    %5 = arith.addf %2, %4 : vector<128x128xf32>
    %6 = arith.mulf %5, %5 : vector<128x128xf32>
    %cst_5 = arith.constant dense<0.000000e+00> : vector<128xf32>
    %7 = vector.multi_reduction <add>, %6, %cst_5 [1] : vector<128x128xf32> to vector<128xf32>
    %8 = vector.shape_cast %7 : vector<128xf32> to vector<128x1xf32>
    %cst_6 = arith.constant 1.000000e-24 : f32
    %9 = vector.broadcast %cst_6 : f32 to vector<128x1xf32>
    %10 = arith.maximumf %8, %9 : vector<128x1xf32>
    %11 = math.rsqrt %10 : vector<128x1xf32>
    %12 = vector.broadcast %11 : vector<128x1xf32> to vector<128x128xf32>
    %13 = arith.mulf %5, %12 : vector<128x128xf32>
    %14 = arith.truncf %13 : vector<128x128xf32> to vector<128x128xbf16>
    %c0_7 = arith.constant 0 : index
    %c0_8 = arith.constant 0 : index
    %15 = vector.load %arg4[%c0_7, %c0_8] : memref<128x256xbf16, #tpu.memory_space<vmem>>, vector<128x256xbf16>
    %cst_9 = arith.constant dense<0.000000e+00> : vector<128x256xf32>
    %16 = tpu.matmul %14, %15, %cst_9 {dimension_numbers = #tpu.dot_dimension_numbers<[1], [0], [0], [1], [0, 0, 1, 1], [], []>} : vector<128x128xbf16>, vector<128x256xbf16>, vector<128x256xf32> -> vector<128x256xf32>
    %17 = vector.extract_strided_slice %16 {offsets = [0, 0], sizes = [128, 128], strides = [1, 1]} : vector<128x256xf32> to vector<128x128xf32>
    %18 = arith.truncf %17 : vector<128x128xf32> to vector<128x128xbf16>
    %c0_10 = arith.constant 0 : index
    %c0_11 = arith.constant 0 : index
    %19 = vector.load %arg7[%c0_10, %c0_11] : memref<128x128xbf16, #tpu.memory_space<vmem>>, vector<128x128xbf16>
    tpu.vector_store %arg7[%c0_10, %c0_11], %18 {strides = array<i32>} : memref<128x128xbf16, #tpu.memory_space<vmem>>, vector<128x128xbf16>,
    %20 = vector.extract_strided_slice %16 {offsets = [0, 128], sizes = [128, 128], strides = [1, 1]} : vector<128x256xf32> to vector<128x128xf32>
    %c0_12 = arith.constant 0 : index
    %c0_13 = arith.constant 0 : index
    %21 = vector.load %arg5[%c0_12, %c0_13] : memref<1x128xf32, #tpu.memory_space<vmem>>, vector<1x128xf32>
    %22 = vector.broadcast %21 : vector<1x128xf32> to vector<128x128xf32>
    %23 = arith.addf %20, %22 : vector<128x128xf32>
    %cst_14 = arith.constant 0.000000e+00 : f32
    %24 = vector.broadcast %cst_14 : f32 to vector<128x128xf32>
    %25 = arith.cmpf oge, %23, %24 : vector<128x128xf32>
    %cst_15 = arith.constant 0.00999999977 : f32
    %26 = vector.broadcast %cst_15 : f32 to vector<128x128xf32>
    %27 = arith.mulf %26, %23 : vector<128x128xf32>
    %28 = arith.select %25, %23, %27 : vector<128x128xi1>, vector<128x128xf32>
    %c0_16 = arith.constant 0 : index
    %c0_17 = arith.constant 0 : index
    %29 = vector.load %arg6[%c0_16, %c0_17] : memref<128x128xbf16, #tpu.memory_space<vmem>>, vector<128x128xbf16>
    %30 = arith.extf %29 : vector<128x128xbf16> to vector<128x128xf32>
    %31 = arith.addf %28, %30 : vector<128x128xf32>
    %32 = arith.truncf %31 : vector<128x128xf32> to vector<128x128xbf16>
    %c0_18 = arith.constant 0 : index
    %c0_19 = arith.constant 0 : index
    %33 = vector.load %arg8[%c0_18, %c0_19] : memref<128x128xbf16, #tpu.memory_space<vmem>>, vector<128x128xbf16>
    tpu.vector_store %arg8[%c0_18, %c0_19], %32 {strides = array<i32>} : memref<128x128xbf16, #tpu.memory_space<vmem>>, vector<128x128xbf16>,
    return
  }
  func.func @transform_0(%arg0: i32) -> (i32, i32) {
    %c0_i32 = arith.constant 0 : i32
    %c0_i32_0 = arith.constant 0 : i32
    return %arg0, %c0_i32 : i32, i32
  }
  func.func @transform_1(%arg0: i32) -> (i32, i32) {
    %c0_i32 = arith.constant 0 : i32
    %c0_i32_0 = arith.constant 0 : i32
    %c0_i32_1 = arith.constant 0 : i32
    return %c0_i32, %c0_i32_0 : i32, i32
  }
  func.func @transform_2(%arg0: i32) -> (i32, i32) {
    %c0_i32 = arith.constant 0 : i32
    %c0_i32_0 = arith.constant 0 : i32
    %c0_i32_1 = arith.constant 0 : i32
    return %c0_i32, %c0_i32_0 : i32, i32
  }
  func.func @transform_3(%arg0: i32) -> (i32, i32) {
    %c0_i32 = arith.constant 0 : i32
    %c0_i32_0 = arith.constant 0 : i32
    %c0_i32_1 = arith.constant 0 : i32
    return %c0_i32, %c0_i32_0 : i32, i32
  }
  func.func @transform_4(%arg0: i32) -> (i32, i32) {
    %c0_i32 = arith.constant 0 : i32
    %c0_i32_0 = arith.constant 0 : i32
    %c0_i32_1 = arith.constant 0 : i32
    return %c0_i32, %c0_i32_0 : i32, i32
  }
  func.func @transform_5(%arg0: i32) -> (i32, i32) {
    %c0_i32 = arith.constant 0 : i32
    %c0_i32_0 = arith.constant 0 : i32
    return %arg0, %c0_i32 : i32, i32
  }
  func.func @transform_6(%arg0: i32) -> (i32, i32) {
    %c0_i32 = arith.constant 0 : i32
    %c0_i32_0 = arith.constant 0 : i32
    return %arg0, %c0_i32 : i32, i32
  }
  func.func @transform_7(%arg0: i32) -> (i32, i32) {
    %c0_i32 = arith.constant 0 : i32
    %c0_i32_0 = arith.constant 0 : i32
    return %arg0, %c0_i32 : i32, i32
  }
}

module attributes {stable_mosaic.version = 11 : i64} {
  func.func @layer_agg_final_kernel(%arg0: i32, %arg1: i32, %arg2: memref<128x256xi8, #tpu.memory_space<vmem>>, %arg3: memref<256x128xbf16, #tpu.memory_space<vmem>>, %arg4: memref<128x128xbf16, #tpu.memory_space<vmem>>, %arg5: memref<1x128xf32, #tpu.memory_space<vmem>>, %arg6: memref<128x128xbf16, #tpu.memory_space<vmem>>, %arg7: memref<128x128xf32, #tpu.memory_space<vmem>>, %arg8: memref<128x128xf32, #tpu.memory_space<vmem>>) attributes {dimension_semantics = [#tpu.dimension_semantics<parallel>, #tpu.dimension_semantics<arbitrary>], iteration_bounds = array<i64: 4, 2>, scalar_prefetch = 0 : i64, scratch_operands = 1 : i64, tpu.core_type = #tpu.core_type<tc>, window_params = [{transform_indices = @transform_0, window_bounds = array<i64: 128, 256>}, {transform_indices = @transform_1, window_bounds = array<i64: 256, 128>}, {pipeline_mode = #tpu.pipeline_mode<synchronous>, transform_indices = @transform_2, window_bounds = array<i64: 128, 128>}, {pipeline_mode = #tpu.pipeline_mode<synchronous>, transform_indices = @transform_3, window_bounds = array<i64: 1, 128>}, {transform_indices = @transform_4, window_bounds = array<i64: 128, 128>}, {transform_indices = @transform_5, window_bounds = array<i64: 128, 128>}]} {
    %c0_i32 = arith.constant 0 : i32
    %0 = arith.cmpi eq, %arg1, %c0_i32 : i32
    %1 = arith.extui %0 : i1 to i32
    %c0_i32_0 = arith.constant 0 : i32
    %2 = arith.cmpi ne, %1, %c0_i32_0 : i32
    scf.if %2 {
      %cst_9 = arith.constant 0.000000e+00 : f32
      %13 = vector.broadcast %cst_9 : f32 to vector<128x128xf32>
      %c0_10 = arith.constant 0 : index
      %c0_11 = arith.constant 0 : index
      %14 = vector.load %arg8[%c0_10, %c0_11] : memref<128x128xf32, #tpu.memory_space<vmem>>, vector<128x128xf32>
      tpu.vector_store %arg8[%c0_10, %c0_11], %13 {strides = array<i32>} : memref<128x128xf32, #tpu.memory_space<vmem>>, vector<128x128xf32>,
    } else {
    }
    %c0 = arith.constant 0 : index
    %c0_1 = arith.constant 0 : index
    %3 = vector.load %arg3[%c0, %c0_1] : memref<256x128xbf16, #tpu.memory_space<vmem>>, vector<256x128xbf16>
    %c0_2 = arith.constant 0 : index
    %c0_3 = arith.constant 0 : index
    %4 = vector.load %arg8[%c0_2, %c0_3] : memref<128x128xf32, #tpu.memory_space<vmem>>, vector<128x128xf32>
    %c0_4 = arith.constant 0 : index
    %c0_5 = arith.constant 0 : index
    %5 = vector.load %arg2[%c0_4, %c0_5] : memref<128x256xi8, #tpu.memory_space<vmem>>, vector<128x256xi8>
    %6 = arith.sitofp %5 : vector<128x256xi8> to vector<128x256xbf16>
    %cst = arith.constant dense<0.000000e+00> : vector<128x128xf32>
    %7 = tpu.matmul %6, %3, %cst {dimension_numbers = #tpu.dot_dimension_numbers<[1], [0], [0], [1], [0, 0, 1, 1], [], []>} : vector<128x256xbf16>, vector<256x128xbf16>, vector<128x128xf32> -> vector<128x128xf32>
    %8 = arith.addf %4, %7 : vector<128x128xf32>
    %c0_6 = arith.constant 0 : index
    %c0_7 = arith.constant 0 : index
    %9 = vector.load %arg8[%c0_6, %c0_7] : memref<128x128xf32, #tpu.memory_space<vmem>>, vector<128x128xf32>
    tpu.vector_store %arg8[%c0_6, %c0_7], %8 {strides = array<i32>} : memref<128x128xf32, #tpu.memory_space<vmem>>, vector<128x128xf32>,
    %c1_i32 = arith.constant 1 : i32
    %10 = arith.cmpi eq, %arg1, %c1_i32 : i32
    %11 = arith.extui %10 : i1 to i32
    %c0_i32_8 = arith.constant 0 : i32
    %12 = arith.cmpi ne, %11, %c0_i32_8 : i32
    scf.if %12 {
      %c0_9 = arith.constant 0 : index
      %c0_10 = arith.constant 0 : index
      %13 = vector.load %arg8[%c0_9, %c0_10] : memref<128x128xf32, #tpu.memory_space<vmem>>, vector<128x128xf32>
      %cst_11 = arith.constant 0.000000e+00 : f32
      %14 = vector.broadcast %cst_11 : f32 to vector<128x128xf32>
      %15 = arith.cmpf oge, %13, %14 : vector<128x128xf32>
      %cst_12 = arith.constant 0.00999999977 : f32
      %16 = vector.broadcast %cst_12 : f32 to vector<128x128xf32>
      %17 = arith.mulf %16, %13 : vector<128x128xf32>
      %18 = arith.select %15, %13, %17 : vector<128x128xi1>, vector<128x128xf32>
      %19 = arith.truncf %18 : vector<128x128xf32> to vector<128x128xbf16>
      %c0_13 = arith.constant 0 : index
      %c0_14 = arith.constant 0 : index
      %20 = vector.load %arg4[%c0_13, %c0_14] : memref<128x128xbf16, #tpu.memory_space<vmem>>, vector<128x128xbf16>
      %cst_15 = arith.constant dense<0.000000e+00> : vector<128x128xf32>
      %21 = tpu.matmul %19, %20, %cst_15 {dimension_numbers = #tpu.dot_dimension_numbers<[1], [0], [0], [1], [0, 0, 1, 1], [], []>} : vector<128x128xbf16>, vector<128x128xbf16>, vector<128x128xf32> -> vector<128x128xf32>
      %c0_16 = arith.constant 0 : index
      %c0_17 = arith.constant 0 : index
      %22 = vector.load %arg5[%c0_16, %c0_17] : memref<1x128xf32, #tpu.memory_space<vmem>>, vector<1x128xf32>
      %23 = vector.broadcast %22 : vector<1x128xf32> to vector<128x128xf32>
      %24 = arith.addf %21, %23 : vector<128x128xf32>
      %c0_18 = arith.constant 0 : index
      %c0_19 = arith.constant 0 : index
      %25 = vector.load %arg6[%c0_18, %c0_19] : memref<128x128xbf16, #tpu.memory_space<vmem>>, vector<128x128xbf16>
      %26 = arith.extf %25 : vector<128x128xbf16> to vector<128x128xf32>
      %27 = arith.addf %24, %26 : vector<128x128xf32>
      %cst_20 = arith.constant 0.000000e+00 : f32
      %28 = vector.broadcast %cst_20 : f32 to vector<128x128xf32>
      %29 = arith.cmpf oge, %27, %28 : vector<128x128xf32>
      %cst_21 = arith.constant 0.00999999977 : f32
      %30 = vector.broadcast %cst_21 : f32 to vector<128x128xf32>
      %31 = arith.mulf %30, %27 : vector<128x128xf32>
      %32 = arith.select %29, %27, %31 : vector<128x128xi1>, vector<128x128xf32>
      %c0_22 = arith.constant 0 : index
      %c0_23 = arith.constant 0 : index
      %33 = vector.load %arg7[%c0_22, %c0_23] : memref<128x128xf32, #tpu.memory_space<vmem>>, vector<128x128xf32>
      tpu.vector_store %arg7[%c0_22, %c0_23], %32 {strides = array<i32>} : memref<128x128xf32, #tpu.memory_space<vmem>>, vector<128x128xf32>,
    } else {
    }
    return
  }
  func.func @transform_0(%arg0: i32, %arg1: i32) -> (i32, i32) {
    %c0_i32 = arith.constant 0 : i32
    return %arg0, %arg1 : i32, i32
  }
  func.func @transform_1(%arg0: i32, %arg1: i32) -> (i32, i32) {
    %c0_i32 = arith.constant 0 : i32
    %c0_i32_0 = arith.constant 0 : i32
    return %arg1, %c0_i32 : i32, i32
  }
  func.func @transform_2(%arg0: i32, %arg1: i32) -> (i32, i32) {
    %c0_i32 = arith.constant 0 : i32
    %c0_i32_0 = arith.constant 0 : i32
    %c0_i32_1 = arith.constant 0 : i32
    return %c0_i32, %c0_i32_0 : i32, i32
  }
  func.func @transform_3(%arg0: i32, %arg1: i32) -> (i32, i32) {
    %c0_i32 = arith.constant 0 : i32
    %c0_i32_0 = arith.constant 0 : i32
    %c0_i32_1 = arith.constant 0 : i32
    return %c0_i32, %c0_i32_0 : i32, i32
  }
  func.func @transform_4(%arg0: i32, %arg1: i32) -> (i32, i32) {
    %c0_i32 = arith.constant 0 : i32
    %c0_i32_0 = arith.constant 0 : i32
    return %arg0, %c0_i32 : i32, i32
  }
  func.func @transform_5(%arg0: i32, %arg1: i32) -> (i32, i32) {
    %c0_i32 = arith.constant 0 : i32
    %c0_i32_0 = arith.constant 0 : i32
    return %arg0, %c0_i32 : i32, i32
  }
}

module attributes {stable_mosaic.version = 11 : i64} {
  func.func @layer_agg_fused_kernel(%arg0: i32, %arg1: i32, %arg2: memref<128x256xi8, #tpu.memory_space<vmem>>, %arg3: memref<256x128xbf16, #tpu.memory_space<vmem>>, %arg4: memref<128x128xbf16, #tpu.memory_space<vmem>>, %arg5: memref<1x128xf32, #tpu.memory_space<vmem>>, %arg6: memref<128x128xbf16, #tpu.memory_space<vmem>>, %arg7: memref<128x256xbf16, #tpu.memory_space<vmem>>, %arg8: memref<1x128xf32, #tpu.memory_space<vmem>>, %arg9: memref<128x128xbf16, #tpu.memory_space<vmem>>, %arg10: memref<128x128xbf16, #tpu.memory_space<vmem>>, %arg11: memref<128x128xbf16, #tpu.memory_space<vmem>>, %arg12: memref<128x128xf32, #tpu.memory_space<vmem>>) attributes {dimension_semantics = [#tpu.dimension_semantics<parallel>, #tpu.dimension_semantics<arbitrary>], iteration_bounds = array<i64: 4, 2>, scalar_prefetch = 0 : i64, scratch_operands = 1 : i64, tpu.core_type = #tpu.core_type<tc>, window_params = [{transform_indices = @transform_0, window_bounds = array<i64: 128, 256>}, {transform_indices = @transform_1, window_bounds = array<i64: 256, 128>}, {pipeline_mode = #tpu.pipeline_mode<synchronous>, transform_indices = @transform_2, window_bounds = array<i64: 128, 128>}, {pipeline_mode = #tpu.pipeline_mode<synchronous>, transform_indices = @transform_3, window_bounds = array<i64: 1, 128>}, {transform_indices = @transform_4, window_bounds = array<i64: 128, 128>}, {pipeline_mode = #tpu.pipeline_mode<synchronous>, transform_indices = @transform_5, window_bounds = array<i64: 128, 256>}, {pipeline_mode = #tpu.pipeline_mode<synchronous>, transform_indices = @transform_6, window_bounds = array<i64: 1, 128>}, {transform_indices = @transform_7, window_bounds = array<i64: 128, 128>}, {transform_indices = @transform_8, window_bounds = array<i64: 128, 128>}, {transform_indices = @transform_9, window_bounds = array<i64: 128, 128>}]} {
    %c0_i32 = arith.constant 0 : i32
    %0 = arith.cmpi eq, %arg1, %c0_i32 : i32
    %1 = arith.extui %0 : i1 to i32
    %c0_i32_0 = arith.constant 0 : i32
    %2 = arith.cmpi ne, %1, %c0_i32_0 : i32
    scf.if %2 {
      %cst_9 = arith.constant 0.000000e+00 : f32
      %13 = vector.broadcast %cst_9 : f32 to vector<128x128xf32>
      %c0_10 = arith.constant 0 : index
      %c0_11 = arith.constant 0 : index
      %14 = vector.load %arg12[%c0_10, %c0_11] : memref<128x128xf32, #tpu.memory_space<vmem>>, vector<128x128xf32>
      tpu.vector_store %arg12[%c0_10, %c0_11], %13 {strides = array<i32>} : memref<128x128xf32, #tpu.memory_space<vmem>>, vector<128x128xf32>,
    } else {
    }
    %c0 = arith.constant 0 : index
    %c0_1 = arith.constant 0 : index
    %3 = vector.load %arg3[%c0, %c0_1] : memref<256x128xbf16, #tpu.memory_space<vmem>>, vector<256x128xbf16>
    %c0_2 = arith.constant 0 : index
    %c0_3 = arith.constant 0 : index
    %4 = vector.load %arg12[%c0_2, %c0_3] : memref<128x128xf32, #tpu.memory_space<vmem>>, vector<128x128xf32>
    %c0_4 = arith.constant 0 : index
    %c0_5 = arith.constant 0 : index
    %5 = vector.load %arg2[%c0_4, %c0_5] : memref<128x256xi8, #tpu.memory_space<vmem>>, vector<128x256xi8>
    %6 = arith.sitofp %5 : vector<128x256xi8> to vector<128x256xbf16>
    %cst = arith.constant dense<0.000000e+00> : vector<128x128xf32>
    %7 = tpu.matmul %6, %3, %cst {dimension_numbers = #tpu.dot_dimension_numbers<[1], [0], [0], [1], [0, 0, 1, 1], [], []>} : vector<128x256xbf16>, vector<256x128xbf16>, vector<128x128xf32> -> vector<128x128xf32>
    %8 = arith.addf %4, %7 : vector<128x128xf32>
    %c0_6 = arith.constant 0 : index
    %c0_7 = arith.constant 0 : index
    %9 = vector.load %arg12[%c0_6, %c0_7] : memref<128x128xf32, #tpu.memory_space<vmem>>, vector<128x128xf32>
    tpu.vector_store %arg12[%c0_6, %c0_7], %8 {strides = array<i32>} : memref<128x128xf32, #tpu.memory_space<vmem>>, vector<128x128xf32>,
    %c1_i32 = arith.constant 1 : i32
    %10 = arith.cmpi eq, %arg1, %c1_i32 : i32
    %11 = arith.extui %10 : i1 to i32
    %c0_i32_8 = arith.constant 0 : i32
    %12 = arith.cmpi ne, %11, %c0_i32_8 : i32
    scf.if %12 {
      %c0_9 = arith.constant 0 : index
      %c0_10 = arith.constant 0 : index
      %13 = vector.load %arg12[%c0_9, %c0_10] : memref<128x128xf32, #tpu.memory_space<vmem>>, vector<128x128xf32>
      %cst_11 = arith.constant 0.000000e+00 : f32
      %14 = vector.broadcast %cst_11 : f32 to vector<128x128xf32>
      %15 = arith.cmpf oge, %13, %14 : vector<128x128xf32>
      %cst_12 = arith.constant 0.00999999977 : f32
      %16 = vector.broadcast %cst_12 : f32 to vector<128x128xf32>
      %17 = arith.mulf %16, %13 : vector<128x128xf32>
      %18 = arith.select %15, %13, %17 : vector<128x128xi1>, vector<128x128xf32>
      %19 = arith.truncf %18 : vector<128x128xf32> to vector<128x128xbf16>
      %c0_13 = arith.constant 0 : index
      %c0_14 = arith.constant 0 : index
      %20 = vector.load %arg4[%c0_13, %c0_14] : memref<128x128xbf16, #tpu.memory_space<vmem>>, vector<128x128xbf16>
      %cst_15 = arith.constant dense<0.000000e+00> : vector<128x128xf32>
      %21 = tpu.matmul %19, %20, %cst_15 {dimension_numbers = #tpu.dot_dimension_numbers<[1], [0], [0], [1], [0, 0, 1, 1], [], []>} : vector<128x128xbf16>, vector<128x128xbf16>, vector<128x128xf32> -> vector<128x128xf32>
      %c0_16 = arith.constant 0 : index
      %c0_17 = arith.constant 0 : index
      %22 = vector.load %arg5[%c0_16, %c0_17] : memref<1x128xf32, #tpu.memory_space<vmem>>, vector<1x128xf32>
      %23 = vector.broadcast %22 : vector<1x128xf32> to vector<128x128xf32>
      %24 = arith.addf %21, %23 : vector<128x128xf32>
      %c0_18 = arith.constant 0 : index
      %c0_19 = arith.constant 0 : index
      %25 = vector.load %arg6[%c0_18, %c0_19] : memref<128x128xbf16, #tpu.memory_space<vmem>>, vector<128x128xbf16>
      %26 = arith.extf %25 : vector<128x128xbf16> to vector<128x128xf32>
      %27 = arith.addf %24, %26 : vector<128x128xf32>
      %cst_20 = arith.constant 0.000000e+00 : f32
      %28 = vector.broadcast %cst_20 : f32 to vector<128x128xf32>
      %29 = arith.cmpf oge, %27, %28 : vector<128x128xf32>
      %cst_21 = arith.constant 0.00999999977 : f32
      %30 = vector.broadcast %cst_21 : f32 to vector<128x128xf32>
      %31 = arith.mulf %30, %27 : vector<128x128xf32>
      %32 = arith.select %29, %27, %31 : vector<128x128xi1>, vector<128x128xf32>
      %33 = arith.truncf %32 : vector<128x128xf32> to vector<128x128xbf16>
      %c0_22 = arith.constant 0 : index
      %c0_23 = arith.constant 0 : index
      %34 = vector.load %arg7[%c0_22, %c0_23] : memref<128x256xbf16, #tpu.memory_space<vmem>>, vector<128x256xbf16>
      %cst_24 = arith.constant dense<0.000000e+00> : vector<128x256xf32>
      %35 = tpu.matmul %33, %34, %cst_24 {dimension_numbers = #tpu.dot_dimension_numbers<[1], [0], [0], [1], [0, 0, 1, 1], [], []>} : vector<128x128xbf16>, vector<128x256xbf16>, vector<128x256xf32> -> vector<128x256xf32>
      %36 = vector.extract_strided_slice %35 {offsets = [0, 0], sizes = [128, 128], strides = [1, 1]} : vector<128x256xf32> to vector<128x128xf32>
      %37 = arith.truncf %36 : vector<128x128xf32> to vector<128x128xbf16>
      %c0_25 = arith.constant 0 : index
      %c0_26 = arith.constant 0 : index
      %38 = vector.load %arg10[%c0_25, %c0_26] : memref<128x128xbf16, #tpu.memory_space<vmem>>, vector<128x128xbf16>
      tpu.vector_store %arg10[%c0_25, %c0_26], %37 {strides = array<i32>} : memref<128x128xbf16, #tpu.memory_space<vmem>>, vector<128x128xbf16>,
      %39 = vector.extract_strided_slice %35 {offsets = [0, 128], sizes = [128, 128], strides = [1, 1]} : vector<128x256xf32> to vector<128x128xf32>
      %c0_27 = arith.constant 0 : index
      %c0_28 = arith.constant 0 : index
      %40 = vector.load %arg8[%c0_27, %c0_28] : memref<1x128xf32, #tpu.memory_space<vmem>>, vector<1x128xf32>
      %41 = vector.broadcast %40 : vector<1x128xf32> to vector<128x128xf32>
      %42 = arith.addf %39, %41 : vector<128x128xf32>
      %cst_29 = arith.constant 0.000000e+00 : f32
      %43 = vector.broadcast %cst_29 : f32 to vector<128x128xf32>
      %44 = arith.cmpf oge, %42, %43 : vector<128x128xf32>
      %cst_30 = arith.constant 0.00999999977 : f32
      %45 = vector.broadcast %cst_30 : f32 to vector<128x128xf32>
      %46 = arith.mulf %45, %42 : vector<128x128xf32>
      %47 = arith.select %44, %42, %46 : vector<128x128xi1>, vector<128x128xf32>
      %c0_31 = arith.constant 0 : index
      %c0_32 = arith.constant 0 : index
      %48 = vector.load %arg9[%c0_31, %c0_32] : memref<128x128xbf16, #tpu.memory_space<vmem>>, vector<128x128xbf16>
      %49 = arith.extf %48 : vector<128x128xbf16> to vector<128x128xf32>
      %50 = arith.addf %47, %49 : vector<128x128xf32>
      %51 = arith.truncf %50 : vector<128x128xf32> to vector<128x128xbf16>
      %c0_33 = arith.constant 0 : index
      %c0_34 = arith.constant 0 : index
      %52 = vector.load %arg11[%c0_33, %c0_34] : memref<128x128xbf16, #tpu.memory_space<vmem>>, vector<128x128xbf16>
      tpu.vector_store %arg11[%c0_33, %c0_34], %51 {strides = array<i32>} : memref<128x128xbf16, #tpu.memory_space<vmem>>, vector<128x128xbf16>,
    } else {
    }
    return
  }
  func.func @transform_0(%arg0: i32, %arg1: i32) -> (i32, i32) {
    %c0_i32 = arith.constant 0 : i32
    return %arg0, %arg1 : i32, i32
  }
  func.func @transform_1(%arg0: i32, %arg1: i32) -> (i32, i32) {
    %c0_i32 = arith.constant 0 : i32
    %c0_i32_0 = arith.constant 0 : i32
    return %arg1, %c0_i32 : i32, i32
  }
  func.func @transform_2(%arg0: i32, %arg1: i32) -> (i32, i32) {
    %c0_i32 = arith.constant 0 : i32
    %c0_i32_0 = arith.constant 0 : i32
    %c0_i32_1 = arith.constant 0 : i32
    return %c0_i32, %c0_i32_0 : i32, i32
  }
  func.func @transform_3(%arg0: i32, %arg1: i32) -> (i32, i32) {
    %c0_i32 = arith.constant 0 : i32
    %c0_i32_0 = arith.constant 0 : i32
    %c0_i32_1 = arith.constant 0 : i32
    return %c0_i32, %c0_i32_0 : i32, i32
  }
  func.func @transform_4(%arg0: i32, %arg1: i32) -> (i32, i32) {
    %c0_i32 = arith.constant 0 : i32
    %c0_i32_0 = arith.constant 0 : i32
    return %arg0, %c0_i32 : i32, i32
  }
  func.func @transform_5(%arg0: i32, %arg1: i32) -> (i32, i32) {
    %c0_i32 = arith.constant 0 : i32
    %c0_i32_0 = arith.constant 0 : i32
    %c0_i32_1 = arith.constant 0 : i32
    return %c0_i32, %c0_i32_0 : i32, i32
  }
  func.func @transform_6(%arg0: i32, %arg1: i32) -> (i32, i32) {
    %c0_i32 = arith.constant 0 : i32
    %c0_i32_0 = arith.constant 0 : i32
    %c0_i32_1 = arith.constant 0 : i32
    return %c0_i32, %c0_i32_0 : i32, i32
  }
  func.func @transform_7(%arg0: i32, %arg1: i32) -> (i32, i32) {
    %c0_i32 = arith.constant 0 : i32
    %c0_i32_0 = arith.constant 0 : i32
    return %arg0, %c0_i32 : i32, i32
  }
  func.func @transform_8(%arg0: i32, %arg1: i32) -> (i32, i32) {
    %c0_i32 = arith.constant 0 : i32
    %c0_i32_0 = arith.constant 0 : i32
    return %arg0, %c0_i32 : i32, i32
  }
  func.func @transform_9(%arg0: i32, %arg1: i32) -> (i32, i32) {
    %c0_i32 = arith.constant 0 : i32
    %c0_i32_0 = arith.constant 0 : i32
    return %arg0, %c0_i32 : i32, i32
  }
}

</mosaic_0001>

<llo_original>
// kernel: gcn_forward.5
$region0: #{gcn_forward.5}
  #allocation0 [shape = 'u32[]', space=smem, size = 0x4, offset = 0x4, fixed_abs, tag = 'smem constant byte address 0x4 - core index']
  #allocation1 [shape = 'u32[144,128]{1,0:T(1,128)}', space=vmem, size = 0x12000, scoped, tag = 'internal scratch']
  %s0 = inlined_call_operand.vmem [shape: f32[256,128], index: 0, kind: input, shape index: {}]
  %s1 = inlined_call_operand.vmem [shape: bf16[128,256], index: 1, kind: input, shape index: {}]
  %s2 = inlined_call_operand.vmem [shape: f32[1,128], index: 2, kind: input, shape index: {}]
  %s3 = inlined_call_operand.vmem [shape: bf16[256,128], index: 3, kind: input, shape index: {}]
  %s4 = inlined_call_operand.vmem [shape: bf16[256,128], index: 4, kind: output, shape index: {0}]
  %s5 = inlined_call_operand.vmem [shape: bf16[256,128], index: 5, kind: output, shape index: {1}]
  %6 = xla_tuple %s4, %s5
  %s7 = sld [smem:[#allocation0]]
  $region57: #{gcn_forward.5} parent=0
    _
  %s9 = ssub.s32 1, %s7
  %s10 = scalar_select 0, %s9, %s7
  loop: start=0, step=1, limit=4
  $region2: #{gcn_forward.5} parent=0 // loop_pre_header
    _
  $region3: #{gcn_forward.5} parent=0 // loop_header
    %s12 = sphi 0, %s16
    %p13 = scmp.ge.s32.totalorder %s12, 4
    %s22 = sphi 0, %s24
    %s25 = sphi 0, %s22
    %s26 = sphi 0, %s25
    %s42 = sphi 0, %s26
    %s46 = sphi 0, %s46
    %s48 = sphi 0, %s46
    %s49 = sphi 0, %s48
    %s63 = sphi 0, %s49
    %s67 = sphi 0, %s67
    %s69 = sphi 0, %s67
    %s70 = sphi 0, %s69
    %s84 = sphi 0, %s70
    %s90 = sphi 0, %s92
    %s93 = sphi 0, %s90
    %s94 = sphi 0, %s93
    %s110 = sphi 0, %s94
    %s116 = sphi 0, %s118
    %s119 = sphi 0, %s116
    %s120 = sphi 0, %s119
    %s136 = sphi 0, %s120
    %s142 = sphi 0, %s144
    %s145 = sphi 0, %s142
    %s146 = sphi 0, %s145
    %s162 = sphi 0, %s146
  $region4: #{gcn_forward.5} parent=0 // loop_header_branch
    %15 = sbr.rel (%p13) target = $region8
  $region5: #{gcn_forward.5} parent=0 // loop_body
    %s17 = ssub.s32 %s12, 1
    %s18 = ssub.s32 %s12, 2
    %s19 = sadd.s32 %s12, 1
    %s20 = ssub.s32 %s12, %s19
    %p21 = scmp.eq.s32.totalorder %s20, 0
    %s23 = sadd.s32 %s22, 1
    %s24 = scalar_select %p21, %s22, %s23
    %p27 = pneg %p21
    %p28 = scmp.eq.s32.totalorder %s12, 1
    %p29 = por %p27, %p28
    %p30 = scmp.ne.s32.totalorder %s22, %s25
    %p31 = scmp.eq.s32.totalorder %s12, 0
    %p32 = por %p30, %p31
    %p33 = scmp.ne.s32.totalorder %s22, %s25
    %p34 = scmp.eq.s32.totalorder %s17, 1
    %p35 = por %p33, %p34
    %p36 = scmp.ne.s32.totalorder %s25, %s26
    %p37 = scmp.eq.s32.totalorder %s17, 0
    %p38 = por %p36, %p37
    %p39 = scmp.ne.s32.totalorder %s25, %s26
    %p40 = scmp.eq.s32.totalorder %s18, 1
    %p41 = por %p39, %p40
    %p43 = scmp.ne.s32.totalorder %s26, %s42
    %p44 = scmp.eq.s32.totalorder %s18, 0
    %p45 = por %p43, %p44
    %s47 = sadd.s32 %s46, 1
    %p50 = scmp.eq.s32.totalorder %s12, 1
    %p51 = scmp.ne.s32.totalorder %s46, %s48
    %p52 = scmp.eq.s32.totalorder %s12, 0
    %p53 = por %p51, %p52
    %p54 = scmp.ne.s32.totalorder %s46, %s48
    %p55 = scmp.eq.s32.totalorder %s17, 1
    %p56 = por %p54, %p55
    %p57 = scmp.ne.s32.totalorder %s48, %s49
    %p58 = scmp.eq.s32.totalorder %s17, 0
    %p59 = por %p57, %p58
    %p60 = scmp.ne.s32.totalorder %s48, %s49
    %p61 = scmp.eq.s32.totalorder %s18, 1
    %p62 = por %p60, %p61
    %p64 = scmp.ne.s32.totalorder %s49, %s63
    %p65 = scmp.eq.s32.totalorder %s18, 0
    %p66 = por %p64, %p65
    %s68 = sadd.s32 %s67, 1
    %p71 = scmp.eq.s32.totalorder %s12, 1
    %p72 = scmp.ne.s32.totalorder %s67, %s69
    %p73 = scmp.eq.s32.totalorder %s12, 0
    %p74 = por %p72, %p73
    %p75 = scmp.ne.s32.totalorder %s67, %s69
    %p76 = scmp.eq.s32.totalorder %s17, 1
    %p77 = por %p75, %p76
    %p78 = scmp.ne.s32.totalorder %s69, %s70
    %p79 = scmp.eq.s32.totalorder %s17, 0
    %p80 = por %p78, %p79
    %p81 = scmp.ne.s32.totalorder %s69, %s70
    %p82 = scmp.eq.s32.totalorder %s18, 1
    %p83 = por %p81, %p82
    %p85 = scmp.ne.s32.totalorder %s70, %s84
    %p86 = scmp.eq.s32.totalorder %s18, 0
    %p87 = por %p85, %p86
    %s88 = ssub.s32 %s12, %s19
    %p89 = scmp.eq.s32.totalorder %s88, 0
    %s91 = sadd.s32 %s90, 1
    %s92 = scalar_select %p89, %s90, %s91
    %p95 = pneg %p89
    %p96 = scmp.eq.s32.totalorder %s12, 1
    %p97 = por %p95, %p96
    %p98 = scmp.ne.s32.totalorder %s90, %s93
    %p99 = scmp.eq.s32.totalorder %s12, 0
    %p100 = por %p98, %p99
    %p101 = scmp.ne.s32.totalorder %s90, %s93
    %p102 = scmp.eq.s32.totalorder %s17, 1
    %p103 = por %p101, %p102
    %p104 = scmp.ne.s32.totalorder %s93, %s94
    %p105 = scmp.eq.s32.totalorder %s17, 0
    %p106 = por %p104, %p105
    %p107 = scmp.ne.s32.totalorder %s93, %s94
    %p108 = scmp.eq.s32.totalorder %s18, 1
    %p109 = por %p107, %p108
    %p111 = scmp.ne.s32.totalorder %s94, %s110
    %p112 = scmp.eq.s32.totalorder %s18, 0
    %p113 = por %p111, %p112
    %s114 = ssub.s32 %s12, %s19
    %p115 = scmp.eq.s32.totalorder %s114, 0
    %s117 = sadd.s32 %s116, 1
    %s118 = scalar_select %p115, %s116, %s117
    %p121 = pneg %p115
    %p122 = scmp.eq.s32.totalorder %s12, 1
    %p123 = por %p121, %p122
    %p124 = scmp.ne.s32.totalorder %s116, %s119
    %p125 = scmp.eq.s32.totalorder %s12, 0
    %p126 = por %p124, %p125
    %p127 = scmp.ne.s32.totalorder %s116, %s119
    %p128 = scmp.eq.s32.totalorder %s17, 1
    %p129 = por %p127, %p128
    %p130 = scmp.ne.s32.totalorder %s119, %s120
    %p131 = scmp.eq.s32.totalorder %s17, 0
    %p132 = por %p130, %p131
    %p133 = scmp.ne.s32.totalorder %s119, %s120
    %p134 = scmp.eq.s32.totalorder %s18, 1
    %p135 = por %p133, %p134
    %p137 = scmp.ne.s32.totalorder %s120, %s136
    %p138 = scmp.eq.s32.totalorder %s18, 0
    %p139 = por %p137, %p138
    %s140 = ssub.s32 %s12, %s19
    %p141 = scmp.eq.s32.totalorder %s140, 0
    %s143 = sadd.s32 %s142, 1
    %s144 = scalar_select %p141, %s142, %s143
    %p147 = pneg %p141
    %p148 = scmp.eq.s32.totalorder %s12, 1
    %p149 = por %p147, %p148
    %p150 = scmp.ne.s32.totalorder %s142, %s145
    %p151 = scmp.eq.s32.totalorder %s12, 0
    %p152 = por %p150, %p151
    %p153 = scmp.ne.s32.totalorder %s142, %s145
    %p154 = scmp.eq.s32.totalorder %s17, 1
    %p155 = por %p153, %p154
    %p156 = scmp.ne.s32.totalorder %s145, %s146
    %p157 = scmp.eq.s32.totalorder %s17, 0
    %p158 = por %p156, %p157
    %p159 = scmp.ne.s32.totalorder %s145, %s146
    %p160 = scmp.eq.s32.totalorder %s18, 1
    %p161 = por %p159, %p160
    %p163 = scmp.ne.s32.totalorder %s146, %s162
    %p164 = scmp.eq.s32.totalorder %s18, 0
    %p165 = por %p163, %p164
    %p166 = scmp.le.s32.totalorder 1, %s12
    %p167 = scmp.lt.s32.totalorder %s12, 3
    %p168 = pnand %p166, %p167
    %p169 = pneg %p168
    // Predicated region
    $region9: #{gcn_forward.5} parent=5 // pred_check
      _
    $region10: #{gcn_forward.5} parent=5 // pred_check_branch
      %171 = sbr.rel (%p168) target = $region12
    $region11: #{gcn_forward.5} parent=5 // pred_region
      %s172 = ssub.s32 %s12, 1
      // Predicated region
      $region13: #{gcn_forward.5} parent=11 // pred_check
        %p173 = pneg %p59
      $region14: #{gcn_forward.5} parent=11 // pred_check_branch
        %175 = sbr.rel (%p173) target = $region16
      $region15: #{gcn_forward.5} parent=11 // pred_region
        _
      $region16: #{gcn_forward.5} parent=11 // pred_fallthru
        _
      // Predicated region
      $region17: #{gcn_forward.5} parent=11 // pred_check
        %p176 = pneg %p80
      $region18: #{gcn_forward.5} parent=11 // pred_check_branch
        %178 = sbr.rel (%p176) target = $region20
      $region19: #{gcn_forward.5} parent=11 // pred_region
        _
      $region20: #{gcn_forward.5} parent=11 // pred_fallthru
        _
    $region12: #{gcn_forward.5} parent=5 // pred_fallthru
      _
    %p179 = scmp.lt.s32.totalorder %s12, 2
    // Predicated region
    $region21: #{gcn_forward.5} parent=5 // pred_check
      %p180 = pneg %p179
    $region22: #{gcn_forward.5} parent=5 // pred_check_branch
      %182 = sbr.rel (%p180) target = $region24
    $region23: #{gcn_forward.5} parent=5 // pred_region
      // Predicated region
      $region25: #{gcn_forward.5} parent=23 // pred_check
        %p183 = pneg %p32
      $region26: #{gcn_forward.5} parent=23 // pred_check_branch
        %185 = sbr.rel (%p183) target = $region28
      $region27: #{gcn_forward.5} parent=23 // pred_region
        %s186 = smul.u32 16, %s12
        %p187 = scmp.lt.s32.totalorder %s186, 31
        %s188 = scalar_select %p187, %s186, 31
        %s189 = smul.addr %s188, 8
        %s190 = scalar_lea.vmem %s0, %s189
        %s191 = smul.u32 16, %s12
      $region28: #{gcn_forward.5} parent=23 // pred_fallthru
        _
      // Predicated region
      $region29: #{gcn_forward.5} parent=23 // pred_check
        %p192 = pneg %p100
      $region30: #{gcn_forward.5} parent=23 // pred_check_branch
        %194 = sbr.rel (%p192) target = $region32
      $region31: #{gcn_forward.5} parent=23 // pred_region
        %s195 = smul.u32 16, %s12
        %p196 = scmp.lt.s32.totalorder %s195, 31
        %s197 = scalar_select %p196, %s195, 31
        %s198 = smul.addr %s197, 4
        %s199 = scalar_lea.vmem %s3, %s198
        %s200 = smul.u32 16, %s12
      $region32: #{gcn_forward.5} parent=23 // pred_fallthru
        _
    $region24: #{gcn_forward.5} parent=5 // pred_fallthru
      _
    %p201 = scmp.le.s32.totalorder 1, %s12
    %p202 = scmp.lt.s32.totalorder %s12, 3
    %p203 = pnand %p201, %p202
    %p204 = pneg %p203
    // Predicated region
    $region33: #{gcn_forward.5} parent=5 // pred_check
      _
    $region34: #{gcn_forward.5} parent=5 // pred_check_branch
      %206 = sbr.rel (%p203) target = $region36
    $region35: #{gcn_forward.5} parent=5 // pred_region
      %s207 = ssub.s32 %s12, 1
      %s208 = smul.u32 16, %s17
      %p209 = scmp.lt.s32.totalorder %s208, 31
      %s210 = scalar_select %p209, %s208, 31
      %s211 = smul.addr %s210, 8
      %s212 = scalar_lea.vmem %s0, %s211
      %p213 = pneg %p38
      %p214 = pneg %p35
      %p215 = pneg %p59
      %p216 = pneg %p56
      %p217 = pneg %p80
      %p218 = pneg %p77
      %s219 = smul.u32 16, %s17
      %p220 = scmp.lt.s32.totalorder %s219, 31
      %s221 = scalar_select %p220, %s219, 31
      %s222 = smul.addr %s221, 4
      %s223 = scalar_lea.vmem %s3, %s222
      %p224 = pneg %p106
      %p225 = pneg %p103
      %p226 = pneg %p132
      %p227 = pneg %p129
      %s228 = smul.u32 16, %s17
      %p229 = scmp.lt.s32.totalorder %s228, 31
      %s230 = scalar_select %p229, %s228, 31
      %s231 = smul.addr %s230, 4
      %s232 = scalar_lea.vmem %s4, %s231
      %p233 = pneg %p158
      %p234 = pneg %p155
      %s235 = smul.u32 16, %s17
      %p236 = scmp.lt.s32.totalorder %s235, 31
      %s237 = scalar_select %p236, %s235, 31
      %s238 = smul.addr %s237, 4
      %s239 = scalar_lea.vmem %s5, %s238
      %s240 = smul.u32 16, %s17
      %p241 = scmp.lt.s32.totalorder %s240, 31
      %s242 = scalar_select %p241, %s240, 31
      %s243 = smul.addr %s242, 8
      %s244 = scalar_lea.vmem %s0, %s243
      %s245 = smul.u32 16, %s17
      %s246 = smul.u32 16, %s17
      %p247 = scmp.lt.s32.totalorder %s246, 31
      %s248 = scalar_select %p247, %s246, 31
      %s249 = smul.addr %s248, 4
      %s250 = scalar_lea.vmem %s3, %s249
      %s251 = smul.u32 16, %s17
      %s252 = smul.u32 16, %s17
      %p253 = scmp.lt.s32.totalorder %s252, 31
      %s254 = scalar_select %p253, %s252, 31
      %s255 = smul.addr %s254, 4
      %s256 = scalar_lea.vmem %s4, %s255
      %s257 = smul.u32 16, %s17
      %s258 = smul.u32 16, %s17
      %p259 = scmp.lt.s32.totalorder %s258, 31
      %s260 = scalar_select %p259, %s258, 31
      %s261 = smul.addr %s260, 4
      %s262 = scalar_lea.vmem %s5, %s261
      %s263 = smul.u32 16, %s17
      %v265 = vld [vmem:[%s244] sm:$0xff]
      %v266 = vld [vmem:[%s244 + $0x8] sm:$0xff]
      %v267 = vld [vmem:[%s244 + $0x10] sm:$0xff]
      %v268 = vld [vmem:[%s244 + $0x18] sm:$0xff]
      %v269 = vld [vmem:[%s244 + $0x20] sm:$0xff]
      %v270 = vld [vmem:[%s244 + $0x28] sm:$0xff]
      %v271 = vld [vmem:[%s244 + $0x30] sm:$0xff]
      %v272 = vld [vmem:[%s244 + $0x38] sm:$0xff]
      %v273 = vld [vmem:[%s244 + $0x40] sm:$0xff]
      %v274 = vld [vmem:[%s244 + $0x48] sm:$0xff]
      %v275 = vld [vmem:[%s244 + $0x50] sm:$0xff]
      %v276 = vld [vmem:[%s244 + $0x58] sm:$0xff]
      %v277 = vld [vmem:[%s244 + $0x60] sm:$0xff]
      %v278 = vld [vmem:[%s244 + $0x68] sm:$0xff]
      %v279 = vld [vmem:[%s244 + $0x70] sm:$0xff]
      %v280 = vld [vmem:[%s244 + $0x78] sm:$0xff]
      %v281 = vmul.f32 %v265, %v265
      %v282 = vmul.f32 %v266, %v266
      %v283 = vmul.f32 %v267, %v267
      %v284 = vmul.f32 %v268, %v268
      %v285 = vmul.f32 %v269, %v269
      %v286 = vmul.f32 %v270, %v270
      %v287 = vmul.f32 %v271, %v271
      %v288 = vmul.f32 %v272, %v272
      %v289 = vmul.f32 %v273, %v273
      %v290 = vmul.f32 %v274, %v274
      %v291 = vmul.f32 %v275, %v275
      %v292 = vmul.f32 %v276, %v276
      %v293 = vmul.f32 %v277, %v277
      %v294 = vmul.f32 %v278, %v278
      %v295 = vmul.f32 %v279, %v279
      %v296 = vmul.f32 %v280, %v280
      %297 = vadd.xlane.f32.xlu0 %v281
      %v298 = vpop.xlane.xlu0 %297
      %299 = vadd.xlane.f32.xlu0 %v282
      %v300 = vpop.xlane.xlu0 %299
      %301 = vadd.xlane.f32.xlu0 %v283
      %v302 = vpop.xlane.xlu0 %301
      %303 = vadd.xlane.f32.xlu0 %v284
      %v304 = vpop.xlane.xlu0 %303
      %305 = vadd.xlane.f32.xlu0 %v285
      %v306 = vpop.xlane.xlu0 %305
      %307 = vadd.xlane.f32.xlu0 %v286
      %v308 = vpop.xlane.xlu0 %307
      %309 = vadd.xlane.f32.xlu0 %v287
      %v310 = vpop.xlane.xlu0 %309
      %311 = vadd.xlane.f32.xlu0 %v288
      %v312 = vpop.xlane.xlu0 %311
      %313 = vadd.xlane.f32.xlu0 %v289
      %v314 = vpop.xlane.xlu0 %313
      %315 = vadd.xlane.f32.xlu0 %v290
      %v316 = vpop.xlane.xlu0 %315
      %317 = vadd.xlane.f32.xlu0 %v291
      %v318 = vpop.xlane.xlu0 %317
      %319 = vadd.xlane.f32.xlu0 %v292
      %v320 = vpop.xlane.xlu0 %319
      %321 = vadd.xlane.f32.xlu0 %v293
      %v322 = vpop.xlane.xlu0 %321
      %323 = vadd.xlane.f32.xlu0 %v294
      %v324 = vpop.xlane.xlu0 %323
      %325 = vadd.xlane.f32.xlu0 %v295
      %v326 = vpop.xlane.xlu0 %325
      %327 = vadd.xlane.f32.xlu0 %v296
      %v328 = vpop.xlane.xlu0 %327
      %v329 = vmax.f32 %v298, 1e-24
      %v330 = vmax.f32 %v300, 1e-24
      %v331 = vmax.f32 %v302, 1e-24
      %v332 = vmax.f32 %v304, 1e-24
      %v333 = vmax.f32 %v306, 1e-24
      %v334 = vmax.f32 %v308, 1e-24
      %v335 = vmax.f32 %v310, 1e-24
      %v336 = vmax.f32 %v312, 1e-24
      %v337 = vmax.f32 %v314, 1e-24
      %v338 = vmax.f32 %v316, 1e-24
      %v339 = vmax.f32 %v318, 1e-24
      %v340 = vmax.f32 %v320, 1e-24
      %v341 = vmax.f32 %v322, 1e-24
      %v342 = vmax.f32 %v324, 1e-24
      %v343 = vmax.f32 %v326, 1e-24
      %v344 = vmax.f32 %v328, 1e-24
      %v345 = vrsqrt.pop %v329
      %v346 = vrsqrt.pop %v330
      %v347 = vrsqrt.pop %v331
      %v348 = vrsqrt.pop %v332
      %v349 = vrsqrt.pop %v333
      %v350 = vrsqrt.pop %v334
      %v351 = vrsqrt.pop %v335
      %v352 = vrsqrt.pop %v336
      %v353 = vrsqrt.pop %v337
      %v354 = vrsqrt.pop %v338
      %v355 = vrsqrt.pop %v339
      %v356 = vrsqrt.pop %v340
      %v357 = vrsqrt.pop %v341
      %v358 = vrsqrt.pop %v342
      %v359 = vrsqrt.pop %v343
      %v360 = vrsqrt.pop %v344
      %v361 = vmul.f32 %v265, %v345
      %v362 = vmul.f32 %v266, %v346
      %v363 = vmul.f32 %v267, %v347
      %v364 = vmul.f32 %v268, %v348
      %v365 = vmul.f32 %v269, %v349
      %v366 = vmul.f32 %v270, %v350
      %v367 = vmul.f32 %v271, %v351
      %v368 = vmul.f32 %v272, %v352
      %v369 = vmul.f32 %v273, %v353
      %v370 = vmul.f32 %v274, %v354
      %v371 = vmul.f32 %v275, %v355
      %v372 = vmul.f32 %v276, %v356
      %v373 = vmul.f32 %v277, %v357
      %v374 = vmul.f32 %v278, %v358
      %v375 = vmul.f32 %v279, %v359
      %v376 = vmul.f32 %v280, %v360
      %v377 = vpack.c.bf16 %v362, %v361
      %v378 = vpack.c.bf16 %v364, %v363
      %v379 = vpack.c.bf16 %v366, %v365
      %v380 = vpack.c.bf16 %v368, %v367
      %v381 = vpack.c.bf16 %v370, %v369
      %v382 = vpack.c.bf16 %v372, %v371
      %v383 = vpack.c.bf16 %v374, %v373
      %v384 = vpack.c.bf16 %v376, %v375
      %v385 = vld [vmem:[%s1] sm:$0xff]
      %v386 = vld [vmem:[%s1 + $0x8] sm:$0xff]
      %v387 = vld [vmem:[%s1 + $0x10] sm:$0xff]
      %v388 = vld [vmem:[%s1 + $0x18] sm:$0xff]
      %v389 = vld [vmem:[%s1 + $0x20] sm:$0xff]
      %v390 = vld [vmem:[%s1 + $0x28] sm:$0xff]
      %v391 = vld [vmem:[%s1 + $0x30] sm:$0xff]
      %v392 = vld [vmem:[%s1 + $0x38] sm:$0xff]
      %v393 = vld [vmem:[%s1 + $0x40] sm:$0xff]
      %v394 = vld [vmem:[%s1 + $0x48] sm:$0xff]
      %v395 = vld [vmem:[%s1 + $0x50] sm:$0xff]
      %v396 = vld [vmem:[%s1 + $0x58] sm:$0xff]
      %v397 = vld [vmem:[%s1 + $0x60] sm:$0xff]
      %v398 = vld [vmem:[%s1 + $0x68] sm:$0xff]
      %v399 = vld [vmem:[%s1 + $0x70] sm:$0xff]
      %v400 = vld [vmem:[%s1 + $0x78] sm:$0xff]
      %v417 = vunpack.c.l.b16 %v385
      %v418 = vunpack.c.h.b16 %v385
      %v419 = vunpack.c.l.b16 %v386
      %v420 = vunpack.c.h.b16 %v386
      %v421 = vunpack.c.l.b16 %v387
      %v422 = vunpack.c.h.b16 %v387
      %v423 = vunpack.c.l.b16 %v388
      %v424 = vunpack.c.h.b16 %v388
      %v425 = vunpack.c.l.b16 %v389
      %v426 = vunpack.c.h.b16 %v389
      %v427 = vunpack.c.l.b16 %v390
      %v428 = vunpack.c.h.b16 %v390
      %v429 = vunpack.c.l.b16 %v391
      %v430 = vunpack.c.h.b16 %v391
      %v431 = vunpack.c.l.b16 %v392
      %v432 = vunpack.c.h.b16 %v392
      %v433 = vunpack.c.l.b16 %v393
      %v434 = vunpack.c.h.b16 %v393
      %v435 = vunpack.c.l.b16 %v394
      %v436 = vunpack.c.h.b16 %v394
      %v437 = vunpack.c.l.b16 %v395
      %v438 = vunpack.c.h.b16 %v395
      %v439 = vunpack.c.l.b16 %v396
      %v440 = vunpack.c.h.b16 %v396
      %v441 = vunpack.c.l.b16 %v397
      %v442 = vunpack.c.h.b16 %v397
      %v443 = vunpack.c.l.b16 %v398
      %v444 = vunpack.c.h.b16 %v398
      %v445 = vunpack.c.l.b16 %v399
      %v446 = vunpack.c.h.b16 %v399
      %v447 = vunpack.c.l.b16 %v400
      %v448 = vunpack.c.h.b16 %v400
      %v449 = vpack.c.b16 %v419, %v417
      %v450 = vpack.c.b16 %v420, %v418
      %v451 = vpack.c.b16 %v423, %v421
      %v452 = vpack.c.b16 %v424, %v422
      %v453 = vpack.c.b16 %v427, %v425
      %v454 = vpack.c.b16 %v428, %v426
      %v455 = vpack.c.b16 %v431, %v429
      %v456 = vpack.c.b16 %v432, %v430
      %v457 = vpack.c.b16 %v435, %v433
      %v458 = vpack.c.b16 %v436, %v434
      %v459 = vpack.c.b16 %v439, %v437
      %v460 = vpack.c.b16 %v440, %v438
      %v461 = vpack.c.b16 %v443, %v441
      %v462 = vpack.c.b16 %v444, %v442
      %v463 = vpack.c.b16 %v447, %v445
      %v464 = vpack.c.b16 %v448, %v446
      %481 = vmatprep.subr.bf16.mxu0 %v464
      %482 = vmatpush1.bf16.msra.mxu0 %v463
      %483 = vmatprep.subr.bf16.mxu0 %v462
      %484 = vmatpush1.bf16.msra.mxu0 %v461
      %485 = vmatprep.subr.bf16.mxu0 %v460
      %486 = vmatpush1.bf16.msra.mxu0 %v459
      %487 = vmatprep.subr.bf16.mxu0 %v458
      %488 = vmatpush1.bf16.msra.mxu0 %v457
      %489 = vmatprep.subr.bf16.mxu0 %v456
      %490 = vmatpush1.bf16.msra.mxu0 %v455
      %491 = vmatprep.subr.bf16.mxu0 %v454
      %492 = vmatpush1.bf16.msra.mxu0 %v453
      %493 = vmatprep.subr.bf16.mxu0 %v452
      %494 = vmatpush1.bf16.msra.mxu0 %v451
      %495 = vmatprep.subr.bf16.mxu0 %v450
      %496 = vmatpush1.bf16.msra.mxu0 %v449
      %497 = vmatprep.subr.bf16.mxu0 0
      %498 = vmatpush2.bf16.msra.mxu0 0
      %499 = vmatprep.subr.bf16.mxu0 0
      %500 = vmatpush2.bf16.msra.mxu0 0
      %501 = vmatprep.subr.bf16.mxu0 0
      %502 = vmatpush2.bf16.msra.mxu0 0
      %503 = vmatprep.subr.bf16.mxu0 0
      %504 = vmatpush2.bf16.msra.mxu0 0
      %505 = vmatprep.subr.bf16.mxu0 0
      %506 = vmatpush2.bf16.msra.mxu0 0
      %507 = vmatprep.subr.bf16.mxu0 0
      %508 = vmatpush2.bf16.msra.mxu0 0
      %509 = vmatprep.subr.bf16.mxu0 0
      %510 = vmatpush2.bf16.msra.mxu0 0
      %511 = vmatprep.subr.bf16.mxu0 0
      %512 = vmatpush2.bf16.msra.mxu0 0
      %513 = vmatprep.mubr.bf16.mxu0 0
      %514 = vmatmul.mubr.bf16.gmra.mxu0 %v377
      %v515 = vpop.f32.mrf.mxu0
      %v516 = vadd.f32 0.0, %v515
      %v517 = vpop.f32.mrf.mxu0
      %v518 = vadd.f32 0.0, %v517
      %v519 = vpop.f32.mrf.mxu0
      %v520 = vadd.f32 0.0, %v519
      %v521 = vpop.f32.mrf.mxu0
      %v522 = vadd.f32 0.0, %v521
      %523 = vmatprep.mubr.bf16.mxu0 0
      %524 = vmatmul.mubr.bf16.gmra.mxu0 %v378
      %v525 = vpop.f32.mrf.mxu0
      %v526 = vadd.f32 0.0, %v525
      %v527 = vpop.f32.mrf.mxu0
      %v528 = vadd.f32 0.0, %v527
      %v529 = vpop.f32.mrf.mxu0
      %v530 = vadd.f32 0.0, %v529
      %v531 = vpop.f32.mrf.mxu0
      %v532 = vadd.f32 0.0, %v531
      %533 = vmatprep.mubr.bf16.mxu0 0
      %534 = vmatmul.mubr.bf16.gmra.mxu0 %v379
      %v535 = vpop.f32.mrf.mxu0
      %v536 = vadd.f32 0.0, %v535
      %v537 = vpop.f32.mrf.mxu0
      %v538 = vadd.f32 0.0, %v537
      %v539 = vpop.f32.mrf.mxu0
      %v540 = vadd.f32 0.0, %v539
      %v541 = vpop.f32.mrf.mxu0
      %v542 = vadd.f32 0.0, %v541
      %543 = vmatprep.mubr.bf16.mxu0 0
      %544 = vmatmul.mubr.bf16.gmra.mxu0 %v380
      %v545 = vpop.f32.mrf.mxu0
      %v546 = vadd.f32 0.0, %v545
      %v547 = vpop.f32.mrf.mxu0
      %v548 = vadd.f32 0.0, %v547
      %v549 = vpop.f32.mrf.mxu0
      %v550 = vadd.f32 0.0, %v549
      %v551 = vpop.f32.mrf.mxu0
      %v552 = vadd.f32 0.0, %v551
      %553 = vmatprep.mubr.bf16.mxu0 0
      %554 = vmatmul.mubr.bf16.gmra.mxu0 %v381
      %v555 = vpop.f32.mrf.mxu0
      %v556 = vadd.f32 0.0, %v555
      %v557 = vpop.f32.mrf.mxu0
      %v558 = vadd.f32 0.0, %v557
      %v559 = vpop.f32.mrf.mxu0
      %v560 = vadd.f32 0.0, %v559
      %v561 = vpop.f32.mrf.mxu0
      %v562 = vadd.f32 0.0, %v561
      %563 = vmatprep.mubr.bf16.mxu0 0
      %564 = vmatmul.mubr.bf16.gmra.mxu0 %v382
      %v565 = vpop.f32.mrf.mxu0
      %v566 = vadd.f32 0.0, %v565
      %v567 = vpop.f32.mrf.mxu0
      %v568 = vadd.f32 0.0, %v567
      %v569 = vpop.f32.mrf.mxu0
      %v570 = vadd.f32 0.0, %v569
      %v571 = vpop.f32.mrf.mxu0
      %v572 = vadd.f32 0.0, %v571
      %573 = vmatprep.mubr.bf16.mxu0 0
      %574 = vmatmul.mubr.bf16.gmra.mxu0 %v383
      %v575 = vpop.f32.mrf.mxu0
      %v576 = vadd.f32 0.0, %v575
      %v577 = vpop.f32.mrf.mxu0
      %v578 = vadd.f32 0.0, %v577
      %v579 = vpop.f32.mrf.mxu0
      %v580 = vadd.f32 0.0, %v579
      %v581 = vpop.f32.mrf.mxu0
      %v582 = vadd.f32 0.0, %v581
      %583 = vmatprep.mubr.bf16.mxu0 0
      %584 = vmatmul.mubr.bf16.gmra.mxu0 %v384
      %v585 = vpop.f32.mrf.mxu0
      %v586 = vadd.f32 0.0, %v585
      %v587 = vpop.f32.mrf.mxu0
      %v588 = vadd.f32 0.0, %v587
      %v589 = vpop.f32.mrf.mxu0
      %v590 = vadd.f32 0.0, %v589
      %v591 = vpop.f32.mrf.mxu0
      %v592 = vadd.f32 0.0, %v591
      %593 = vdwg.mxu0
      %v594 = vpack.c.bf16 %v520, %v516
      %v595 = vpack.c.bf16 %v530, %v526
      %v596 = vpack.c.bf16 %v540, %v536
      %v597 = vpack.c.bf16 %v550, %v546
      %v598 = vpack.c.bf16 %v560, %v556
      %v599 = vpack.c.bf16 %v570, %v566
      %v600 = vpack.c.bf16 %v580, %v576
      %v601 = vpack.c.bf16 %v590, %v586
      %v610 = vunpack.c.l.b16 %v594
      %v611 = vunpack.c.h.b16 %v594
      %v612 = vunpack.c.l.b16 %v595
      %v613 = vunpack.c.h.b16 %v595
      %v614 = vunpack.c.l.b16 %v596
      %v615 = vunpack.c.h.b16 %v596
      %v616 = vunpack.c.l.b16 %v597
      %v617 = vunpack.c.h.b16 %v597
      %v618 = vunpack.c.l.b16 %v598
      %v619 = vunpack.c.h.b16 %v598
      %v620 = vunpack.c.l.b16 %v599
      %v621 = vunpack.c.h.b16 %v599
      %v622 = vunpack.c.l.b16 %v600
      %v623 = vunpack.c.h.b16 %v600
      %v624 = vunpack.c.l.b16 %v601
      %v625 = vunpack.c.h.b16 %v601
      %v626 = vpack.c.b16 %v610, %v610
      %v627 = vpack.c.b16 %v611, %v611
      %v628 = vpack.c.b16 %v612, %v612
      %v629 = vpack.c.b16 %v613, %v613
      %v630 = vpack.c.b16 %v614, %v614
      %v631 = vpack.c.b16 %v615, %v615
      %v632 = vpack.c.b16 %v616, %v616
      %v633 = vpack.c.b16 %v617, %v617
      %v634 = vpack.c.b16 %v618, %v618
      %v635 = vpack.c.b16 %v619, %v619
      %v636 = vpack.c.b16 %v620, %v620
      %v637 = vpack.c.b16 %v621, %v621
      %v638 = vpack.c.b16 %v622, %v622
      %v639 = vpack.c.b16 %v623, %v623
      %v640 = vpack.c.b16 %v624, %v624
      %v641 = vpack.c.b16 %v625, %v625
      %658 = vst [vmem:[%s256] sm:$0xf] %v626
      %659 = vst [vmem:[%s256 + $0x4] sm:$0xf] %v627
      %660 = vst [vmem:[%s256 + $0x8] sm:$0xf] %v628
      %661 = vst [vmem:[%s256 + $0xc] sm:$0xf] %v629
      %662 = vst [vmem:[%s256 + $0x10] sm:$0xf] %v630
      %663 = vst [vmem:[%s256 + $0x14] sm:$0xf] %v631
      %664 = vst [vmem:[%s256 + $0x18] sm:$0xf] %v632
      %665 = vst [vmem:[%s256 + $0x1c] sm:$0xf] %v633
      %666 = vst [vmem:[%s256 + $0x20] sm:$0xf] %v634
      %667 = vst [vmem:[%s256 + $0x24] sm:$0xf] %v635
      %668 = vst [vmem:[%s256 + $0x28] sm:$0xf] %v636
      %669 = vst [vmem:[%s256 + $0x2c] sm:$0xf] %v637
      %670 = vst [vmem:[%s256 + $0x30] sm:$0xf] %v638
      %671 = vst [vmem:[%s256 + $0x34] sm:$0xf] %v639
      %672 = vst [vmem:[%s256 + $0x38] sm:$0xf] %v640
      %673 = vst [vmem:[%s256 + $0x3c] sm:$0xf] %v641
      %v674 = vld [vmem:[%s2] sm:$0x1]
      %v676 = vlaneseq
      %v677 = vshrl.u32 %v676, 7
      %v678 = vsub.s32 0, %v677
      %v679 = vrot.slane %v674, %v678
      %v681 = vadd.f32 %v518, %v679
      %v682 = vadd.f32 %v522, %v679
      %v683 = vadd.f32 %v528, %v679
      %v684 = vadd.f32 %v532, %v679
      %v685 = vadd.f32 %v538, %v679
      %v686 = vadd.f32 %v542, %v679
      %v687 = vadd.f32 %v548, %v679
      %v688 = vadd.f32 %v552, %v679
      %v689 = vadd.f32 %v558, %v679
      %v690 = vadd.f32 %v562, %v679
      %v691 = vadd.f32 %v568, %v679
      %v692 = vadd.f32 %v572, %v679
      %v693 = vadd.f32 %v578, %v679
      %v694 = vadd.f32 %v582, %v679
      %v695 = vadd.f32 %v588, %v679
      %v696 = vadd.f32 %v592, %v679
      %vm697 = vcmp.ge.f32.partialorder %v681, 0.0
      %vm698 = vcmp.ge.f32.partialorder %v682, 0.0
      %vm699 = vcmp.ge.f32.partialorder %v683, 0.0
      %vm700 = vcmp.ge.f32.partialorder %v684, 0.0
      %vm701 = vcmp.ge.f32.partialorder %v685, 0.0
      %vm702 = vcmp.ge.f32.partialorder %v686, 0.0
      %vm703 = vcmp.ge.f32.partialorder %v687, 0.0
      %vm704 = vcmp.ge.f32.partialorder %v688, 0.0
      %vm705 = vcmp.ge.f32.partialorder %v689, 0.0
      %vm706 = vcmp.ge.f32.partialorder %v690, 0.0
      %vm707 = vcmp.ge.f32.partialorder %v691, 0.0
      %vm708 = vcmp.ge.f32.partialorder %v692, 0.0
      %vm709 = vcmp.ge.f32.partialorder %v693, 0.0
      %vm710 = vcmp.ge.f32.partialorder %v694, 0.0
      %vm711 = vcmp.ge.f32.partialorder %v695, 0.0
      %vm712 = vcmp.ge.f32.partialorder %v696, 0.0
      %v713 = vmul.f32 %v681, 0.01
      %v714 = vmul.f32 %v682, 0.01
      %v715 = vmul.f32 %v683, 0.01
      %v716 = vmul.f32 %v684, 0.01
      %v717 = vmul.f32 %v685, 0.01
      %v718 = vmul.f32 %v686, 0.01
      %v719 = vmul.f32 %v687, 0.01
      %v720 = vmul.f32 %v688, 0.01
      %v721 = vmul.f32 %v689, 0.01
      %v722 = vmul.f32 %v690, 0.01
      %v723 = vmul.f32 %v691, 0.01
      %v724 = vmul.f32 %v692, 0.01
      %v725 = vmul.f32 %v693, 0.01
      %v726 = vmul.f32 %v694, 0.01
      %v727 = vmul.f32 %v695, 0.01
      %v728 = vmul.f32 %v696, 0.01
      %v729 = vsel %vm697, %v681, %v713
      %v730 = vsel %vm698, %v682, %v714
      %v731 = vsel %vm699, %v683, %v715
      %v732 = vsel %vm700, %v684, %v716
      %v733 = vsel %vm701, %v685, %v717
      %v734 = vsel %vm702, %v686, %v718
      %v735 = vsel %vm703, %v687, %v719
      %v736 = vsel %vm704, %v688, %v720
      %v737 = vsel %vm705, %v689, %v721
      %v738 = vsel %vm706, %v690, %v722
      %v739 = vsel %vm707, %v691, %v723
      %v740 = vsel %vm708, %v692, %v724
      %v741 = vsel %vm709, %v693, %v725
      %v742 = vsel %vm710, %v694, %v726
      %v743 = vsel %vm711, %v695, %v727
      %v744 = vsel %vm712, %v696, %v728
      %v745 = vld [vmem:[%s250] sm:$0xf]
      %v746 = vld [vmem:[%s250 + $0x4] sm:$0xf]
      %v747 = vld [vmem:[%s250 + $0x8] sm:$0xf]
      %v748 = vld [vmem:[%s250 + $0xc] sm:$0xf]
      %v749 = vld [vmem:[%s250 + $0x10] sm:$0xf]
      %v750 = vld [vmem:[%s250 + $0x14] sm:$0xf]
      %v751 = vld [vmem:[%s250 + $0x18] sm:$0xf]
      %v752 = vld [vmem:[%s250 + $0x1c] sm:$0xf]
      %v753 = vld [vmem:[%s250 + $0x20] sm:$0xf]
      %v754 = vld [vmem:[%s250 + $0x24] sm:$0xf]
      %v755 = vld [vmem:[%s250 + $0x28] sm:$0xf]
      %v756 = vld [vmem:[%s250 + $0x2c] sm:$0xf]
      %v757 = vld [vmem:[%s250 + $0x30] sm:$0xf]
      %v758 = vld [vmem:[%s250 + $0x34] sm:$0xf]
      %v759 = vld [vmem:[%s250 + $0x38] sm:$0xf]
      %v760 = vld [vmem:[%s250 + $0x3c] sm:$0xf]
      %v761 = vunpack.c.l.bf16 %v745
      %v762 = vunpack.c.l.bf16 %v746
      %v763 = vunpack.c.l.bf16 %v747
      %v764 = vunpack.c.l.bf16 %v748
      %v765 = vunpack.c.l.bf16 %v749
      %v766 = vunpack.c.l.bf16 %v750
      %v767 = vunpack.c.l.bf16 %v751
      %v768 = vunpack.c.l.bf16 %v752
      %v769 = vunpack.c.l.bf16 %v753
      %v770 = vunpack.c.l.bf16 %v754
      %v771 = vunpack.c.l.bf16 %v755
      %v772 = vunpack.c.l.bf16 %v756
      %v773 = vunpack.c.l.bf16 %v757
      %v774 = vunpack.c.l.bf16 %v758
      %v775 = vunpack.c.l.bf16 %v759
      %v776 = vunpack.c.l.bf16 %v760
      %v777 = vadd.f32 %v729, %v761
      %v778 = vadd.f32 %v730, %v762
      %v779 = vadd.f32 %v731, %v763
      %v780 = vadd.f32 %v732, %v764
      %v781 = vadd.f32 %v733, %v765
      %v782 = vadd.f32 %v734, %v766
      %v783 = vadd.f32 %v735, %v767
      %v784 = vadd.f32 %v736, %v768
      %v785 = vadd.f32 %v737, %v769
      %v786 = vadd.f32 %v738, %v770
      %v787 = vadd.f32 %v739, %v771
      %v788 = vadd.f32 %v740, %v772
      %v789 = vadd.f32 %v741, %v773
      %v790 = vadd.f32 %v742, %v774
      %v791 = vadd.f32 %v743, %v775
      %v792 = vadd.f32 %v744, %v776
      %v793 = vpack.c.bf16 %v778, %v777
      %v794 = vpack.c.bf16 %v780, %v779
      %v795 = vpack.c.bf16 %v782, %v781
      %v796 = vpack.c.bf16 %v784, %v783
      %v797 = vpack.c.bf16 %v786, %v785
      %v798 = vpack.c.bf16 %v788, %v787
      %v799 = vpack.c.bf16 %v790, %v789
      %v800 = vpack.c.bf16 %v792, %v791
      %v809 = vunpack.c.l.b16 %v793
      %v810 = vunpack.c.h.b16 %v793
      %v811 = vunpack.c.l.b16 %v794
      %v812 = vunpack.c.h.b16 %v794
      %v813 = vunpack.c.l.b16 %v795
      %v814 = vunpack.c.h.b16 %v795
      %v815 = vunpack.c.l.b16 %v796
      %v816 = vunpack.c.h.b16 %v796
      %v817 = vunpack.c.l.b16 %v797
      %v818 = vunpack.c.h.b16 %v797
      %v819 = vunpack.c.l.b16 %v798
      %v820 = vunpack.c.h.b16 %v798
      %v821 = vunpack.c.l.b16 %v799
      %v822 = vunpack.c.h.b16 %v799
      %v823 = vunpack.c.l.b16 %v800
      %v824 = vunpack.c.h.b16 %v800
      %v825 = vpack.c.b16 %v809, %v809
      %v826 = vpack.c.b16 %v810, %v810
      %v827 = vpack.c.b16 %v811, %v811
      %v828 = vpack.c.b16 %v812, %v812
      %v829 = vpack.c.b16 %v813, %v813
      %v830 = vpack.c.b16 %v814, %v814
      %v831 = vpack.c.b16 %v815, %v815
      %v832 = vpack.c.b16 %v816, %v816
      %v833 = vpack.c.b16 %v817, %v817
      %v834 = vpack.c.b16 %v818, %v818
      %v835 = vpack.c.b16 %v819, %v819
      %v836 = vpack.c.b16 %v820, %v820
      %v837 = vpack.c.b16 %v821, %v821
      %v838 = vpack.c.b16 %v822, %v822
      %v839 = vpack.c.b16 %v823, %v823
      %v840 = vpack.c.b16 %v824, %v824
      %857 = vst [vmem:[%s262] sm:$0xf] %v825
      %858 = vst [vmem:[%s262 + $0x4] sm:$0xf] %v826
      %859 = vst [vmem:[%s262 + $0x8] sm:$0xf] %v827
      %860 = vst [vmem:[%s262 + $0xc] sm:$0xf] %v828
      %861 = vst [vmem:[%s262 + $0x10] sm:$0xf] %v829
      %862 = vst [vmem:[%s262 + $0x14] sm:$0xf] %v830
      %863 = vst [vmem:[%s262 + $0x18] sm:$0xf] %v831
      %864 = vst [vmem:[%s262 + $0x1c] sm:$0xf] %v832
      %865 = vst [vmem:[%s262 + $0x20] sm:$0xf] %v833
      %866 = vst [vmem:[%s262 + $0x24] sm:$0xf] %v834
      %867 = vst [vmem:[%s262 + $0x28] sm:$0xf] %v835
      %868 = vst [vmem:[%s262 + $0x2c] sm:$0xf] %v836
      %869 = vst [vmem:[%s262 + $0x30] sm:$0xf] %v837
      %870 = vst [vmem:[%s262 + $0x34] sm:$0xf] %v838
      %871 = vst [vmem:[%s262 + $0x38] sm:$0xf] %v839
      %872 = vst [vmem:[%s262 + $0x3c] sm:$0xf] %v840
      %s873 = smul.u32 16, %s17
      %p874 = scmp.lt.s32.totalorder %s873, 31
      %s875 = scalar_select %p874, %s873, 31
      %s876 = smul.addr %s875, 4
      %s877 = scalar_lea.vmem %s4, %s876
      %s878 = smul.u32 16, %s17
      %p879 = scmp.lt.s32.totalorder %s878, 31
      %s880 = scalar_select %p879, %s878, 31
      %s881 = smul.addr %s880, 4
      %s882 = scalar_lea.vmem %s5, %s881
      // Predicated region
      $region37: #{gcn_forward.5} parent=35 // pred_check
        %p883 = pneg %p129
      $region38: #{gcn_forward.5} parent=35 // pred_check_branch
        %885 = sbr.rel (%p883) target = $region40
      $region39: #{gcn_forward.5} parent=35 // pred_region
        %s886 = smul.u32 16, %s17
      $region40: #{gcn_forward.5} parent=35 // pred_fallthru
        _
      // Predicated region
      $region41: #{gcn_forward.5} parent=35 // pred_check
        %p887 = pneg %p155
      $region42: #{gcn_forward.5} parent=35 // pred_check_branch
        %889 = sbr.rel (%p887) target = $region44
      $region43: #{gcn_forward.5} parent=35 // pred_region
        %s890 = smul.u32 16, %s17
      $region44: #{gcn_forward.5} parent=35 // pred_fallthru
        _
    $region36: #{gcn_forward.5} parent=5 // pred_fallthru
      _
    %p891 = scmp.le.s32.totalorder 2, %s12
    // Predicated region
    $region45: #{gcn_forward.5} parent=5 // pred_check
      %p892 = pneg %p891
    $region46: #{gcn_forward.5} parent=5 // pred_check_branch
      %894 = sbr.rel (%p892) target = $region48
    $region47: #{gcn_forward.5} parent=5 // pred_region
      %s895 = ssub.s32 %s12, 2
      // Predicated region
      $region49: #{gcn_forward.5} parent=47 // pred_check
        %p896 = pneg %p135
      $region50: #{gcn_forward.5} parent=47 // pred_check_branch
        %898 = sbr.rel (%p896) target = $region52
      $region51: #{gcn_forward.5} parent=47 // pred_region
        %s899 = smul.u32 16, %s18
        %p900 = scmp.lt.s32.totalorder %s899, 31
        %s901 = scalar_select %p900, %s899, 31
        %s902 = smul.addr %s901, 4
        %s903 = scalar_lea.vmem %s4, %s902
      $region52: #{gcn_forward.5} parent=47 // pred_fallthru
        _
      // Predicated region
      $region53: #{gcn_forward.5} parent=47 // pred_check
        %p904 = pneg %p161
      $region54: #{gcn_forward.5} parent=47 // pred_check_branch
        %906 = sbr.rel (%p904) target = $region56
      $region55: #{gcn_forward.5} parent=47 // pred_region
        %s907 = smul.u32 16, %s18
        %p908 = scmp.lt.s32.totalorder %s907, 31
        %s909 = scalar_select %p908, %s907, 31
        %s910 = smul.addr %s909, 4
        %s911 = scalar_lea.vmem %s5, %s910
      $region56: #{gcn_forward.5} parent=47 // pred_fallthru
        _
    $region48: #{gcn_forward.5} parent=5 // pred_fallthru
      _
  $region6: #{gcn_forward.5} parent=0 // loop_footer
    %s16 = sadd.s32 1, %s12
  $region7: #{gcn_forward.5} parent=0 // loop_footer_branch
    %11 = sbr.rel target = $region3
  $region8: #{gcn_forward.5} parent=0 // loop_exit
    _

// kernel: gcn_forward.6
$region0: #{gcn_forward.6}
  #allocation0 [shape = 'u32[]', space=smem, size = 0x4, offset = 0x4, fixed_abs, tag = 'smem constant byte address 0x4 - core index']
  #allocation1 [shape = 'u32[144,128]{1,0:T(1,128)}', space=vmem, size = 0x12000, scoped, tag = 'internal scratch']
  %s0 = inlined_call_operand.vmem [shape: bf16[256,256], index: 0, kind: input, shape index: {}]
  %s1 = inlined_call_operand.vmem [shape: bf16[256,128], index: 1, kind: input, shape index: {}]
  %s2 = inlined_call_operand.vmem [shape: f32[1,128], index: 2, kind: input, shape index: {}]
  %s3 = inlined_call_operand.vmem [shape: bf16[128,256], index: 3, kind: input, shape index: {}]
  %s4 = inlined_call_operand.vmem [shape: f32[1,128], index: 4, kind: input, shape index: {}]
  %s5 = inlined_call_operand.vmem [shape: bf16[256,128], index: 5, kind: input, shape index: {}]
  %s6 = inlined_call_operand.vmem [shape: bf16[256,128], index: 6, kind: output, shape index: {0}]
  %s7 = inlined_call_operand.vmem [shape: bf16[256,128], index: 7, kind: output, shape index: {1}]
  %8 = xla_tuple %s6, %s7
  %s9 = sld [smem:[#allocation0]]
  $region65: #{gcn_forward.6} parent=0
    _
  %s11 = ssub.s32 1, %s9
  %s12 = scalar_select 0, %s11, %s9
  loop: start=0, step=1, limit=4
  $region2: #{gcn_forward.6} parent=0 // loop_pre_header
    _
  $region3: #{gcn_forward.6} parent=0 // loop_header
    %s14 = sphi 0, %s18
    %p15 = scmp.ge.s32.totalorder %s14, 4
    %s24 = sphi 0, %s26
    %s27 = sphi 0, %s24
    %s28 = sphi 0, %s27
    %s44 = sphi 0, %s28
    %s48 = sphi 0, %s48
    %s50 = sphi 0, %s48
    %s51 = sphi 0, %s50
    %s65 = sphi 0, %s51
    %s69 = sphi 0, %s69
    %s71 = sphi 0, %s69
    %s72 = sphi 0, %s71
    %s86 = sphi 0, %s72
    %s90 = sphi 0, %s90
    %s92 = sphi 0, %s90
    %s93 = sphi 0, %s92
    %s107 = sphi 0, %s93
    %s111 = sphi 0, %s111
    %s113 = sphi 0, %s111
    %s114 = sphi 0, %s113
    %s128 = sphi 0, %s114
    %s134 = sphi 0, %s136
    %s137 = sphi 0, %s134
    %s138 = sphi 0, %s137
    %s154 = sphi 0, %s138
    %s160 = sphi 0, %s162
    %s163 = sphi 0, %s160
    %s164 = sphi 0, %s163
    %s180 = sphi 0, %s164
    %s186 = sphi 0, %s188
    %s189 = sphi 0, %s186
    %s190 = sphi 0, %s189
    %s206 = sphi 0, %s190
  $region4: #{gcn_forward.6} parent=0 // loop_header_branch
    %17 = sbr.rel (%p15) target = $region8
  $region5: #{gcn_forward.6} parent=0 // loop_body
    %s19 = ssub.s32 %s14, 1
    %s20 = ssub.s32 %s14, 2
    %s21 = sadd.s32 %s14, 1
    %s22 = ssub.s32 %s14, %s21
    %p23 = scmp.eq.s32.totalorder %s22, 0
    %s25 = sadd.s32 %s24, 1
    %s26 = scalar_select %p23, %s24, %s25
    %p29 = pneg %p23
    %p30 = scmp.eq.s32.totalorder %s14, 1
    %p31 = por %p29, %p30
    %p32 = scmp.ne.s32.totalorder %s24, %s27
    %p33 = scmp.eq.s32.totalorder %s14, 0
    %p34 = por %p32, %p33
    %p35 = scmp.ne.s32.totalorder %s24, %s27
    %p36 = scmp.eq.s32.totalorder %s19, 1
    %p37 = por %p35, %p36
    %p38 = scmp.ne.s32.totalorder %s27, %s28
    %p39 = scmp.eq.s32.totalorder %s19, 0
    %p40 = por %p38, %p39
    %p41 = scmp.ne.s32.totalorder %s27, %s28
    %p42 = scmp.eq.s32.totalorder %s20, 1
    %p43 = por %p41, %p42
    %p45 = scmp.ne.s32.totalorder %s28, %s44
    %p46 = scmp.eq.s32.totalorder %s20, 0
    %p47 = por %p45, %p46
    %s49 = sadd.s32 %s48, 1
    %p52 = scmp.eq.s32.totalorder %s14, 1
    %p53 = scmp.ne.s32.totalorder %s48, %s50
    %p54 = scmp.eq.s32.totalorder %s14, 0
    %p55 = por %p53, %p54
    %p56 = scmp.ne.s32.totalorder %s48, %s50
    %p57 = scmp.eq.s32.totalorder %s19, 1
    %p58 = por %p56, %p57
    %p59 = scmp.ne.s32.totalorder %s50, %s51
    %p60 = scmp.eq.s32.totalorder %s19, 0
    %p61 = por %p59, %p60
    %p62 = scmp.ne.s32.totalorder %s50, %s51
    %p63 = scmp.eq.s32.totalorder %s20, 1
    %p64 = por %p62, %p63
    %p66 = scmp.ne.s32.totalorder %s51, %s65
    %p67 = scmp.eq.s32.totalorder %s20, 0
    %p68 = por %p66, %p67
    %s70 = sadd.s32 %s69, 1
    %p73 = scmp.eq.s32.totalorder %s14, 1
    %p74 = scmp.ne.s32.totalorder %s69, %s71
    %p75 = scmp.eq.s32.totalorder %s14, 0
    %p76 = por %p74, %p75
    %p77 = scmp.ne.s32.totalorder %s69, %s71
    %p78 = scmp.eq.s32.totalorder %s19, 1
    %p79 = por %p77, %p78
    %p80 = scmp.ne.s32.totalorder %s71, %s72
    %p81 = scmp.eq.s32.totalorder %s19, 0
    %p82 = por %p80, %p81
    %p83 = scmp.ne.s32.totalorder %s71, %s72
    %p84 = scmp.eq.s32.totalorder %s20, 1
    %p85 = por %p83, %p84
    %p87 = scmp.ne.s32.totalorder %s72, %s86
    %p88 = scmp.eq.s32.totalorder %s20, 0
    %p89 = por %p87, %p88
    %s91 = sadd.s32 %s90, 1
    %p94 = scmp.eq.s32.totalorder %s14, 1
    %p95 = scmp.ne.s32.totalorder %s90, %s92
    %p96 = scmp.eq.s32.totalorder %s14, 0
    %p97 = por %p95, %p96
    %p98 = scmp.ne.s32.totalorder %s90, %s92
    %p99 = scmp.eq.s32.totalorder %s19, 1
    %p100 = por %p98, %p99
    %p101 = scmp.ne.s32.totalorder %s92, %s93
    %p102 = scmp.eq.s32.totalorder %s19, 0
    %p103 = por %p101, %p102
    %p104 = scmp.ne.s32.totalorder %s92, %s93
    %p105 = scmp.eq.s32.totalorder %s20, 1
    %p106 = por %p104, %p105
    %p108 = scmp.ne.s32.totalorder %s93, %s107
    %p109 = scmp.eq.s32.totalorder %s20, 0
    %p110 = por %p108, %p109
    %s112 = sadd.s32 %s111, 1
    %p115 = scmp.eq.s32.totalorder %s14, 1
    %p116 = scmp.ne.s32.totalorder %s111, %s113
    %p117 = scmp.eq.s32.totalorder %s14, 0
    %p118 = por %p116, %p117
    %p119 = scmp.ne.s32.totalorder %s111, %s113
    %p120 = scmp.eq.s32.totalorder %s19, 1
    %p121 = por %p119, %p120
    %p122 = scmp.ne.s32.totalorder %s113, %s114
    %p123 = scmp.eq.s32.totalorder %s19, 0
    %p124 = por %p122, %p123
    %p125 = scmp.ne.s32.totalorder %s113, %s114
    %p126 = scmp.eq.s32.totalorder %s20, 1
    %p127 = por %p125, %p126
    %p129 = scmp.ne.s32.totalorder %s114, %s128
    %p130 = scmp.eq.s32.totalorder %s20, 0
    %p131 = por %p129, %p130
    %s132 = ssub.s32 %s14, %s21
    %p133 = scmp.eq.s32.totalorder %s132, 0
    %s135 = sadd.s32 %s134, 1
    %s136 = scalar_select %p133, %s134, %s135
    %p139 = pneg %p133
    %p140 = scmp.eq.s32.totalorder %s14, 1
    %p141 = por %p139, %p140
    %p142 = scmp.ne.s32.totalorder %s134, %s137
    %p143 = scmp.eq.s32.totalorder %s14, 0
    %p144 = por %p142, %p143
    %p145 = scmp.ne.s32.totalorder %s134, %s137
    %p146 = scmp.eq.s32.totalorder %s19, 1
    %p147 = por %p145, %p146
    %p148 = scmp.ne.s32.totalorder %s137, %s138
    %p149 = scmp.eq.s32.totalorder %s19, 0
    %p150 = por %p148, %p149
    %p151 = scmp.ne.s32.totalorder %s137, %s138
    %p152 = scmp.eq.s32.totalorder %s20, 1
    %p153 = por %p151, %p152
    %p155 = scmp.ne.s32.totalorder %s138, %s154
    %p156 = scmp.eq.s32.totalorder %s20, 0
    %p157 = por %p155, %p156
    %s158 = ssub.s32 %s14, %s21
    %p159 = scmp.eq.s32.totalorder %s158, 0
    %s161 = sadd.s32 %s160, 1
    %s162 = scalar_select %p159, %s160, %s161
    %p165 = pneg %p159
    %p166 = scmp.eq.s32.totalorder %s14, 1
    %p167 = por %p165, %p166
    %p168 = scmp.ne.s32.totalorder %s160, %s163
    %p169 = scmp.eq.s32.totalorder %s14, 0
    %p170 = por %p168, %p169
    %p171 = scmp.ne.s32.totalorder %s160, %s163
    %p172 = scmp.eq.s32.totalorder %s19, 1
    %p173 = por %p171, %p172
    %p174 = scmp.ne.s32.totalorder %s163, %s164
    %p175 = scmp.eq.s32.totalorder %s19, 0
    %p176 = por %p174, %p175
    %p177 = scmp.ne.s32.totalorder %s163, %s164
    %p178 = scmp.eq.s32.totalorder %s20, 1
    %p179 = por %p177, %p178
    %p181 = scmp.ne.s32.totalorder %s164, %s180
    %p182 = scmp.eq.s32.totalorder %s20, 0
    %p183 = por %p181, %p182
    %s184 = ssub.s32 %s14, %s21
    %p185 = scmp.eq.s32.totalorder %s184, 0
    %s187 = sadd.s32 %s186, 1
    %s188 = scalar_select %p185, %s186, %s187
    %p191 = pneg %p185
    %p192 = scmp.eq.s32.totalorder %s14, 1
    %p193 = por %p191, %p192
    %p194 = scmp.ne.s32.totalorder %s186, %s189
    %p195 = scmp.eq.s32.totalorder %s14, 0
    %p196 = por %p194, %p195
    %p197 = scmp.ne.s32.totalorder %s186, %s189
    %p198 = scmp.eq.s32.totalorder %s19, 1
    %p199 = por %p197, %p198
    %p200 = scmp.ne.s32.totalorder %s189, %s190
    %p201 = scmp.eq.s32.totalorder %s19, 0
    %p202 = por %p200, %p201
    %p203 = scmp.ne.s32.totalorder %s189, %s190
    %p204 = scmp.eq.s32.totalorder %s20, 1
    %p205 = por %p203, %p204
    %p207 = scmp.ne.s32.totalorder %s190, %s206
    %p208 = scmp.eq.s32.totalorder %s20, 0
    %p209 = por %p207, %p208
    %p210 = scmp.le.s32.totalorder 1, %s14
    %p211 = scmp.lt.s32.totalorder %s14, 3
    %p212 = pnand %p210, %p211
    %p213 = pneg %p212
    // Predicated region
    $region9: #{gcn_forward.6} parent=5 // pred_check
      _
    $region10: #{gcn_forward.6} parent=5 // pred_check_branch
      %215 = sbr.rel (%p212) target = $region12
    $region11: #{gcn_forward.6} parent=5 // pred_region
      %s216 = ssub.s32 %s14, 1
      // Predicated region
      $region13: #{gcn_forward.6} parent=11 // pred_check
        %p217 = pneg %p61
      $region14: #{gcn_forward.6} parent=11 // pred_check_branch
        %219 = sbr.rel (%p217) target = $region16
      $region15: #{gcn_forward.6} parent=11 // pred_region
        _
      $region16: #{gcn_forward.6} parent=11 // pred_fallthru
        _
      // Predicated region
      $region17: #{gcn_forward.6} parent=11 // pred_check
        %p220 = pneg %p82
      $region18: #{gcn_forward.6} parent=11 // pred_check_branch
        %222 = sbr.rel (%p220) target = $region20
      $region19: #{gcn_forward.6} parent=11 // pred_region
        _
      $region20: #{gcn_forward.6} parent=11 // pred_fallthru
        _
      // Predicated region
      $region21: #{gcn_forward.6} parent=11 // pred_check
        %p223 = pneg %p103
      $region22: #{gcn_forward.6} parent=11 // pred_check_branch
        %225 = sbr.rel (%p223) target = $region24
      $region23: #{gcn_forward.6} parent=11 // pred_region
        _
      $region24: #{gcn_forward.6} parent=11 // pred_fallthru
        _
      // Predicated region
      $region25: #{gcn_forward.6} parent=11 // pred_check
        %p226 = pneg %p124
      $region26: #{gcn_forward.6} parent=11 // pred_check_branch
        %228 = sbr.rel (%p226) target = $region28
      $region27: #{gcn_forward.6} parent=11 // pred_region
        _
      $region28: #{gcn_forward.6} parent=11 // pred_fallthru
        _
    $region12: #{gcn_forward.6} parent=5 // pred_fallthru
      _
    %p229 = scmp.lt.s32.totalorder %s14, 2
    // Predicated region
    $region29: #{gcn_forward.6} parent=5 // pred_check
      %p230 = pneg %p229
    $region30: #{gcn_forward.6} parent=5 // pred_check_branch
      %232 = sbr.rel (%p230) target = $region32
    $region31: #{gcn_forward.6} parent=5 // pred_region
      // Predicated region
      $region33: #{gcn_forward.6} parent=31 // pred_check
        %p233 = pneg %p34
      $region34: #{gcn_forward.6} parent=31 // pred_check_branch
        %235 = sbr.rel (%p233) target = $region36
      $region35: #{gcn_forward.6} parent=31 // pred_region
        %s236 = smul.u32 16, %s14
        %p237 = scmp.lt.s32.totalorder %s236, 31
        %s238 = scalar_select %p237, %s236, 31
        %s239 = smul.addr %s238, 2
        %s240 = smul.addr %s239, 4
        %s241 = scalar_lea.vmem %s0, %s240
        %s242 = smul.u32 16, %s14
      $region36: #{gcn_forward.6} parent=31 // pred_fallthru
        _
      // Predicated region
      $region37: #{gcn_forward.6} parent=31 // pred_check
        %p243 = pneg %p144
      $region38: #{gcn_forward.6} parent=31 // pred_check_branch
        %245 = sbr.rel (%p243) target = $region40
      $region39: #{gcn_forward.6} parent=31 // pred_region
        %s246 = smul.u32 16, %s14
        %p247 = scmp.lt.s32.totalorder %s246, 31
        %s248 = scalar_select %p247, %s246, 31
        %s249 = smul.addr %s248, 4
        %s250 = scalar_lea.vmem %s5, %s249
        %s251 = smul.u32 16, %s14
      $region40: #{gcn_forward.6} parent=31 // pred_fallthru
        _
    $region32: #{gcn_forward.6} parent=5 // pred_fallthru
      _
    %p252 = scmp.le.s32.totalorder 1, %s14
    %p253 = scmp.lt.s32.totalorder %s14, 3
    %p254 = pnand %p252, %p253
    %p255 = pneg %p254
    // Predicated region
    $region41: #{gcn_forward.6} parent=5 // pred_check
      _
    $region42: #{gcn_forward.6} parent=5 // pred_check_branch
      %257 = sbr.rel (%p254) target = $region44
    $region43: #{gcn_forward.6} parent=5 // pred_region
      %s258 = ssub.s32 %s14, 1
      %s259 = smul.u32 16, %s19
      %p260 = scmp.lt.s32.totalorder %s259, 31
      %s261 = scalar_select %p260, %s259, 31
      %s262 = smul.addr %s261, 2
      %s263 = smul.addr %s262, 4
      %s264 = scalar_lea.vmem %s0, %s263
      %p265 = pneg %p40
      %p266 = pneg %p37
      %p267 = pneg %p61
      %p268 = pneg %p58
      %p269 = pneg %p82
      %p270 = pneg %p79
      %p271 = pneg %p103
      %p272 = pneg %p100
      %p273 = pneg %p124
      %p274 = pneg %p121
      %s275 = smul.u32 16, %s19
      %p276 = scmp.lt.s32.totalorder %s275, 31
      %s277 = scalar_select %p276, %s275, 31
      %s278 = smul.addr %s277, 4
      %s279 = scalar_lea.vmem %s5, %s278
      %p280 = pneg %p150
      %p281 = pneg %p147
      %p282 = pneg %p176
      %p283 = pneg %p173
      %s284 = smul.u32 16, %s19
      %p285 = scmp.lt.s32.totalorder %s284, 31
      %s286 = scalar_select %p285, %s284, 31
      %s287 = smul.addr %s286, 4
      %s288 = scalar_lea.vmem %s6, %s287
      %p289 = pneg %p202
      %p290 = pneg %p199
      %s291 = smul.u32 16, %s19
      %p292 = scmp.lt.s32.totalorder %s291, 31
      %s293 = scalar_select %p292, %s291, 31
      %s294 = smul.addr %s293, 4
      %s295 = scalar_lea.vmem %s7, %s294
      %s296 = smul.u32 16, %s19
      %p297 = scmp.lt.s32.totalorder %s296, 31
      %s298 = scalar_select %p297, %s296, 31
      %s299 = smul.addr %s298, 2
      %s300 = smul.addr %s299, 4
      %s301 = scalar_lea.vmem %s0, %s300
      %s302 = smul.u32 16, %s19
      %s303 = smul.u32 16, %s19
      %p304 = scmp.lt.s32.totalorder %s303, 31
      %s305 = scalar_select %p304, %s303, 31
      %s306 = smul.addr %s305, 4
      %s307 = scalar_lea.vmem %s5, %s306
      %s308 = smul.u32 16, %s19
      %s309 = smul.u32 16, %s19
      %p310 = scmp.lt.s32.totalorder %s309, 31
      %s311 = scalar_select %p310, %s309, 31
      %s312 = smul.addr %s311, 4
      %s313 = scalar_lea.vmem %s6, %s312
      %s314 = smul.u32 16, %s19
      %s315 = smul.u32 16, %s19
      %p316 = scmp.lt.s32.totalorder %s315, 31
      %s317 = scalar_select %p316, %s315, 31
      %s318 = smul.addr %s317, 4
      %s319 = scalar_lea.vmem %s7, %s318
      %s320 = smul.u32 16, %s19
      %v322 = vld [vmem:[%s301] sm:$0xff]
      %v323 = vld [vmem:[%s301 + $0x8] sm:$0xff]
      %v324 = vld [vmem:[%s301 + $0x10] sm:$0xff]
      %v325 = vld [vmem:[%s301 + $0x18] sm:$0xff]
      %v326 = vld [vmem:[%s301 + $0x20] sm:$0xff]
      %v327 = vld [vmem:[%s301 + $0x28] sm:$0xff]
      %v328 = vld [vmem:[%s301 + $0x30] sm:$0xff]
      %v329 = vld [vmem:[%s301 + $0x38] sm:$0xff]
      %v330 = vld [vmem:[%s301 + $0x40] sm:$0xff]
      %v331 = vld [vmem:[%s301 + $0x48] sm:$0xff]
      %v332 = vld [vmem:[%s301 + $0x50] sm:$0xff]
      %v333 = vld [vmem:[%s301 + $0x58] sm:$0xff]
      %v334 = vld [vmem:[%s301 + $0x60] sm:$0xff]
      %v335 = vld [vmem:[%s301 + $0x68] sm:$0xff]
      %v336 = vld [vmem:[%s301 + $0x70] sm:$0xff]
      %v337 = vld [vmem:[%s301 + $0x78] sm:$0xff]
      %v338 = vld [vmem:[%s1] sm:$0xf]
      %v339 = vld [vmem:[%s1 + $0x4] sm:$0xf]
      %v340 = vld [vmem:[%s1 + $0x8] sm:$0xf]
      %v341 = vld [vmem:[%s1 + $0xc] sm:$0xf]
      %v342 = vld [vmem:[%s1 + $0x10] sm:$0xf]
      %v343 = vld [vmem:[%s1 + $0x14] sm:$0xf]
      %v344 = vld [vmem:[%s1 + $0x18] sm:$0xf]
      %v345 = vld [vmem:[%s1 + $0x1c] sm:$0xf]
      %v346 = vld [vmem:[%s1 + $0x20] sm:$0xf]
      %v347 = vld [vmem:[%s1 + $0x24] sm:$0xf]
      %v348 = vld [vmem:[%s1 + $0x28] sm:$0xf]
      %v349 = vld [vmem:[%s1 + $0x2c] sm:$0xf]
      %v350 = vld [vmem:[%s1 + $0x30] sm:$0xf]
      %v351 = vld [vmem:[%s1 + $0x34] sm:$0xf]
      %v352 = vld [vmem:[%s1 + $0x38] sm:$0xf]
      %v353 = vld [vmem:[%s1 + $0x3c] sm:$0xf]
      %v354 = vld [vmem:[%s1 + $0x40] sm:$0xf]
      %v355 = vld [vmem:[%s1 + $0x44] sm:$0xf]
      %v356 = vld [vmem:[%s1 + $0x48] sm:$0xf]
      %v357 = vld [vmem:[%s1 + $0x4c] sm:$0xf]
      %v358 = vld [vmem:[%s1 + $0x50] sm:$0xf]
      %v359 = vld [vmem:[%s1 + $0x54] sm:$0xf]
      %v360 = vld [vmem:[%s1 + $0x58] sm:$0xf]
      %v361 = vld [vmem:[%s1 + $0x5c] sm:$0xf]
      %v362 = vld [vmem:[%s1 + $0x60] sm:$0xf]
      %v363 = vld [vmem:[%s1 + $0x64] sm:$0xf]
      %v364 = vld [vmem:[%s1 + $0x68] sm:$0xf]
      %v365 = vld [vmem:[%s1 + $0x6c] sm:$0xf]
      %v366 = vld [vmem:[%s1 + $0x70] sm:$0xf]
      %v367 = vld [vmem:[%s1 + $0x74] sm:$0xf]
      %v368 = vld [vmem:[%s1 + $0x78] sm:$0xf]
      %v369 = vld [vmem:[%s1 + $0x7c] sm:$0xf]
      %v370 = vld [vmem:[%s2] sm:$0x1]
      %v372 = vlaneseq
      %v373 = vshrl.u32 %v372, 7
      %v374 = vsub.s32 0, %v373
      %v375 = vrot.slane %v370, %v374
      %v393 = vunpack.c.l.b16 %v322
      %v394 = vunpack.c.h.b16 %v322
      %v395 = vunpack.c.l.b16 %v323
      %v396 = vunpack.c.h.b16 %v323
      %v397 = vunpack.c.l.b16 %v324
      %v398 = vunpack.c.h.b16 %v324
      %v399 = vunpack.c.l.b16 %v325
      %v400 = vunpack.c.h.b16 %v325
      %v401 = vunpack.c.l.b16 %v326
      %v402 = vunpack.c.h.b16 %v326
      %v403 = vunpack.c.l.b16 %v327
      %v404 = vunpack.c.h.b16 %v327
      %v405 = vunpack.c.l.b16 %v328
      %v406 = vunpack.c.h.b16 %v328
      %v407 = vunpack.c.l.b16 %v329
      %v408 = vunpack.c.h.b16 %v329
      %v409 = vunpack.c.l.b16 %v330
      %v410 = vunpack.c.h.b16 %v330
      %v411 = vunpack.c.l.b16 %v331
      %v412 = vunpack.c.h.b16 %v331
      %v413 = vunpack.c.l.b16 %v332
      %v414 = vunpack.c.h.b16 %v332
      %v415 = vunpack.c.l.b16 %v333
      %v416 = vunpack.c.h.b16 %v333
      %v417 = vunpack.c.l.b16 %v334
      %v418 = vunpack.c.h.b16 %v334
      %v419 = vunpack.c.l.b16 %v335
      %v420 = vunpack.c.h.b16 %v335
      %v421 = vunpack.c.l.b16 %v336
      %v422 = vunpack.c.h.b16 %v336
      %v423 = vunpack.c.l.b16 %v337
      %v424 = vunpack.c.h.b16 %v337
      %v425 = vpack.c.b16 %v395, %v393
      %v426 = vpack.c.b16 %v396, %v394
      %v427 = vpack.c.b16 %v399, %v397
      %v428 = vpack.c.b16 %v400, %v398
      %v429 = vpack.c.b16 %v403, %v401
      %v430 = vpack.c.b16 %v404, %v402
      %v431 = vpack.c.b16 %v407, %v405
      %v432 = vpack.c.b16 %v408, %v406
      %v433 = vpack.c.b16 %v411, %v409
      %v434 = vpack.c.b16 %v412, %v410
      %v435 = vpack.c.b16 %v415, %v413
      %v436 = vpack.c.b16 %v416, %v414
      %v437 = vpack.c.b16 %v419, %v417
      %v438 = vpack.c.b16 %v420, %v418
      %v439 = vpack.c.b16 %v423, %v421
      %v440 = vpack.c.b16 %v424, %v422
      %v489 = vunpack.c.l.b16 %v338
      %v490 = vunpack.c.l.b16 %v339
      %v491 = vunpack.c.l.b16 %v340
      %v492 = vunpack.c.l.b16 %v341
      %v493 = vunpack.c.l.b16 %v342
      %v494 = vunpack.c.l.b16 %v343
      %v495 = vunpack.c.l.b16 %v344
      %v496 = vunpack.c.l.b16 %v345
      %v497 = vunpack.c.l.b16 %v346
      %v498 = vunpack.c.l.b16 %v347
      %v499 = vunpack.c.l.b16 %v348
      %v500 = vunpack.c.l.b16 %v349
      %v501 = vunpack.c.l.b16 %v350
      %v502 = vunpack.c.l.b16 %v351
      %v503 = vunpack.c.l.b16 %v352
      %v504 = vunpack.c.l.b16 %v353
      %v505 = vunpack.c.l.b16 %v354
      %v506 = vunpack.c.l.b16 %v355
      %v507 = vunpack.c.l.b16 %v356
      %v508 = vunpack.c.l.b16 %v357
      %v509 = vunpack.c.l.b16 %v358
      %v510 = vunpack.c.l.b16 %v359
      %v511 = vunpack.c.l.b16 %v360
      %v512 = vunpack.c.l.b16 %v361
      %v513 = vunpack.c.l.b16 %v362
      %v514 = vunpack.c.l.b16 %v363
      %v515 = vunpack.c.l.b16 %v364
      %v516 = vunpack.c.l.b16 %v365
      %v517 = vunpack.c.l.b16 %v366
      %v518 = vunpack.c.l.b16 %v367
      %v519 = vunpack.c.l.b16 %v368
      %v520 = vunpack.c.l.b16 %v369
      %v521 = vpack.c.b16 %v490, %v489
      %v522 = vpack.c.b16 %v492, %v491
      %v523 = vpack.c.b16 %v494, %v493
      %v524 = vpack.c.b16 %v496, %v495
      %v525 = vpack.c.b16 %v498, %v497
      %v526 = vpack.c.b16 %v500, %v499
      %v527 = vpack.c.b16 %v502, %v501
      %v528 = vpack.c.b16 %v504, %v503
      %v529 = vpack.c.b16 %v506, %v505
      %v530 = vpack.c.b16 %v508, %v507
      %v531 = vpack.c.b16 %v510, %v509
      %v532 = vpack.c.b16 %v512, %v511
      %v533 = vpack.c.b16 %v514, %v513
      %v534 = vpack.c.b16 %v516, %v515
      %v535 = vpack.c.b16 %v518, %v517
      %v536 = vpack.c.b16 %v520, %v519
      %553 = vmatprep.subr.bf16.mxu0 0
      %554 = vmatpush1.bf16.msra.mxu0 %v528
      %555 = vmatprep.subr.bf16.mxu0 0
      %556 = vmatpush1.bf16.msra.mxu0 %v527
      %557 = vmatprep.subr.bf16.mxu0 0
      %558 = vmatpush1.bf16.msra.mxu0 %v526
      %559 = vmatprep.subr.bf16.mxu0 0
      %560 = vmatpush1.bf16.msra.mxu0 %v525
      %561 = vmatprep.subr.bf16.mxu0 0
      %562 = vmatpush1.bf16.msra.mxu0 %v524
      %563 = vmatprep.subr.bf16.mxu0 0
      %564 = vmatpush1.bf16.msra.mxu0 %v523
      %565 = vmatprep.subr.bf16.mxu0 0
      %566 = vmatpush1.bf16.msra.mxu0 %v522
      %567 = vmatprep.subr.bf16.mxu0 0
      %568 = vmatpush1.bf16.msra.mxu0 %v521
      %569 = vmatprep.subr.bf16.mxu0 0
      %570 = vmatpush2.bf16.msra.mxu0 %v536
      %571 = vmatprep.subr.bf16.mxu0 0
      %572 = vmatpush2.bf16.msra.mxu0 %v535
      %573 = vmatprep.subr.bf16.mxu0 0
      %574 = vmatpush2.bf16.msra.mxu0 %v534
      %575 = vmatprep.subr.bf16.mxu0 0
      %576 = vmatpush2.bf16.msra.mxu0 %v533
      %577 = vmatprep.subr.bf16.mxu0 0
      %578 = vmatpush2.bf16.msra.mxu0 %v532
      %579 = vmatprep.subr.bf16.mxu0 0
      %580 = vmatpush2.bf16.msra.mxu0 %v531
      %581 = vmatprep.subr.bf16.mxu0 0
      %582 = vmatpush2.bf16.msra.mxu0 %v530
      %583 = vmatprep.subr.bf16.mxu0 0
      %584 = vmatpush2.bf16.msra.mxu0 %v529
      %585 = vmatprep.mubr.bf16.mxu0 %v426
      %586 = vmatmul.mubr.bf16.gmra.mxu0 %v425
      %v587 = vpop.f32.mrf.mxu0
      %v588 = vadd.f32 %v375, %v587
      %v589 = vpop.f32.mrf.mxu0
      %v590 = vpop.f32.mrf.mxu0
      %v591 = vadd.f32 %v375, %v590
      %v592 = vpop.f32.mrf.mxu0
      %593 = vmatprep.mubr.bf16.mxu0 %v428
      %594 = vmatmul.mubr.bf16.gmra.mxu0 %v427
      %v595 = vpop.f32.mrf.mxu0
      %v596 = vadd.f32 %v375, %v595
      %v597 = vpop.f32.mrf.mxu0
      %v598 = vpop.f32.mrf.mxu0
      %v599 = vadd.f32 %v375, %v598
      %v600 = vpop.f32.mrf.mxu0
      %601 = vmatprep.mubr.bf16.mxu0 %v430
      %602 = vmatmul.mubr.bf16.gmra.mxu0 %v429
      %v603 = vpop.f32.mrf.mxu0
      %v604 = vadd.f32 %v375, %v603
      %v605 = vpop.f32.mrf.mxu0
      %v606 = vpop.f32.mrf.mxu0
      %v607 = vadd.f32 %v375, %v606
      %v608 = vpop.f32.mrf.mxu0
      %609 = vmatprep.mubr.bf16.mxu0 %v432
      %610 = vmatmul.mubr.bf16.gmra.mxu0 %v431
      %v611 = vpop.f32.mrf.mxu0
      %v612 = vadd.f32 %v375, %v611
      %v613 = vpop.f32.mrf.mxu0
      %v614 = vpop.f32.mrf.mxu0
      %v615 = vadd.f32 %v375, %v614
      %v616 = vpop.f32.mrf.mxu0
      %617 = vmatprep.mubr.bf16.mxu0 %v434
      %618 = vmatmul.mubr.bf16.gmra.mxu0 %v433
      %v619 = vpop.f32.mrf.mxu0
      %v620 = vadd.f32 %v375, %v619
      %v621 = vpop.f32.mrf.mxu0
      %v622 = vpop.f32.mrf.mxu0
      %v623 = vadd.f32 %v375, %v622
      %v624 = vpop.f32.mrf.mxu0
      %625 = vmatprep.mubr.bf16.mxu0 %v436
      %626 = vmatmul.mubr.bf16.gmra.mxu0 %v435
      %v627 = vpop.f32.mrf.mxu0
      %v628 = vadd.f32 %v375, %v627
      %v629 = vpop.f32.mrf.mxu0
      %v630 = vpop.f32.mrf.mxu0
      %v631 = vadd.f32 %v375, %v630
      %v632 = vpop.f32.mrf.mxu0
      %633 = vmatprep.mubr.bf16.mxu0 %v438
      %634 = vmatmul.mubr.bf16.gmra.mxu0 %v437
      %v635 = vpop.f32.mrf.mxu0
      %v636 = vadd.f32 %v375, %v635
      %v637 = vpop.f32.mrf.mxu0
      %v638 = vpop.f32.mrf.mxu0
      %v639 = vadd.f32 %v375, %v638
      %v640 = vpop.f32.mrf.mxu0
      %641 = vmatprep.mubr.bf16.mxu0 %v440
      %642 = vmatmul.mubr.bf16.gmra.mxu0 %v439
      %v643 = vpop.f32.mrf.mxu0
      %v644 = vadd.f32 %v375, %v643
      %v645 = vpop.f32.mrf.mxu0
      %v646 = vpop.f32.mrf.mxu0
      %v647 = vadd.f32 %v375, %v646
      %v648 = vpop.f32.mrf.mxu0
      %649 = vdwg.mxu0
      %v650 = vmul.f32 %v588, %v588
      %v651 = vmul.f32 %v591, %v591
      %v652 = vmul.f32 %v596, %v596
      %v653 = vmul.f32 %v599, %v599
      %v654 = vmul.f32 %v604, %v604
      %v655 = vmul.f32 %v607, %v607
      %v656 = vmul.f32 %v612, %v612
      %v657 = vmul.f32 %v615, %v615
      %v658 = vmul.f32 %v620, %v620
      %v659 = vmul.f32 %v623, %v623
      %v660 = vmul.f32 %v628, %v628
      %v661 = vmul.f32 %v631, %v631
      %v662 = vmul.f32 %v636, %v636
      %v663 = vmul.f32 %v639, %v639
      %v664 = vmul.f32 %v644, %v644
      %v665 = vmul.f32 %v647, %v647
      %666 = vadd.xlane.f32.xlu0 %v650
      %v667 = vpop.xlane.xlu0 %666
      %668 = vadd.xlane.f32.xlu0 %v651
      %v669 = vpop.xlane.xlu0 %668
      %670 = vadd.xlane.f32.xlu0 %v652
      %v671 = vpop.xlane.xlu0 %670
      %672 = vadd.xlane.f32.xlu0 %v653
      %v673 = vpop.xlane.xlu0 %672
      %674 = vadd.xlane.f32.xlu0 %v654
      %v675 = vpop.xlane.xlu0 %674
      %676 = vadd.xlane.f32.xlu0 %v655
      %v677 = vpop.xlane.xlu0 %676
      %678 = vadd.xlane.f32.xlu0 %v656
      %v679 = vpop.xlane.xlu0 %678
      %680 = vadd.xlane.f32.xlu0 %v657
      %v681 = vpop.xlane.xlu0 %680
      %682 = vadd.xlane.f32.xlu0 %v658
      %v683 = vpop.xlane.xlu0 %682
      %684 = vadd.xlane.f32.xlu0 %v659
      %v685 = vpop.xlane.xlu0 %684
      %686 = vadd.xlane.f32.xlu0 %v660
      %v687 = vpop.xlane.xlu0 %686
      %688 = vadd.xlane.f32.xlu0 %v661
      %v689 = vpop.xlane.xlu0 %688
      %690 = vadd.xlane.f32.xlu0 %v662
      %v691 = vpop.xlane.xlu0 %690
      %692 = vadd.xlane.f32.xlu0 %v663
      %v693 = vpop.xlane.xlu0 %692
      %694 = vadd.xlane.f32.xlu0 %v664
      %v695 = vpop.xlane.xlu0 %694
      %696 = vadd.xlane.f32.xlu0 %v665
      %v697 = vpop.xlane.xlu0 %696
      %v698 = vmax.f32 %v667, 1e-24
      %v699 = vmax.f32 %v669, 1e-24
      %v700 = vmax.f32 %v671, 1e-24
      %v701 = vmax.f32 %v673, 1e-24
      %v702 = vmax.f32 %v675, 1e-24
      %v703 = vmax.f32 %v677, 1e-24
      %v704 = vmax.f32 %v679, 1e-24
      %v705 = vmax.f32 %v681, 1e-24
      %v706 = vmax.f32 %v683, 1e-24
      %v707 = vmax.f32 %v685, 1e-24
      %v708 = vmax.f32 %v687, 1e-24
      %v709 = vmax.f32 %v689, 1e-24
      %v710 = vmax.f32 %v691, 1e-24
      %v711 = vmax.f32 %v693, 1e-24
      %v712 = vmax.f32 %v695, 1e-24
      %v713 = vmax.f32 %v697, 1e-24
      %v714 = vrsqrt.pop %v698
      %v715 = vrsqrt.pop %v699
      %v716 = vrsqrt.pop %v700
      %v717 = vrsqrt.pop %v701
      %v718 = vrsqrt.pop %v702
      %v719 = vrsqrt.pop %v703
      %v720 = vrsqrt.pop %v704
      %v721 = vrsqrt.pop %v705
      %v722 = vrsqrt.pop %v706
      %v723 = vrsqrt.pop %v707
      %v724 = vrsqrt.pop %v708
      %v725 = vrsqrt.pop %v709
      %v726 = vrsqrt.pop %v710
      %v727 = vrsqrt.pop %v711
      %v728 = vrsqrt.pop %v712
      %v729 = vrsqrt.pop %v713
      %v730 = vmul.f32 %v588, %v714
      %v731 = vmul.f32 %v591, %v715
      %v732 = vmul.f32 %v596, %v716
      %v733 = vmul.f32 %v599, %v717
      %v734 = vmul.f32 %v604, %v718
      %v735 = vmul.f32 %v607, %v719
      %v736 = vmul.f32 %v612, %v720
      %v737 = vmul.f32 %v615, %v721
      %v738 = vmul.f32 %v620, %v722
      %v739 = vmul.f32 %v623, %v723
      %v740 = vmul.f32 %v628, %v724
      %v741 = vmul.f32 %v631, %v725
      %v742 = vmul.f32 %v636, %v726
      %v743 = vmul.f32 %v639, %v727
      %v744 = vmul.f32 %v644, %v728
      %v745 = vmul.f32 %v647, %v729
      %v746 = vpack.c.bf16 %v731, %v730
      %v747 = vpack.c.bf16 %v733, %v732
      %v748 = vpack.c.bf16 %v735, %v734
      %v749 = vpack.c.bf16 %v737, %v736
      %v750 = vpack.c.bf16 %v739, %v738
      %v751 = vpack.c.bf16 %v741, %v740
      %v752 = vpack.c.bf16 %v743, %v742
      %v753 = vpack.c.bf16 %v745, %v744
      %v754 = vld [vmem:[%s3] sm:$0xff]
      %v755 = vld [vmem:[%s3 + $0x8] sm:$0xff]
      %v756 = vld [vmem:[%s3 + $0x10] sm:$0xff]
      %v757 = vld [vmem:[%s3 + $0x18] sm:$0xff]
      %v758 = vld [vmem:[%s3 + $0x20] sm:$0xff]
      %v759 = vld [vmem:[%s3 + $0x28] sm:$0xff]
      %v760 = vld [vmem:[%s3 + $0x30] sm:$0xff]
      %v761 = vld [vmem:[%s3 + $0x38] sm:$0xff]
      %v762 = vld [vmem:[%s3 + $0x40] sm:$0xff]
      %v763 = vld [vmem:[%s3 + $0x48] sm:$0xff]
      %v764 = vld [vmem:[%s3 + $0x50] sm:$0xff]
      %v765 = vld [vmem:[%s3 + $0x58] sm:$0xff]
      %v766 = vld [vmem:[%s3 + $0x60] sm:$0xff]
      %v767 = vld [vmem:[%s3 + $0x68] sm:$0xff]
      %v768 = vld [vmem:[%s3 + $0x70] sm:$0xff]
      %v769 = vld [vmem:[%s3 + $0x78] sm:$0xff]
      %v786 = vunpack.c.l.b16 %v754
      %v787 = vunpack.c.h.b16 %v754
      %v788 = vunpack.c.l.b16 %v755
      %v789 = vunpack.c.h.b16 %v755
      %v790 = vunpack.c.l.b16 %v756
      %v791 = vunpack.c.h.b16 %v756
      %v792 = vunpack.c.l.b16 %v757
      %v793 = vunpack.c.h.b16 %v757
      %v794 = vunpack.c.l.b16 %v758
      %v795 = vunpack.c.h.b16 %v758
      %v796 = vunpack.c.l.b16 %v759
      %v797 = vunpack.c.h.b16 %v759
      %v798 = vunpack.c.l.b16 %v760
      %v799 = vunpack.c.h.b16 %v760
      %v800 = vunpack.c.l.b16 %v761
      %v801 = vunpack.c.h.b16 %v761
      %v802 = vunpack.c.l.b16 %v762
      %v803 = vunpack.c.h.b16 %v762
      %v804 = vunpack.c.l.b16 %v763
      %v805 = vunpack.c.h.b16 %v763
      %v806 = vunpack.c.l.b16 %v764
      %v807 = vunpack.c.h.b16 %v764
      %v808 = vunpack.c.l.b16 %v765
      %v809 = vunpack.c.h.b16 %v765
      %v810 = vunpack.c.l.b16 %v766
      %v811 = vunpack.c.h.b16 %v766
      %v812 = vunpack.c.l.b16 %v767
      %v813 = vunpack.c.h.b16 %v767
      %v814 = vunpack.c.l.b16 %v768
      %v815 = vunpack.c.h.b16 %v768
      %v816 = vunpack.c.l.b16 %v769
      %v817 = vunpack.c.h.b16 %v769
      %v818 = vpack.c.b16 %v788, %v786
      %v819 = vpack.c.b16 %v789, %v787
      %v820 = vpack.c.b16 %v792, %v790
      %v821 = vpack.c.b16 %v793, %v791
      %v822 = vpack.c.b16 %v796, %v794
      %v823 = vpack.c.b16 %v797, %v795
      %v824 = vpack.c.b16 %v800, %v798
      %v825 = vpack.c.b16 %v801, %v799
      %v826 = vpack.c.b16 %v804, %v802
      %v827 = vpack.c.b16 %v805, %v803
      %v828 = vpack.c.b16 %v808, %v806
      %v829 = vpack.c.b16 %v809, %v807
      %v830 = vpack.c.b16 %v812, %v810
      %v831 = vpack.c.b16 %v813, %v811
      %v832 = vpack.c.b16 %v816, %v814
      %v833 = vpack.c.b16 %v817, %v815
      %850 = vmatprep.subr.bf16.mxu0 %v833
      %851 = vmatpush1.bf16.msra.mxu0 %v832
      %852 = vmatprep.subr.bf16.mxu0 %v831
      %853 = vmatpush1.bf16.msra.mxu0 %v830
      %854 = vmatprep.subr.bf16.mxu0 %v829
      %855 = vmatpush1.bf16.msra.mxu0 %v828
      %856 = vmatprep.subr.bf16.mxu0 %v827
      %857 = vmatpush1.bf16.msra.mxu0 %v826
      %858 = vmatprep.subr.bf16.mxu0 %v825
      %859 = vmatpush1.bf16.msra.mxu0 %v824
      %860 = vmatprep.subr.bf16.mxu0 %v823
      %861 = vmatpush1.bf16.msra.mxu0 %v822
      %862 = vmatprep.subr.bf16.mxu0 %v821
      %863 = vmatpush1.bf16.msra.mxu0 %v820
      %864 = vmatprep.subr.bf16.mxu0 %v819
      %865 = vmatpush1.bf16.msra.mxu0 %v818
      %866 = vmatprep.subr.bf16.mxu0 0
      %867 = vmatpush2.bf16.msra.mxu0 0
      %868 = vmatprep.subr.bf16.mxu0 0
      %869 = vmatpush2.bf16.msra.mxu0 0
      %870 = vmatprep.subr.bf16.mxu0 0
      %871 = vmatpush2.bf16.msra.mxu0 0
      %872 = vmatprep.subr.bf16.mxu0 0
      %873 = vmatpush2.bf16.msra.mxu0 0
      %874 = vmatprep.subr.bf16.mxu0 0
      %875 = vmatpush2.bf16.msra.mxu0 0
      %876 = vmatprep.subr.bf16.mxu0 0
      %877 = vmatpush2.bf16.msra.mxu0 0
      %878 = vmatprep.subr.bf16.mxu0 0
      %879 = vmatpush2.bf16.msra.mxu0 0
      %880 = vmatprep.subr.bf16.mxu0 0
      %881 = vmatpush2.bf16.msra.mxu0 0
      %882 = vmatprep.mubr.bf16.mxu0 0
      %883 = vmatmul.mubr.bf16.gmra.mxu0 %v746
      %v884 = vpop.f32.mrf.mxu0
      %v885 = vadd.f32 0.0, %v884
      %v886 = vpop.f32.mrf.mxu0
      %v887 = vadd.f32 0.0, %v886
      %v888 = vpop.f32.mrf.mxu0
      %v889 = vadd.f32 0.0, %v888
      %v890 = vpop.f32.mrf.mxu0
      %v891 = vadd.f32 0.0, %v890
      %892 = vmatprep.mubr.bf16.mxu0 0
      %893 = vmatmul.mubr.bf16.gmra.mxu0 %v747
      %v894 = vpop.f32.mrf.mxu0
      %v895 = vadd.f32 0.0, %v894
      %v896 = vpop.f32.mrf.mxu0
      %v897 = vadd.f32 0.0, %v896
      %v898 = vpop.f32.mrf.mxu0
      %v899 = vadd.f32 0.0, %v898
      %v900 = vpop.f32.mrf.mxu0
      %v901 = vadd.f32 0.0, %v900
      %902 = vmatprep.mubr.bf16.mxu0 0
      %903 = vmatmul.mubr.bf16.gmra.mxu0 %v748
      %v904 = vpop.f32.mrf.mxu0
      %v905 = vadd.f32 0.0, %v904
      %v906 = vpop.f32.mrf.mxu0
      %v907 = vadd.f32 0.0, %v906
      %v908 = vpop.f32.mrf.mxu0
      %v909 = vadd.f32 0.0, %v908
      %v910 = vpop.f32.mrf.mxu0
      %v911 = vadd.f32 0.0, %v910
      %912 = vmatprep.mubr.bf16.mxu0 0
      %913 = vmatmul.mubr.bf16.gmra.mxu0 %v749
      %v914 = vpop.f32.mrf.mxu0
      %v915 = vadd.f32 0.0, %v914
      %v916 = vpop.f32.mrf.mxu0
      %v917 = vadd.f32 0.0, %v916
      %v918 = vpop.f32.mrf.mxu0
      %v919 = vadd.f32 0.0, %v918
      %v920 = vpop.f32.mrf.mxu0
      %v921 = vadd.f32 0.0, %v920
      %922 = vmatprep.mubr.bf16.mxu0 0
      %923 = vmatmul.mubr.bf16.gmra.mxu0 %v750
      %v924 = vpop.f32.mrf.mxu0
      %v925 = vadd.f32 0.0, %v924
      %v926 = vpop.f32.mrf.mxu0
      %v927 = vadd.f32 0.0, %v926
      %v928 = vpop.f32.mrf.mxu0
      %v929 = vadd.f32 0.0, %v928
      %v930 = vpop.f32.mrf.mxu0
      %v931 = vadd.f32 0.0, %v930
      %932 = vmatprep.mubr.bf16.mxu0 0
      %933 = vmatmul.mubr.bf16.gmra.mxu0 %v751
      %v934 = vpop.f32.mrf.mxu0
      %v935 = vadd.f32 0.0, %v934
      %v936 = vpop.f32.mrf.mxu0
      %v937 = vadd.f32 0.0, %v936
      %v938 = vpop.f32.mrf.mxu0
      %v939 = vadd.f32 0.0, %v938
      %v940 = vpop.f32.mrf.mxu0
      %v941 = vadd.f32 0.0, %v940
      %942 = vmatprep.mubr.bf16.mxu0 0
      %943 = vmatmul.mubr.bf16.gmra.mxu0 %v752
      %v944 = vpop.f32.mrf.mxu0
      %v945 = vadd.f32 0.0, %v944
      %v946 = vpop.f32.mrf.mxu0
      %v947 = vadd.f32 0.0, %v946
      %v948 = vpop.f32.mrf.mxu0
      %v949 = vadd.f32 0.0, %v948
      %v950 = vpop.f32.mrf.mxu0
      %v951 = vadd.f32 0.0, %v950
      %952 = vmatprep.mubr.bf16.mxu0 0
      %953 = vmatmul.mubr.bf16.gmra.mxu0 %v753
      %v954 = vpop.f32.mrf.mxu0
      %v955 = vadd.f32 0.0, %v954
      %v956 = vpop.f32.mrf.mxu0
      %v957 = vadd.f32 0.0, %v956
      %v958 = vpop.f32.mrf.mxu0
      %v959 = vadd.f32 0.0, %v958
      %v960 = vpop.f32.mrf.mxu0
      %v961 = vadd.f32 0.0, %v960
      %962 = vdwg.mxu0
      %v963 = vpack.c.bf16 %v889, %v885
      %v964 = vpack.c.bf16 %v899, %v895
      %v965 = vpack.c.bf16 %v909, %v905
      %v966 = vpack.c.bf16 %v919, %v915
      %v967 = vpack.c.bf16 %v929, %v925
      %v968 = vpack.c.bf16 %v939, %v935
      %v969 = vpack.c.bf16 %v949, %v945
      %v970 = vpack.c.bf16 %v959, %v955
      %v979 = vunpack.c.l.b16 %v963
      %v980 = vunpack.c.h.b16 %v963
      %v981 = vunpack.c.l.b16 %v964
      %v982 = vunpack.c.h.b16 %v964
      %v983 = vunpack.c.l.b16 %v965
      %v984 = vunpack.c.h.b16 %v965
      %v985 = vunpack.c.l.b16 %v966
      %v986 = vunpack.c.h.b16 %v966
      %v987 = vunpack.c.l.b16 %v967
      %v988 = vunpack.c.h.b16 %v967
      %v989 = vunpack.c.l.b16 %v968
      %v990 = vunpack.c.h.b16 %v968
      %v991 = vunpack.c.l.b16 %v969
      %v992 = vunpack.c.h.b16 %v969
      %v993 = vunpack.c.l.b16 %v970
      %v994 = vunpack.c.h.b16 %v970
      %v995 = vpack.c.b16 %v979, %v979
      %v996 = vpack.c.b16 %v980, %v980
      %v997 = vpack.c.b16 %v981, %v981
      %v998 = vpack.c.b16 %v982, %v982
      %v999 = vpack.c.b16 %v983, %v983
      %v1000 = vpack.c.b16 %v984, %v984
      %v1001 = vpack.c.b16 %v985, %v985
      %v1002 = vpack.c.b16 %v986, %v986
      %v1003 = vpack.c.b16 %v987, %v987
      %v1004 = vpack.c.b16 %v988, %v988
      %v1005 = vpack.c.b16 %v989, %v989
      %v1006 = vpack.c.b16 %v990, %v990
      %v1007 = vpack.c.b16 %v991, %v991
      %v1008 = vpack.c.b16 %v992, %v992
      %v1009 = vpack.c.b16 %v993, %v993
      %v1010 = vpack.c.b16 %v994, %v994
      %1027 = vst [vmem:[%s313] sm:$0xf] %v995
      %1028 = vst [vmem:[%s313 + $0x4] sm:$0xf] %v996
      %1029 = vst [vmem:[%s313 + $0x8] sm:$0xf] %v997
      %1030 = vst [vmem:[%s313 + $0xc] sm:$0xf] %v998
      %1031 = vst [vmem:[%s313 + $0x10] sm:$0xf] %v999
      %1032 = vst [vmem:[%s313 + $0x14] sm:$0xf] %v1000
      %1033 = vst [vmem:[%s313 + $0x18] sm:$0xf] %v1001
      %1034 = vst [vmem:[%s313 + $0x1c] sm:$0xf] %v1002
      %1035 = vst [vmem:[%s313 + $0x20] sm:$0xf] %v1003
      %1036 = vst [vmem:[%s313 + $0x24] sm:$0xf] %v1004
      %1037 = vst [vmem:[%s313 + $0x28] sm:$0xf] %v1005
      %1038 = vst [vmem:[%s313 + $0x2c] sm:$0xf] %v1006
      %1039 = vst [vmem:[%s313 + $0x30] sm:$0xf] %v1007
      %1040 = vst [vmem:[%s313 + $0x34] sm:$0xf] %v1008
      %1041 = vst [vmem:[%s313 + $0x38] sm:$0xf] %v1009
      %1042 = vst [vmem:[%s313 + $0x3c] sm:$0xf] %v1010
      %v1043 = vld [vmem:[%s4] sm:$0x1]
      %v1045 = vlaneseq
      %v1046 = vshrl.u32 %v1045, 7
      %v1047 = vsub.s32 0, %v1046
      %v1048 = vrot.slane %v1043, %v1047
      %v1050 = vadd.f32 %v887, %v1048
      %v1051 = vadd.f32 %v891, %v1048
      %v1052 = vadd.f32 %v897, %v1048
      %v1053 = vadd.f32 %v901, %v1048
      %v1054 = vadd.f32 %v907, %v1048
      %v1055 = vadd.f32 %v911, %v1048
      %v1056 = vadd.f32 %v917, %v1048
      %v1057 = vadd.f32 %v921, %v1048
      %v1058 = vadd.f32 %v927, %v1048
      %v1059 = vadd.f32 %v931, %v1048
      %v1060 = vadd.f32 %v937, %v1048
      %v1061 = vadd.f32 %v941, %v1048
      %v1062 = vadd.f32 %v947, %v1048
      %v1063 = vadd.f32 %v951, %v1048
      %v1064 = vadd.f32 %v957, %v1048
      %v1065 = vadd.f32 %v961, %v1048
      %vm1066 = vcmp.ge.f32.partialorder %v1050, 0.0
      %vm1067 = vcmp.ge.f32.partialorder %v1051, 0.0
      %vm1068 = vcmp.ge.f32.partialorder %v1052, 0.0
      %vm1069 = vcmp.ge.f32.partialorder %v1053, 0.0
      %vm1070 = vcmp.ge.f32.partialorder %v1054, 0.0
      %vm1071 = vcmp.ge.f32.partialorder %v1055, 0.0
      %vm1072 = vcmp.ge.f32.partialorder %v1056, 0.0
      %vm1073 = vcmp.ge.f32.partialorder %v1057, 0.0
      %vm1074 = vcmp.ge.f32.partialorder %v1058, 0.0
      %vm1075 = vcmp.ge.f32.partialorder %v1059, 0.0
      %vm1076 = vcmp.ge.f32.partialorder %v1060, 0.0
      %vm1077 = vcmp.ge.f32.partialorder %v1061, 0.0
      %vm1078 = vcmp.ge.f32.partialorder %v1062, 0.0
      %vm1079 = vcmp.ge.f32.partialorder %v1063, 0.0
      %vm1080 = vcmp.ge.f32.partialorder %v1064, 0.0
      %vm1081 = vcmp.ge.f32.partialorder %v1065, 0.0
      %v1082 = vmul.f32 %v1050, 0.01
      %v1083 = vmul.f32 %v1051, 0.01
      %v1084 = vmul.f32 %v1052, 0.01
      %v1085 = vmul.f32 %v1053, 0.01
      %v1086 = vmul.f32 %v1054, 0.01
      %v1087 = vmul.f32 %v1055, 0.01
      %v1088 = vmul.f32 %v1056, 0.01
      %v1089 = vmul.f32 %v1057, 0.01
      %v1090 = vmul.f32 %v1058, 0.01
      %v1091 = vmul.f32 %v1059, 0.01
      %v1092 = vmul.f32 %v1060, 0.01
      %v1093 = vmul.f32 %v1061, 0.01
      %v1094 = vmul.f32 %v1062, 0.01
      %v1095 = vmul.f32 %v1063, 0.01
      %v1096 = vmul.f32 %v1064, 0.01
      %v1097 = vmul.f32 %v1065, 0.01
      %v1098 = vsel %vm1066, %v1050, %v1082
      %v1099 = vsel %vm1067, %v1051, %v1083
      %v1100 = vsel %vm1068, %v1052, %v1084
      %v1101 = vsel %vm1069, %v1053, %v1085
      %v1102 = vsel %vm1070, %v1054, %v1086
      %v1103 = vsel %vm1071, %v1055, %v1087
      %v1104 = vsel %vm1072, %v1056, %v1088
      %v1105 = vsel %vm1073, %v1057, %v1089
      %v1106 = vsel %vm1074, %v1058, %v1090
      %v1107 = vsel %vm1075, %v1059, %v1091
      %v1108 = vsel %vm1076, %v1060, %v1092
      %v1109 = vsel %vm1077, %v1061, %v1093
      %v1110 = vsel %vm1078, %v1062, %v1094
      %v1111 = vsel %vm1079, %v1063, %v1095
      %v1112 = vsel %vm1080, %v1064, %v1096
      %v1113 = vsel %vm1081, %v1065, %v1097
      %v1114 = vld [vmem:[%s307] sm:$0xf]
      %v1115 = vld [vmem:[%s307 + $0x4] sm:$0xf]
      %v1116 = vld [vmem:[%s307 + $0x8] sm:$0xf]
      %v1117 = vld [vmem:[%s307 + $0xc] sm:$0xf]
      %v1118 = vld [vmem:[%s307 + $0x10] sm:$0xf]
      %v1119 = vld [vmem:[%s307 + $0x14] sm:$0xf]
      %v1120 = vld [vmem:[%s307 + $0x18] sm:$0xf]
      %v1121 = vld [vmem:[%s307 + $0x1c] sm:$0xf]
      %v1122 = vld [vmem:[%s307 + $0x20] sm:$0xf]
      %v1123 = vld [vmem:[%s307 + $0x24] sm:$0xf]
      %v1124 = vld [vmem:[%s307 + $0x28] sm:$0xf]
      %v1125 = vld [vmem:[%s307 + $0x2c] sm:$0xf]
      %v1126 = vld [vmem:[%s307 + $0x30] sm:$0xf]
      %v1127 = vld [vmem:[%s307 + $0x34] sm:$0xf]
      %v1128 = vld [vmem:[%s307 + $0x38] sm:$0xf]
      %v1129 = vld [vmem:[%s307 + $0x3c] sm:$0xf]
      %v1130 = vunpack.c.l.bf16 %v1114
      %v1131 = vunpack.c.l.bf16 %v1115
      %v1132 = vunpack.c.l.bf16 %v1116
      %v1133 = vunpack.c.l.bf16 %v1117
      %v1134 = vunpack.c.l.bf16 %v1118
      %v1135 = vunpack.c.l.bf16 %v1119
      %v1136 = vunpack.c.l.bf16 %v1120
      %v1137 = vunpack.c.l.bf16 %v1121
      %v1138 = vunpack.c.l.bf16 %v1122
      %v1139 = vunpack.c.l.bf16 %v1123
      %v1140 = vunpack.c.l.bf16 %v1124
      %v1141 = vunpack.c.l.bf16 %v1125
      %v1142 = vunpack.c.l.bf16 %v1126
      %v1143 = vunpack.c.l.bf16 %v1127
      %v1144 = vunpack.c.l.bf16 %v1128
      %v1145 = vunpack.c.l.bf16 %v1129
      %v1146 = vadd.f32 %v1098, %v1130
      %v1147 = vadd.f32 %v1099, %v1131
      %v1148 = vadd.f32 %v1100, %v1132
      %v1149 = vadd.f32 %v1101, %v1133
      %v1150 = vadd.f32 %v1102, %v1134
      %v1151 = vadd.f32 %v1103, %v1135
      %v1152 = vadd.f32 %v1104, %v1136
      %v1153 = vadd.f32 %v1105, %v1137
      %v1154 = vadd.f32 %v1106, %v1138
      %v1155 = vadd.f32 %v1107, %v1139
      %v1156 = vadd.f32 %v1108, %v1140
      %v1157 = vadd.f32 %v1109, %v1141
      %v1158 = vadd.f32 %v1110, %v1142
      %v1159 = vadd.f32 %v1111, %v1143
      %v1160 = vadd.f32 %v1112, %v1144
      %v1161 = vadd.f32 %v1113, %v1145
      %v1162 = vpack.c.bf16 %v1147, %v1146
      %v1163 = vpack.c.bf16 %v1149, %v1148
      %v1164 = vpack.c.bf16 %v1151, %v1150
      %v1165 = vpack.c.bf16 %v1153, %v1152
      %v1166 = vpack.c.bf16 %v1155, %v1154
      %v1167 = vpack.c.bf16 %v1157, %v1156
      %v1168 = vpack.c.bf16 %v1159, %v1158
      %v1169 = vpack.c.bf16 %v1161, %v1160
      %v1178 = vunpack.c.l.b16 %v1162
      %v1179 = vunpack.c.h.b16 %v1162
      %v1180 = vunpack.c.l.b16 %v1163
      %v1181 = vunpack.c.h.b16 %v1163
      %v1182 = vunpack.c.l.b16 %v1164
      %v1183 = vunpack.c.h.b16 %v1164
      %v1184 = vunpack.c.l.b16 %v1165
      %v1185 = vunpack.c.h.b16 %v1165
      %v1186 = vunpack.c.l.b16 %v1166
      %v1187 = vunpack.c.h.b16 %v1166
      %v1188 = vunpack.c.l.b16 %v1167
      %v1189 = vunpack.c.h.b16 %v1167
      %v1190 = vunpack.c.l.b16 %v1168
      %v1191 = vunpack.c.h.b16 %v1168
      %v1192 = vunpack.c.l.b16 %v1169
      %v1193 = vunpack.c.h.b16 %v1169
      %v1194 = vpack.c.b16 %v1178, %v1178
      %v1195 = vpack.c.b16 %v1179, %v1179
      %v1196 = vpack.c.b16 %v1180, %v1180
      %v1197 = vpack.c.b16 %v1181, %v1181
      %v1198 = vpack.c.b16 %v1182, %v1182
      %v1199 = vpack.c.b16 %v1183, %v1183
      %v1200 = vpack.c.b16 %v1184, %v1184
      %v1201 = vpack.c.b16 %v1185, %v1185
      %v1202 = vpack.c.b16 %v1186, %v1186
      %v1203 = vpack.c.b16 %v1187, %v1187
      %v1204 = vpack.c.b16 %v1188, %v1188
      %v1205 = vpack.c.b16 %v1189, %v1189
      %v1206 = vpack.c.b16 %v1190, %v1190
      %v1207 = vpack.c.b16 %v1191, %v1191
      %v1208 = vpack.c.b16 %v1192, %v1192
      %v1209 = vpack.c.b16 %v1193, %v1193
      %1226 = vst [vmem:[%s319] sm:$0xf] %v1194
      %1227 = vst [vmem:[%s319 + $0x4] sm:$0xf] %v1195
      %1228 = vst [vmem:[%s319 + $0x8] sm:$0xf] %v1196
      %1229 = vst [vmem:[%s319 + $0xc] sm:$0xf] %v1197
      %1230 = vst [vmem:[%s319 + $0x10] sm:$0xf] %v1198
      %1231 = vst [vmem:[%s319 + $0x14] sm:$0xf] %v1199
      %1232 = vst [vmem:[%s319 + $0x18] sm:$0xf] %v1200
      %1233 = vst [vmem:[%s319 + $0x1c] sm:$0xf] %v1201
      %1234 = vst [vmem:[%s319 + $0x20] sm:$0xf] %v1202
      %1235 = vst [vmem:[%s319 + $0x24] sm:$0xf] %v1203
      %1236 = vst [vmem:[%s319 + $0x28] sm:$0xf] %v1204
      %1237 = vst [vmem:[%s319 + $0x2c] sm:$0xf] %v1205
      %1238 = vst [vmem:[%s319 + $0x30] sm:$0xf] %v1206
      %1239 = vst [vmem:[%s319 + $0x34] sm:$0xf] %v1207
      %1240 = vst [vmem:[%s319 + $0x38] sm:$0xf] %v1208
      %1241 = vst [vmem:[%s319 + $0x3c] sm:$0xf] %v1209
      %s1242 = smul.u32 16, %s19
      %p1243 = scmp.lt.s32.totalorder %s1242, 31
      %s1244 = scalar_select %p1243, %s1242, 31
      %s1245 = smul.addr %s1244, 4
      %s1246 = scalar_lea.vmem %s6, %s1245
      %s1247 = smul.u32 16, %s19
      %p1248 = scmp.lt.s32.totalorder %s1247, 31
      %s1249 = scalar_select %p1248, %s1247, 31
      %s1250 = smul.addr %s1249, 4
      %s1251 = scalar_lea.vmem %s7, %s1250
      // Predicated region
      $region45: #{gcn_forward.6} parent=43 // pred_check
        %p1252 = pneg %p173
      $region46: #{gcn_forward.6} parent=43 // pred_check_branch
        %1254 = sbr.rel (%p1252) target = $region48
      $region47: #{gcn_forward.6} parent=43 // pred_region
        %s1255 = smul.u32 16, %s19
      $region48: #{gcn_forward.6} parent=43 // pred_fallthru
        _
      // Predicated region
      $region49: #{gcn_forward.6} parent=43 // pred_check
        %p1256 = pneg %p199
      $region50: #{gcn_forward.6} parent=43 // pred_check_branch
        %1258 = sbr.rel (%p1256) target = $region52
      $region51: #{gcn_forward.6} parent=43 // pred_region
        %s1259 = smul.u32 16, %s19
      $region52: #{gcn_forward.6} parent=43 // pred_fallthru
        _
    $region44: #{gcn_forward.6} parent=5 // pred_fallthru
      _
    %p1260 = scmp.le.s32.totalorder 2, %s14
    // Predicated region
    $region53: #{gcn_forward.6} parent=5 // pred_check
      %p1261 = pneg %p1260
    $region54: #{gcn_forward.6} parent=5 // pred_check_branch
      %1263 = sbr.rel (%p1261) target = $region56
    $region55: #{gcn_forward.6} parent=5 // pred_region
      %s1264 = ssub.s32 %s14, 2
      // Predicated region
      $region57: #{gcn_forward.6} parent=55 // pred_check
        %p1265 = pneg %p179
      $region58: #{gcn_forward.6} parent=55 // pred_check_branch
        %1267 = sbr.rel (%p1265) target = $region60
      $region59: #{gcn_forward.6} parent=55 // pred_region
        %s1268 = smul.u32 16, %s20
        %p1269 = scmp.lt.s32.totalorder %s1268, 31
        %s1270 = scalar_select %p1269, %s1268, 31
        %s1271 = smul.addr %s1270, 4
        %s1272 = scalar_lea.vmem %s6, %s1271
      $region60: #{gcn_forward.6} parent=55 // pred_fallthru
        _
      // Predicated region
      $region61: #{gcn_forward.6} parent=55 // pred_check
        %p1273 = pneg %p205
      $region62: #{gcn_forward.6} parent=55 // pred_check_branch
        %1275 = sbr.rel (%p1273) target = $region64
      $region63: #{gcn_forward.6} parent=55 // pred_region
        %s1276 = smul.u32 16, %s20
        %p1277 = scmp.lt.s32.totalorder %s1276, 31
        %s1278 = scalar_select %p1277, %s1276, 31
        %s1279 = smul.addr %s1278, 4
        %s1280 = scalar_lea.vmem %s7, %s1279
      $region64: #{gcn_forward.6} parent=55 // pred_fallthru
        _
    $region56: #{gcn_forward.6} parent=5 // pred_fallthru
      _
  $region6: #{gcn_forward.6} parent=0 // loop_footer
    %s18 = sadd.s32 1, %s14
  $region7: #{gcn_forward.6} parent=0 // loop_footer_branch
    %13 = sbr.rel target = $region3
  $region8: #{gcn_forward.6} parent=0 // loop_exit
    _

// kernel: gcn_forward.9
$region0: #{gcn_forward.9}
  #allocation0 [shape = 'u32[]', space=smem, size = 0x4, offset = 0x4, fixed_abs, tag = 'smem constant byte address 0x4 - core index']
  #allocation1 [shape = 'u32[144,128]{1,0:T(1,128)}', space=vmem, size = 0x12000, scoped, tag = 'internal scratch']
  #allocation2 [shape = 'f32[128,128]{1,0:T(8,128)}', space=vmem, size = 0x10000, scoped, tag = 'scratch operand']
  %s0 = inlined_call_operand.vmem [shape: s8[512,512], index: 0, kind: input, shape index: {}]
  %s1 = inlined_call_operand.vmem [shape: bf16[512,128], index: 1, kind: input, shape index: {}]
  %s2 = inlined_call_operand.vmem [shape: bf16[128,128], index: 2, kind: input, shape index: {}]
  %s3 = inlined_call_operand.vmem [shape: f32[1,128], index: 3, kind: input, shape index: {}]
  %s4 = inlined_call_operand.vmem [shape: bf16[512,128], index: 4, kind: input, shape index: {}]
  %s5 = inlined_call_operand.hbm [shape: f32[512,128], index: 5, kind: output, shape index: {}]
  %s6 = sld [smem:[#allocation0]]
  $region84: #{gcn_forward.9} parent=0
    _
  %s8 = ssub.s32 1, %s6
  %s9 = scalar_select 0, %s8, %s6
  $region1: #{gcn_forward.9} parent=0
    #allocation3 [shape = 'u8[65536]{0}', space=vmem, size = 0x10000, scoped, tag = 'input window, operand 0']
    #allocation4 [shape = 'u8[131072]{0}', space=vmem, size = 0x20000, scoped, tag = 'output window, operand 0']
    #allocation5 [shape = 's32[2]{0}', space=sflag, size = 0x8, scoped, tag = 'scoped memory for gcn_forward.9']
    %10 = vsyncpa [#allocation5], 0
    %s11 = scalar_lea.sflag [#allocation5], 1
    %12 = vsyncpa %s11, 0
    loop: start=0, step=1, limit=10
    $region2: #{gcn_forward.9} parent=1 // loop_pre_header
      _
    $region3: #{gcn_forward.9} parent=1 // loop_header
      %s14 = sphi 0, %s18
      %p15 = scmp.ge.s32.totalorder %s14, 10
      %s21 = sphi 0, %s33
      %s22 = sphi 0, %s29
      %s23 = sphi 0, %s21
      %s24 = sphi 0, %s22
      %s25 = sphi 0, %s23
      %s26 = sphi 0, %s24
      %s38 = sphi 0, %s40
      %s41 = sphi 0, %s38
      %s42 = sphi 0, %s41
      %s58 = sphi 0, %s42
      %s64 = sphi 0, %s66
      %s67 = sphi 0, %s64
      %s68 = sphi 0, %s67
      %s84 = sphi 0, %s68
      %s88 = sphi 0, %s88
      %s90 = sphi 0, %s88
      %s91 = sphi 0, %s90
      %s105 = sphi 0, %s91
      %s109 = sphi 0, %s109
      %s111 = sphi 0, %s109
      %s112 = sphi 0, %s111
      %s126 = sphi 0, %s112
      %s132 = sphi 0, %s134
      %s135 = sphi 0, %s132
      %s136 = sphi 0, %s135
      %s152 = sphi 0, %s136
      %s158 = sphi 0, %s160
      %s161 = sphi 0, %s158
      %s162 = sphi 0, %s161
      %s178 = sphi 0, %s162
    $region4: #{gcn_forward.9} parent=1 // loop_header_branch
      %17 = sbr.rel (%p15) target = $region8
    $region5: #{gcn_forward.9} parent=1 // loop_body
      %s19 = ssub.s32 %s14, 1
      %s20 = ssub.s32 %s14, 2
      %s27 = sadd.s32 1, %s22
      %p28 = scmp.ge.s32.totalorder %s27, 2
      %s29 = scalar_select %p28, 0, %s27
      %s30 = sadd.s32 1, %s21
      %s31 = scalar_select %p28, %s30, %s21
      %p32 = scmp.ge.s32.totalorder %s31, 4
      %s33 = scalar_select %p32, 0, %s31
      %s34 = ssub.s32 %s21, %s33
      %s35 = ssub.s32 %s22, %s29
      %s36 = sor.u32 %s34, %s35
      %p37 = scmp.eq.s32.totalorder %s36, 0
      %s39 = sadd.s32 %s38, 1
      %s40 = scalar_select %p37, %s38, %s39
      %p43 = pneg %p37
      %p44 = scmp.eq.s32.totalorder %s14, 7
      %p45 = por %p43, %p44
      %p46 = scmp.ne.s32.totalorder %s38, %s41
      %p47 = scmp.eq.s32.totalorder %s14, 0
      %p48 = por %p46, %p47
      %p49 = scmp.ne.s32.totalorder %s38, %s41
      %p50 = scmp.eq.s32.totalorder %s19, 7
      %p51 = por %p49, %p50
      %p52 = scmp.ne.s32.totalorder %s41, %s42
      %p53 = scmp.eq.s32.totalorder %s19, 0
      %p54 = por %p52, %p53
      %p55 = scmp.ne.s32.totalorder %s41, %s42
      %p56 = scmp.eq.s32.totalorder %s20, 7
      %p57 = por %p55, %p56
      %p59 = scmp.ne.s32.totalorder %s42, %s58
      %p60 = scmp.eq.s32.totalorder %s20, 0
      %p61 = por %p59, %p60
      %s62 = ssub.s32 %s22, %s29
      %p63 = scmp.eq.s32.totalorder %s62, 0
      %s65 = sadd.s32 %s64, 1
      %s66 = scalar_select %p63, %s64, %s65
      %p69 = pneg %p63
      %p70 = scmp.eq.s32.totalorder %s14, 7
      %p71 = por %p69, %p70
      %p72 = scmp.ne.s32.totalorder %s64, %s67
      %p73 = scmp.eq.s32.totalorder %s14, 0
      %p74 = por %p72, %p73
      %p75 = scmp.ne.s32.totalorder %s64, %s67
      %p76 = scmp.eq.s32.totalorder %s19, 7
      %p77 = por %p75, %p76
      %p78 = scmp.ne.s32.totalorder %s67, %s68
      %p79 = scmp.eq.s32.totalorder %s19, 0
      %p80 = por %p78, %p79
      %p81 = scmp.ne.s32.totalorder %s67, %s68
      %p82 = scmp.eq.s32.totalorder %s20, 7
      %p83 = por %p81, %p82
      %p85 = scmp.ne.s32.totalorder %s68, %s84
      %p86 = scmp.eq.s32.totalorder %s20, 0
      %p87 = por %p85, %p86
      %s89 = sadd.s32 %s88, 1
      %p92 = scmp.eq.s32.totalorder %s14, 7
      %p93 = scmp.ne.s32.totalorder %s88, %s90
      %p94 = scmp.eq.s32.totalorder %s14, 0
      %p95 = por %p93, %p94
      %p96 = scmp.ne.s32.totalorder %s88, %s90
      %p97 = scmp.eq.s32.totalorder %s19, 7
      %p98 = por %p96, %p97
      %p99 = scmp.ne.s32.totalorder %s90, %s91
      %p100 = scmp.eq.s32.totalorder %s19, 0
      %p101 = por %p99, %p100
      %p102 = scmp.ne.s32.totalorder %s90, %s91
      %p103 = scmp.eq.s32.totalorder %s20, 7
      %p104 = por %p102, %p103
      %p106 = scmp.ne.s32.totalorder %s91, %s105
      %p107 = scmp.eq.s32.totalorder %s20, 0
      %p108 = por %p106, %p107
      %s110 = sadd.s32 %s109, 1
      %p113 = scmp.eq.s32.totalorder %s14, 7
      %p114 = scmp.ne.s32.totalorder %s109, %s111
      %p115 = scmp.eq.s32.totalorder %s14, 0
      %p116 = por %p114, %p115
      %p117 = scmp.ne.s32.totalorder %s109, %s111
      %p118 = scmp.eq.s32.totalorder %s19, 7
      %p119 = por %p117, %p118
      %p120 = scmp.ne.s32.totalorder %s111, %s112
      %p121 = scmp.eq.s32.totalorder %s19, 0
      %p122 = por %p120, %p121
      %p123 = scmp.ne.s32.totalorder %s111, %s112
      %p124 = scmp.eq.s32.totalorder %s20, 7
      %p125 = por %p123, %p124
      %p127 = scmp.ne.s32.totalorder %s112, %s126
      %p128 = scmp.eq.s32.totalorder %s20, 0
      %p129 = por %p127, %p128
      %s130 = ssub.s32 %s21, %s33
      %p131 = scmp.eq.s32.totalorder %s130, 0
      %s133 = sadd.s32 %s132, 1
      %s134 = scalar_select %p131, %s132, %s133
      %p137 = pneg %p131
      %p138 = scmp.eq.s32.totalorder %s14, 7
      %p139 = por %p137, %p138
      %p140 = scmp.ne.s32.totalorder %s132, %s135
      %p141 = scmp.eq.s32.totalorder %s14, 0
      %p142 = por %p140, %p141
      %p143 = scmp.ne.s32.totalorder %s132, %s135
      %p144 = scmp.eq.s32.totalorder %s19, 7
      %p145 = por %p143, %p144
      %p146 = scmp.ne.s32.totalorder %s135, %s136
      %p147 = scmp.eq.s32.totalorder %s19, 0
      %p148 = por %p146, %p147
      %p149 = scmp.ne.s32.totalorder %s135, %s136
      %p150 = scmp.eq.s32.totalorder %s20, 7
      %p151 = por %p149, %p150
      %p153 = scmp.ne.s32.totalorder %s136, %s152
      %p154 = scmp.eq.s32.totalorder %s20, 0
      %p155 = por %p153, %p154
      %s156 = ssub.s32 %s21, %s33
      %p157 = scmp.eq.s32.totalorder %s156, 0
      %s159 = sadd.s32 %s158, 1
      %s160 = scalar_select %p157, %s158, %s159
      %p163 = pneg %p157
      %p164 = scmp.eq.s32.totalorder %s14, 7
      %p165 = por %p163, %p164
      %p166 = scmp.ne.s32.totalorder %s158, %s161
      %p167 = scmp.eq.s32.totalorder %s14, 0
      %p168 = por %p166, %p167
      %p169 = scmp.ne.s32.totalorder %s158, %s161
      %p170 = scmp.eq.s32.totalorder %s19, 7
      %p171 = por %p169, %p170
      %p172 = scmp.ne.s32.totalorder %s161, %s162
      %p173 = scmp.eq.s32.totalorder %s19, 0
      %p174 = por %p172, %p173
      %p175 = scmp.ne.s32.totalorder %s161, %s162
      %p176 = scmp.eq.s32.totalorder %s20, 7
      %p177 = por %p175, %p176
      %p179 = scmp.ne.s32.totalorder %s162, %s178
      %p180 = scmp.eq.s32.totalorder %s20, 0
      %p181 = por %p179, %p180
      %p182 = scmp.le.s32.totalorder 1, %s14
      %p183 = scmp.lt.s32.totalorder %s14, 9
      %p184 = pnand %p182, %p183
      %p185 = pneg %p184
      // Predicated region
      $region9: #{gcn_forward.9} parent=5 // pred_check
        _
      $region10: #{gcn_forward.9} parent=5 // pred_check_branch
        %187 = sbr.rel (%p184) target = $region12
      $region11: #{gcn_forward.9} parent=5 // pred_region
        %s188 = ssub.s32 %s14, 1
        // Predicated region
        $region13: #{gcn_forward.9} parent=11 // pred_check
          %p189 = pneg %p101
        $region14: #{gcn_forward.9} parent=11 // pred_check_branch
          %191 = sbr.rel (%p189) target = $region16
        $region15: #{gcn_forward.9} parent=11 // pred_region
          _
        $region16: #{gcn_forward.9} parent=11 // pred_fallthru
          _
        // Predicated region
        $region17: #{gcn_forward.9} parent=11 // pred_check
          %p192 = pneg %p122
        $region18: #{gcn_forward.9} parent=11 // pred_check_branch
          %194 = sbr.rel (%p192) target = $region20
        $region19: #{gcn_forward.9} parent=11 // pred_region
          _
        $region20: #{gcn_forward.9} parent=11 // pred_fallthru
          _
      $region12: #{gcn_forward.9} parent=5 // pred_fallthru
        _
      %p195 = scmp.lt.s32.totalorder %s14, 8
      // Predicated region
      $region21: #{gcn_forward.9} parent=5 // pred_check
        %p196 = pneg %p195
      $region22: #{gcn_forward.9} parent=5 // pred_check_branch
        %198 = sbr.rel (%p196) target = $region24
      $region23: #{gcn_forward.9} parent=5 // pred_region
        // Predicated region
        $region25: #{gcn_forward.9} parent=23 // pred_check
          %p199 = pneg %p48
        $region26: #{gcn_forward.9} parent=23 // pred_check_branch
          %201 = sbr.rel (%p199) target = $region28
        $region27: #{gcn_forward.9} parent=23 // pred_region
          %s202 = sand.u32 %s38, 1
          %s203 = sand.u32 %s38, 1
          %s204 = smul.addr %s203, 64
          %s205 = scalar_lea.vmem [#allocation3], %s204
          %s206 = smul.u32 4, %s21
          %s207 = smul.u32 2, %s22
          %s208 = smul.addr %s206, 4
          %s209 = sadd.s32 %s207, %s208
          %s210 = smul.addr %s209, 8
          %s211 = scalar_lea.vmem %s0, %s210
          // Predicated region
          $region29: #{gcn_forward.9} parent=27 // pred_check
            _
          $region30: #{gcn_forward.9} parent=27 // pred_check_branch
            %213 = sbr.rel (0) target = $region32
          $region31: #{gcn_forward.9} parent=27 // pred_region
            // Predicated region
            $region33: #{gcn_forward.9} parent=31 // pred_check
              _
            $region34: #{gcn_forward.9} parent=31 // pred_check_branch
              %215 = sbr.rel (0) target = $region36
            $region35: #{gcn_forward.9} parent=31 // pred_region
              loop: start=0, step=1, limit=1
              $region37: #{gcn_forward.9} parent=35 // loop_pre_header
                _
              $region38: #{gcn_forward.9} parent=35 // loop_header
                %s217 = sphi 0, %s221
                %p218 = scmp.ge.s32.totalorder %s217, 1
                %s222 = sphi %s211, %s211
                %s223 = sphi %s205, %s205
              $region39: #{gcn_forward.9} parent=35 // loop_header_branch
                %220 = sbr.rel (%p218) target = $region43
              $region40: #{gcn_forward.9} parent=35 // loop_body
                %v224 = vld [vmem:[%s222] sm:$0xff]
                %225 = vst [vmem:[%s223] sm:$0xff] %v224
                %v226 = vld [vmem:[%s222 + $0x8] sm:$0xff]
                %227 = vst [vmem:[%s223 + $0x8] sm:$0xff] %v226
                %v228 = vld [vmem:[%s222 + $0x20] sm:$0xff]
                %229 = vst [vmem:[%s223 + $0x10] sm:$0xff] %v228
                %v230 = vld [vmem:[%s222 + $0x28] sm:$0xff]
                %231 = vst [vmem:[%s223 + $0x18] sm:$0xff] %v230
                %v232 = vld [vmem:[%s222 + $0x40] sm:$0xff]
                %233 = vst [vmem:[%s223 + $0x20] sm:$0xff] %v232
                %v234 = vld [vmem:[%s222 + $0x48] sm:$0xff]
                %235 = vst [vmem:[%s223 + $0x28] sm:$0xff] %v234
                %v236 = vld [vmem:[%s222 + $0x60] sm:$0xff]
                %237 = vst [vmem:[%s223 + $0x30] sm:$0xff] %v236
                %v238 = vld [vmem:[%s222 + $0x68] sm:$0xff]
                %239 = vst [vmem:[%s223 + $0x38] sm:$0xff] %v238
              $region41: #{gcn_forward.9} parent=35 // loop_footer
                %s221 = sadd.s32 1, %s217
              $region42: #{gcn_forward.9} parent=35 // loop_footer_branch
                %216 = sbr.rel target = $region38
              $region43: #{gcn_forward.9} parent=35 // loop_exit
                _
            $region36: #{gcn_forward.9} parent=31 // pred_fallthru
              _
            // Predicated region
            $region44: #{gcn_forward.9} parent=31 // pred_check
              _
            $region45: #{gcn_forward.9} parent=31 // pred_check_branch
              %241 = sbr.rel target = $region47
            $region46: #{gcn_forward.9} parent=31 // pred_region
              _
            $region47: #{gcn_forward.9} parent=31 // pred_fallthru
              _
          $region32: #{gcn_forward.9} parent=27 // pred_fallthru
            _
          %242 = vnop
        $region28: #{gcn_forward.9} parent=23 // pred_fallthru
          _
        // Predicated region
        $region48: #{gcn_forward.9} parent=23 // pred_check
          %p243 = pneg %p74
        $region49: #{gcn_forward.9} parent=23 // pred_check_branch
          %245 = sbr.rel (%p243) target = $region51
        $region50: #{gcn_forward.9} parent=23 // pred_region
          %s246 = smul.u32 32, %s22
          %p247 = scmp.lt.s32.totalorder %s246, 63
          %s248 = scalar_select %p247, %s246, 63
          %s249 = smul.addr %s248, 4
          %s250 = scalar_lea.vmem %s1, %s249
          %s251 = smul.u32 32, %s22
        $region51: #{gcn_forward.9} parent=23 // pred_fallthru
          _
        // Predicated region
        $region52: #{gcn_forward.9} parent=23 // pred_check
          %p252 = pneg %p142
        $region53: #{gcn_forward.9} parent=23 // pred_check_branch
          %254 = sbr.rel (%p252) target = $region55
        $region54: #{gcn_forward.9} parent=23 // pred_region
          %s255 = smul.u32 16, %s21
          %p256 = scmp.lt.s32.totalorder %s255, 63
          %s257 = scalar_select %p256, %s255, 63
          %s258 = smul.addr %s257, 4
          %s259 = scalar_lea.vmem %s4, %s258
          %s260 = smul.u32 16, %s21
        $region55: #{gcn_forward.9} parent=23 // pred_fallthru
          _
      $region24: #{gcn_forward.9} parent=5 // pred_fallthru
        _
      %p261 = scmp.le.s32.totalorder 1, %s14
      %p262 = scmp.lt.s32.totalorder %s14, 9
      %p263 = pnand %p261, %p262
      %p264 = pneg %p263
      // Predicated region
      $region56: #{gcn_forward.9} parent=5 // pred_check
        _
      $region57: #{gcn_forward.9} parent=5 // pred_check_branch
        %266 = sbr.rel (%p263) target = $region59
      $region58: #{gcn_forward.9} parent=5 // pred_region
        %s267 = ssub.s32 %s14, 1
        %s268 = sand.u32 %s41, 1
        %s269 = sand.u32 %s41, 1
        %s270 = smul.addr %s269, 64
        %s271 = scalar_lea.vmem [#allocation3], %s270
        // Predicated region
        $region60: #{gcn_forward.9} parent=58 // pred_check
          %p272 = pneg %p54
        $region61: #{gcn_forward.9} parent=58 // pred_check_branch
          %274 = sbr.rel (%p272) target = $region63
        $region62: #{gcn_forward.9} parent=58 // pred_region
          _
        $region63: #{gcn_forward.9} parent=58 // pred_fallthru
          _
        %s275 = sand.u32 %s41, 1
        %s276 = sand.u32 %s41, 1
        %s277 = smul.addr %s276, 64
        %s278 = scalar_lea.vmem [#allocation3], %s277
        %p279 = pneg %p54
        %p280 = pneg %p51
        %s281 = smul.u32 32, %s24
        %p282 = scmp.lt.s32.totalorder %s281, 63
        %s283 = scalar_select %p282, %s281, 63
        %s284 = smul.addr %s283, 4
        %s285 = scalar_lea.vmem %s1, %s284
        %p286 = pneg %p80
        %p287 = pneg %p77
        %p288 = pneg %p101
        %p289 = pneg %p98
        %p290 = pneg %p122
        %p291 = pneg %p119
        %s292 = smul.u32 16, %s23
        %p293 = scmp.lt.s32.totalorder %s292, 63
        %s294 = scalar_select %p293, %s292, 63
        %s295 = smul.addr %s294, 4
        %s296 = scalar_lea.vmem %s4, %s295
        %p297 = pneg %p148
        %p298 = pneg %p145
        %p299 = pneg %p174
        %p300 = pneg %p171
        %s301 = sand.u32 %s161, 1
        %s302 = scalar_lea.sflag [#allocation5], %s301
        %s303 = sand.u32 %s161, 1
        %s304 = smul.addr %s303, 128
        %s305 = scalar_lea.vmem [#allocation4], %s304
        %s306 = smul.u32 4, %s23
        %s307 = smul.u32 2, %s24
        %s308 = smul.u32 32, %s24
        %p309 = scmp.lt.s32.totalorder %s308, 63
        %s310 = scalar_select %p309, %s308, 63
        %s311 = smul.addr %s310, 4
        %s312 = scalar_lea.vmem %s1, %s311
        %s313 = smul.u32 32, %s24
        %s314 = smul.u32 16, %s23
        %p315 = scmp.lt.s32.totalorder %s314, 63
        %s316 = scalar_select %p315, %s314, 63
        %s317 = smul.addr %s316, 4
        %s318 = scalar_lea.vmem %s4, %s317
        %s319 = smul.u32 16, %s23
        %s320 = smul.u32 16, %s23
        %p322 = scmp.eq.s32.totalorder %s24, 0
        // Predicated region
        $region64: #{gcn_forward.9} parent=58 // pred_check
          %p323 = pneg %p322
        $region65: #{gcn_forward.9} parent=58 // pred_check_branch
          %325 = sbr.rel (%p323) target = $region67
        $region66: #{gcn_forward.9} parent=58 // pred_region
          %326 = vst [vmem:[#allocation2] sm:$0xff] 0.0
          %327 = vst [vmem:[#allocation2 + $0x8] sm:$0xff] 0.0
          %328 = vst [vmem:[#allocation2 + $0x10] sm:$0xff] 0.0
          %329 = vst [vmem:[#allocation2 + $0x18] sm:$0xff] 0.0
          %330 = vst [vmem:[#allocation2 + $0x20] sm:$0xff] 0.0
          %331 = vst [vmem:[#allocation2 + $0x28] sm:$0xff] 0.0
          %332 = vst [vmem:[#allocation2 + $0x30] sm:$0xff] 0.0
          %333 = vst [vmem:[#allocation2 + $0x38] sm:$0xff] 0.0
          %334 = vst [vmem:[#allocation2 + $0x40] sm:$0xff] 0.0
          %335 = vst [vmem:[#allocation2 + $0x48] sm:$0xff] 0.0
          %336 = vst [vmem:[#allocation2 + $0x50] sm:$0xff] 0.0
          %337 = vst [vmem:[#allocation2 + $0x58] sm:$0xff] 0.0
          %338 = vst [vmem:[#allocation2 + $0x60] sm:$0xff] 0.0
          %339 = vst [vmem:[#allocation2 + $0x68] sm:$0xff] 0.0
          %340 = vst [vmem:[#allocation2 + $0x70] sm:$0xff] 0.0
          %341 = vst [vmem:[#allocation2 + $0x78] sm:$0xff] 0.0
        $region67: #{gcn_forward.9} parent=58 // pred_fallthru
          _
        %v342 = vld [vmem:[%s312] sm:$0xf]
        %v343 = vld [vmem:[%s312 + $0x4] sm:$0xf]
        %v344 = vld [vmem:[%s312 + $0x8] sm:$0xf]
        %v345 = vld [vmem:[%s312 + $0xc] sm:$0xf]
        %v346 = vld [vmem:[%s312 + $0x10] sm:$0xf]
        %v347 = vld [vmem:[%s312 + $0x14] sm:$0xf]
        %v348 = vld [vmem:[%s312 + $0x18] sm:$0xf]
        %v349 = vld [vmem:[%s312 + $0x1c] sm:$0xf]
        %v350 = vld [vmem:[%s312 + $0x20] sm:$0xf]
        %v351 = vld [vmem:[%s312 + $0x24] sm:$0xf]
        %v352 = vld [vmem:[%s312 + $0x28] sm:$0xf]
        %v353 = vld [vmem:[%s312 + $0x2c] sm:$0xf]
        %v354 = vld [vmem:[%s312 + $0x30] sm:$0xf]
        %v355 = vld [vmem:[%s312 + $0x34] sm:$0xf]
        %v356 = vld [vmem:[%s312 + $0x38] sm:$0xf]
        %v357 = vld [vmem:[%s312 + $0x3c] sm:$0xf]
        %v358 = vld [vmem:[%s312 + $0x40] sm:$0xf]
        %v359 = vld [vmem:[%s312 + $0x44] sm:$0xf]
        %v360 = vld [vmem:[%s312 + $0x48] sm:$0xf]
        %v361 = vld [vmem:[%s312 + $0x4c] sm:$0xf]
        %v362 = vld [vmem:[%s312 + $0x50] sm:$0xf]
        %v363 = vld [vmem:[%s312 + $0x54] sm:$0xf]
        %v364 = vld [vmem:[%s312 + $0x58] sm:$0xf]
        %v365 = vld [vmem:[%s312 + $0x5c] sm:$0xf]
        %v366 = vld [vmem:[%s312 + $0x60] sm:$0xf]
        %v367 = vld [vmem:[%s312 + $0x64] sm:$0xf]
        %v368 = vld [vmem:[%s312 + $0x68] sm:$0xf]
        %v369 = vld [vmem:[%s312 + $0x6c] sm:$0xf]
        %v370 = vld [vmem:[%s312 + $0x70] sm:$0xf]
        %v371 = vld [vmem:[%s312 + $0x74] sm:$0xf]
        %v372 = vld [vmem:[%s312 + $0x78] sm:$0xf]
        %v373 = vld [vmem:[%s312 + $0x7c] sm:$0xf]
        %v374 = vld [vmem:[#allocation2] sm:$0xff]
        %v375 = vld [vmem:[#allocation2 + $0x8] sm:$0xff]
        %v376 = vld [vmem:[#allocation2 + $0x10] sm:$0xff]
        %v377 = vld [vmem:[#allocation2 + $0x18] sm:$0xff]
        %v378 = vld [vmem:[#allocation2 + $0x20] sm:$0xff]
        %v379 = vld [vmem:[#allocation2 + $0x28] sm:$0xff]
        %v380 = vld [vmem:[#allocation2 + $0x30] sm:$0xff]
        %v381 = vld [vmem:[#allocation2 + $0x38] sm:$0xff]
        %v382 = vld [vmem:[#allocation2 + $0x40] sm:$0xff]
        %v383 = vld [vmem:[#allocation2 + $0x48] sm:$0xff]
        %v384 = vld [vmem:[#allocation2 + $0x50] sm:$0xff]
        %v385 = vld [vmem:[#allocation2 + $0x58] sm:$0xff]
        %v386 = vld [vmem:[#allocation2 + $0x60] sm:$0xff]
        %v387 = vld [vmem:[#allocation2 + $0x68] sm:$0xff]
        %v388 = vld [vmem:[#allocation2 + $0x70] sm:$0xff]
        %v389 = vld [vmem:[#allocation2 + $0x78] sm:$0xff]
        %v390 = vld [vmem:[%s271] sm:$0xff]
        %v391 = vld [vmem:[%s271 + $0x8] sm:$0xff]
        %v392 = vld [vmem:[%s271 + $0x10] sm:$0xff]
        %v393 = vld [vmem:[%s271 + $0x18] sm:$0xff]
        %v394 = vld [vmem:[%s271 + $0x20] sm:$0xff]
        %v395 = vld [vmem:[%s271 + $0x28] sm:$0xff]
        %v396 = vld [vmem:[%s271 + $0x30] sm:$0xff]
        %v397 = vld [vmem:[%s271 + $0x38] sm:$0xff]
        %v398 = vunpack.c.l.s8.bf16 %v390
        %v399 = vunpack.c.l.s8.bf16 %v391
        %v400 = vunpack.c.h.s8.bf16 %v390
        %v401 = vunpack.c.h.s8.bf16 %v391
        %v402 = vunpack.c.l.s8.bf16 %v392
        %v403 = vunpack.c.l.s8.bf16 %v393
        %v404 = vunpack.c.h.s8.bf16 %v392
        %v405 = vunpack.c.h.s8.bf16 %v393
        %v406 = vunpack.c.l.s8.bf16 %v394
        %v407 = vunpack.c.l.s8.bf16 %v395
        %v408 = vunpack.c.h.s8.bf16 %v394
        %v409 = vunpack.c.h.s8.bf16 %v395
        %v410 = vunpack.c.l.s8.bf16 %v396
        %v411 = vunpack.c.l.s8.bf16 %v397
        %v412 = vunpack.c.h.s8.bf16 %v396
        %v413 = vunpack.c.h.s8.bf16 %v397
        %v446 = vunpack.c.l.b16 %v342
        %v447 = vunpack.c.l.b16 %v343
        %v448 = vunpack.c.l.b16 %v344
        %v449 = vunpack.c.l.b16 %v345
        %v450 = vunpack.c.l.b16 %v346
        %v451 = vunpack.c.l.b16 %v347
        %v452 = vunpack.c.l.b16 %v348
        %v453 = vunpack.c.l.b16 %v349
        %v454 = vunpack.c.l.b16 %v350
        %v455 = vunpack.c.l.b16 %v351
        %v456 = vunpack.c.l.b16 %v352
        %v457 = vunpack.c.l.b16 %v353
        %v458 = vunpack.c.l.b16 %v354
        %v459 = vunpack.c.l.b16 %v355
        %v460 = vunpack.c.l.b16 %v356
        %v461 = vunpack.c.l.b16 %v357
        %v462 = vunpack.c.l.b16 %v358
        %v463 = vunpack.c.l.b16 %v359
        %v464 = vunpack.c.l.b16 %v360
        %v465 = vunpack.c.l.b16 %v361
        %v466 = vunpack.c.l.b16 %v362
        %v467 = vunpack.c.l.b16 %v363
        %v468 = vunpack.c.l.b16 %v364
        %v469 = vunpack.c.l.b16 %v365
        %v470 = vunpack.c.l.b16 %v366
        %v471 = vunpack.c.l.b16 %v367
        %v472 = vunpack.c.l.b16 %v368
        %v473 = vunpack.c.l.b16 %v369
        %v474 = vunpack.c.l.b16 %v370
        %v475 = vunpack.c.l.b16 %v371
        %v476 = vunpack.c.l.b16 %v372
        %v477 = vunpack.c.l.b16 %v373
        %v478 = vpack.c.b16 %v447, %v446
        %v479 = vpack.c.b16 %v449, %v448
        %v480 = vpack.c.b16 %v451, %v450
        %v481 = vpack.c.b16 %v453, %v452
        %v482 = vpack.c.b16 %v455, %v454
        %v483 = vpack.c.b16 %v457, %v456
        %v484 = vpack.c.b16 %v459, %v458
        %v485 = vpack.c.b16 %v461, %v460
        %v486 = vpack.c.b16 %v463, %v462
        %v487 = vpack.c.b16 %v465, %v464
        %v488 = vpack.c.b16 %v467, %v466
        %v489 = vpack.c.b16 %v469, %v468
        %v490 = vpack.c.b16 %v471, %v470
        %v491 = vpack.c.b16 %v473, %v472
        %v492 = vpack.c.b16 %v475, %v474
        %v493 = vpack.c.b16 %v477, %v476
        %510 = vmatprep.subr.bf16.mxu0 0
        %511 = vmatpush1.bf16.msra.mxu0 %v485
        %512 = vmatprep.subr.bf16.mxu0 0
        %513 = vmatpush1.bf16.msra.mxu0 %v484
        %514 = vmatprep.subr.bf16.mxu0 0
        %515 = vmatpush1.bf16.msra.mxu0 %v483
        %516 = vmatprep.subr.bf16.mxu0 0
        %517 = vmatpush1.bf16.msra.mxu0 %v482
        %518 = vmatprep.subr.bf16.mxu0 0
        %519 = vmatpush1.bf16.msra.mxu0 %v481
        %520 = vmatprep.subr.bf16.mxu0 0
        %521 = vmatpush1.bf16.msra.mxu0 %v480
        %522 = vmatprep.subr.bf16.mxu0 0
        %523 = vmatpush1.bf16.msra.mxu0 %v479
        %524 = vmatprep.subr.bf16.mxu0 0
        %525 = vmatpush1.bf16.msra.mxu0 %v478
        %526 = vmatprep.subr.bf16.mxu0 0
        %527 = vmatpush2.bf16.msra.mxu0 %v493
        %528 = vmatprep.subr.bf16.mxu0 0
        %529 = vmatpush2.bf16.msra.mxu0 %v492
        %530 = vmatprep.subr.bf16.mxu0 0
        %531 = vmatpush2.bf16.msra.mxu0 %v491
        %532 = vmatprep.subr.bf16.mxu0 0
        %533 = vmatpush2.bf16.msra.mxu0 %v490
        %534 = vmatprep.subr.bf16.mxu0 0
        %535 = vmatpush2.bf16.msra.mxu0 %v489
        %536 = vmatprep.subr.bf16.mxu0 0
        %537 = vmatpush2.bf16.msra.mxu0 %v488
        %538 = vmatprep.subr.bf16.mxu0 0
        %539 = vmatpush2.bf16.msra.mxu0 %v487
        %540 = vmatprep.subr.bf16.mxu0 0
        %541 = vmatpush2.bf16.msra.mxu0 %v486
        %542 = vmatprep.mubr.bf16.mxu0 %v399
        %543 = vmatmul.mubr.bf16.gmra.mxu0 %v398
        %v544 = vpop.f32.mrf.mxu0
        %v545 = vadd.f32 0.0, %v544
        %v546 = vpop.f32.mrf.mxu0
        %v547 = vpop.f32.mrf.mxu0
        %v548 = vadd.f32 0.0, %v547
        %v549 = vpop.f32.mrf.mxu0
        %550 = vmatprep.mubr.bf16.mxu0 %v401
        %551 = vmatmul.mubr.bf16.gmra.mxu0 %v400
        %v552 = vpop.f32.mrf.mxu0
        %v553 = vadd.f32 0.0, %v552
        %v554 = vpop.f32.mrf.mxu0
        %v555 = vpop.f32.mrf.mxu0
        %v556 = vadd.f32 0.0, %v555
        %v557 = vpop.f32.mrf.mxu0
        %558 = vmatprep.mubr.bf16.mxu0 %v403
        %559 = vmatmul.mubr.bf16.gmra.mxu0 %v402
        %v560 = vpop.f32.mrf.mxu0
        %v561 = vadd.f32 0.0, %v560
        %v562 = vpop.f32.mrf.mxu0
        %v563 = vpop.f32.mrf.mxu0
        %v564 = vadd.f32 0.0, %v563
        %v565 = vpop.f32.mrf.mxu0
        %566 = vmatprep.mubr.bf16.mxu0 %v405
        %567 = vmatmul.mubr.bf16.gmra.mxu0 %v404
        %v568 = vpop.f32.mrf.mxu0
        %v569 = vadd.f32 0.0, %v568
        %v570 = vpop.f32.mrf.mxu0
        %v571 = vpop.f32.mrf.mxu0
        %v572 = vadd.f32 0.0, %v571
        %v573 = vpop.f32.mrf.mxu0
        %574 = vmatprep.mubr.bf16.mxu0 %v407
        %575 = vmatmul.mubr.bf16.gmra.mxu0 %v406
        %v576 = vpop.f32.mrf.mxu0
        %v577 = vadd.f32 0.0, %v576
        %v578 = vpop.f32.mrf.mxu0
        %v579 = vpop.f32.mrf.mxu0
        %v580 = vadd.f32 0.0, %v579
        %v581 = vpop.f32.mrf.mxu0
        %582 = vmatprep.mubr.bf16.mxu0 %v409
        %583 = vmatmul.mubr.bf16.gmra.mxu0 %v408
        %v584 = vpop.f32.mrf.mxu0
        %v585 = vadd.f32 0.0, %v584
        %v586 = vpop.f32.mrf.mxu0
        %v587 = vpop.f32.mrf.mxu0
        %v588 = vadd.f32 0.0, %v587
        %v589 = vpop.f32.mrf.mxu0
        %590 = vmatprep.mubr.bf16.mxu0 %v411
        %591 = vmatmul.mubr.bf16.gmra.mxu0 %v410
        %v592 = vpop.f32.mrf.mxu0
        %v593 = vadd.f32 0.0, %v592
        %v594 = vpop.f32.mrf.mxu0
        %v595 = vpop.f32.mrf.mxu0
        %v596 = vadd.f32 0.0, %v595
        %v597 = vpop.f32.mrf.mxu0
        %598 = vmatprep.mubr.bf16.mxu0 %v413
        %599 = vmatmul.mubr.bf16.gmra.mxu0 %v412
        %v600 = vpop.f32.mrf.mxu0
        %v601 = vadd.f32 0.0, %v600
        %v602 = vpop.f32.mrf.mxu0
        %v603 = vpop.f32.mrf.mxu0
        %v604 = vadd.f32 0.0, %v603
        %v605 = vpop.f32.mrf.mxu0
        %606 = vdwg.mxu0
        %v607 = vadd.f32 %v374, %v545
        %v608 = vadd.f32 %v375, %v548
        %v609 = vadd.f32 %v376, %v553
        %v610 = vadd.f32 %v377, %v556
        %v611 = vadd.f32 %v378, %v561
        %v612 = vadd.f32 %v379, %v564
        %v613 = vadd.f32 %v380, %v569
        %v614 = vadd.f32 %v381, %v572
        %v615 = vadd.f32 %v382, %v577
        %v616 = vadd.f32 %v383, %v580
        %v617 = vadd.f32 %v384, %v585
        %v618 = vadd.f32 %v385, %v588
        %v619 = vadd.f32 %v386, %v593
        %v620 = vadd.f32 %v387, %v596
        %v621 = vadd.f32 %v388, %v601
        %v622 = vadd.f32 %v389, %v604
        %623 = vst [vmem:[#allocation2] sm:$0xff] %v607
        %624 = vst [vmem:[#allocation2 + $0x8] sm:$0xff] %v608
        %625 = vst [vmem:[#allocation2 + $0x10] sm:$0xff] %v609
        %626 = vst [vmem:[#allocation2 + $0x18] sm:$0xff] %v610
        %627 = vst [vmem:[#allocation2 + $0x20] sm:$0xff] %v611
        %628 = vst [vmem:[#allocation2 + $0x28] sm:$0xff] %v612
        %629 = vst [vmem:[#allocation2 + $0x30] sm:$0xff] %v613
        %630 = vst [vmem:[#allocation2 + $0x38] sm:$0xff] %v614
        %631 = vst [vmem:[#allocation2 + $0x40] sm:$0xff] %v615
        %632 = vst [vmem:[#allocation2 + $0x48] sm:$0xff] %v616
        %633 = vst [vmem:[#allocation2 + $0x50] sm:$0xff] %v617
        %634 = vst [vmem:[#allocation2 + $0x58] sm:$0xff] %v618
        %635 = vst [vmem:[#allocation2 + $0x60] sm:$0xff] %v619
        %636 = vst [vmem:[#allocation2 + $0x68] sm:$0xff] %v620
        %637 = vst [vmem:[#allocation2 + $0x70] sm:$0xff] %v621
        %638 = vst [vmem:[#allocation2 + $0x78] sm:$0xff] %v622
        %p639 = scmp.eq.s32.totalorder %s24, 1
        // Predicated region
        $region68: #{gcn_forward.9} parent=58 // pred_check
          %p640 = pneg %p639
        $region69: #{gcn_forward.9} parent=58 // pred_check_branch
          %642 = sbr.rel (%p640) target = $region71
        $region70: #{gcn_forward.9} parent=58 // pred_region
          %v643 = vld [vmem:[#allocation2] sm:$0xff]
          %v644 = vld [vmem:[#allocation2 + $0x8] sm:$0xff]
          %v645 = vld [vmem:[#allocation2 + $0x10] sm:$0xff]
          %v646 = vld [vmem:[#allocation2 + $0x18] sm:$0xff]
          %v647 = vld [vmem:[#allocation2 + $0x20] sm:$0xff]
          %v648 = vld [vmem:[#allocation2 + $0x28] sm:$0xff]
          %v649 = vld [vmem:[#allocation2 + $0x30] sm:$0xff]
          %v650 = vld [vmem:[#allocation2 + $0x38] sm:$0xff]
          %v651 = vld [vmem:[#allocation2 + $0x40] sm:$0xff]
          %v652 = vld [vmem:[#allocation2 + $0x48] sm:$0xff]
          %v653 = vld [vmem:[#allocation2 + $0x50] sm:$0xff]
          %v654 = vld [vmem:[#allocation2 + $0x58] sm:$0xff]
          %v655 = vld [vmem:[#allocation2 + $0x60] sm:$0xff]
          %v656 = vld [vmem:[#allocation2 + $0x68] sm:$0xff]
          %v657 = vld [vmem:[#allocation2 + $0x70] sm:$0xff]
          %v658 = vld [vmem:[#allocation2 + $0x78] sm:$0xff]
          %vm659 = vcmp.ge.f32.partialorder %v643, 0.0
          %vm660 = vcmp.ge.f32.partialorder %v644, 0.0
          %vm661 = vcmp.ge.f32.partialorder %v645, 0.0
          %vm662 = vcmp.ge.f32.partialorder %v646, 0.0
          %vm663 = vcmp.ge.f32.partialorder %v647, 0.0
          %vm664 = vcmp.ge.f32.partialorder %v648, 0.0
          %vm665 = vcmp.ge.f32.partialorder %v649, 0.0
          %vm666 = vcmp.ge.f32.partialorder %v650, 0.0
          %vm667 = vcmp.ge.f32.partialorder %v651, 0.0
          %vm668 = vcmp.ge.f32.partialorder %v652, 0.0
          %vm669 = vcmp.ge.f32.partialorder %v653, 0.0
          %vm670 = vcmp.ge.f32.partialorder %v654, 0.0
          %vm671 = vcmp.ge.f32.partialorder %v655, 0.0
          %vm672 = vcmp.ge.f32.partialorder %v656, 0.0
          %vm673 = vcmp.ge.f32.partialorder %v657, 0.0
          %vm674 = vcmp.ge.f32.partialorder %v658, 0.0
          %v675 = vmul.f32 %v643, 0.01
          %v676 = vmul.f32 %v644, 0.01
          %v677 = vmul.f32 %v645, 0.01
          %v678 = vmul.f32 %v646, 0.01
          %v679 = vmul.f32 %v647, 0.01
          %v680 = vmul.f32 %v648, 0.01
          %v681 = vmul.f32 %v649, 0.01
          %v682 = vmul.f32 %v650, 0.01
          %v683 = vmul.f32 %v651, 0.01
          %v684 = vmul.f32 %v652, 0.01
          %v685 = vmul.f32 %v653, 0.01
          %v686 = vmul.f32 %v654, 0.01
          %v687 = vmul.f32 %v655, 0.01
          %v688 = vmul.f32 %v656, 0.01
          %v689 = vmul.f32 %v657, 0.01
          %v690 = vmul.f32 %v658, 0.01
          %v691 = vsel %vm659, %v643, %v675
          %v692 = vsel %vm660, %v644, %v676
          %v693 = vsel %vm661, %v645, %v677
          %v694 = vsel %vm662, %v646, %v678
          %v695 = vsel %vm663, %v647, %v679
          %v696 = vsel %vm664, %v648, %v680
          %v697 = vsel %vm665, %v649, %v681
          %v698 = vsel %vm666, %v650, %v682
          %v699 = vsel %vm667, %v651, %v683
          %v700 = vsel %vm668, %v652, %v684
          %v701 = vsel %vm669, %v653, %v685
          %v702 = vsel %vm670, %v654, %v686
          %v703 = vsel %vm671, %v655, %v687
          %v704 = vsel %vm672, %v656, %v688
          %v705 = vsel %vm673, %v657, %v689
          %v706 = vsel %vm674, %v658, %v690
          %v707 = vpack.c.bf16 %v692, %v691
          %v708 = vpack.c.bf16 %v694, %v693
          %v709 = vpack.c.bf16 %v696, %v695
          %v710 = vpack.c.bf16 %v698, %v697
          %v711 = vpack.c.bf16 %v700, %v699
          %v712 = vpack.c.bf16 %v702, %v701
          %v713 = vpack.c.bf16 %v704, %v703
          %v714 = vpack.c.bf16 %v706, %v705
          %v715 = vld [vmem:[%s2] sm:$0xf]
          %v716 = vld [vmem:[%s2 + $0x4] sm:$0xf]
          %v717 = vld [vmem:[%s2 + $0x8] sm:$0xf]
          %v718 = vld [vmem:[%s2 + $0xc] sm:$0xf]
          %v719 = vld [vmem:[%s2 + $0x10] sm:$0xf]
          %v720 = vld [vmem:[%s2 + $0x14] sm:$0xf]
          %v721 = vld [vmem:[%s2 + $0x18] sm:$0xf]
          %v722 = vld [vmem:[%s2 + $0x1c] sm:$0xf]
          %v723 = vld [vmem:[%s2 + $0x20] sm:$0xf]
          %v724 = vld [vmem:[%s2 + $0x24] sm:$0xf]
          %v725 = vld [vmem:[%s2 + $0x28] sm:$0xf]
          %v726 = vld [vmem:[%s2 + $0x2c] sm:$0xf]
          %v727 = vld [vmem:[%s2 + $0x30] sm:$0xf]
          %v728 = vld [vmem:[%s2 + $0x34] sm:$0xf]
          %v729 = vld [vmem:[%s2 + $0x38] sm:$0xf]
          %v730 = vld [vmem:[%s2 + $0x3c] sm:$0xf]
          %v731 = vld [vmem:[%s3] sm:$0x1]
          %v733 = vlaneseq
          %v734 = vshrl.u32 %v733, 7
          %v735 = vsub.s32 0, %v734
          %v736 = vrot.slane %v731, %v735
          %v754 = vunpack.c.l.b16 %v715
          %v755 = vunpack.c.l.b16 %v716
          %v756 = vunpack.c.l.b16 %v717
          %v757 = vunpack.c.l.b16 %v718
          %v758 = vunpack.c.l.b16 %v719
          %v759 = vunpack.c.l.b16 %v720
          %v760 = vunpack.c.l.b16 %v721
          %v761 = vunpack.c.l.b16 %v722
          %v762 = vunpack.c.l.b16 %v723
          %v763 = vunpack.c.l.b16 %v724
          %v764 = vunpack.c.l.b16 %v725
          %v765 = vunpack.c.l.b16 %v726
          %v766 = vunpack.c.l.b16 %v727
          %v767 = vunpack.c.l.b16 %v728
          %v768 = vunpack.c.l.b16 %v729
          %v769 = vunpack.c.l.b16 %v730
          %v770 = vpack.c.b16 %v755, %v754
          %v771 = vpack.c.b16 %v757, %v756
          %v772 = vpack.c.b16 %v759, %v758
          %v773 = vpack.c.b16 %v761, %v760
          %v774 = vpack.c.b16 %v763, %v762
          %v775 = vpack.c.b16 %v765, %v764
          %v776 = vpack.c.b16 %v767, %v766
          %v777 = vpack.c.b16 %v769, %v768
          %786 = vmatprep.subr.bf16.mxu0 0
          %787 = vmatpush1.bf16.msra.mxu0 %v777
          %788 = vmatprep.subr.bf16.mxu0 0
          %789 = vmatpush1.bf16.msra.mxu0 %v776
          %790 = vmatprep.subr.bf16.mxu0 0
          %791 = vmatpush1.bf16.msra.mxu0 %v775
          %792 = vmatprep.subr.bf16.mxu0 0
          %793 = vmatpush1.bf16.msra.mxu0 %v774
          %794 = vmatprep.subr.bf16.mxu0 0
          %795 = vmatpush1.bf16.msra.mxu0 %v773
          %796 = vmatprep.subr.bf16.mxu0 0
          %797 = vmatpush1.bf16.msra.mxu0 %v772
          %798 = vmatprep.subr.bf16.mxu0 0
          %799 = vmatpush1.bf16.msra.mxu0 %v771
          %800 = vmatprep.subr.bf16.mxu0 0
          %801 = vmatpush1.bf16.msra.mxu0 %v770
          %802 = vmatprep.subr.bf16.mxu0 0
          %803 = vmatpush2.bf16.msra.mxu0 0
          %804 = vmatprep.subr.bf16.mxu0 0
          %805 = vmatpush2.bf16.msra.mxu0 0
          %806 = vmatprep.subr.bf16.mxu0 0
          %807 = vmatpush2.bf16.msra.mxu0 0
          %808 = vmatprep.subr.bf16.mxu0 0
          %809 = vmatpush2.bf16.msra.mxu0 0
          %810 = vmatprep.subr.bf16.mxu0 0
          %811 = vmatpush2.bf16.msra.mxu0 0
          %812 = vmatprep.subr.bf16.mxu0 0
          %813 = vmatpush2.bf16.msra.mxu0 0
          %814 = vmatprep.subr.bf16.mxu0 0
          %815 = vmatpush2.bf16.msra.mxu0 0
          %816 = vmatprep.subr.bf16.mxu0 0
          %817 = vmatpush2.bf16.msra.mxu0 0
          %818 = vmatprep.mubr.bf16.mxu0 0
          %819 = vmatmul.mubr.bf16.gmra.mxu0 %v707
          %v820 = vpop.f32.mrf.mxu0
          %v821 = vadd.f32 %v736, %v820
          %v822 = vpop.f32.mrf.mxu0
          %v823 = vpop.f32.mrf.mxu0
          %v824 = vadd.f32 %v736, %v823
          %v825 = vpop.f32.mrf.mxu0
          %826 = vmatprep.mubr.bf16.mxu0 0
          %827 = vmatmul.mubr.bf16.gmra.mxu0 %v708
          %v828 = vpop.f32.mrf.mxu0
          %v829 = vadd.f32 %v736, %v828
          %v830 = vpop.f32.mrf.mxu0
          %v831 = vpop.f32.mrf.mxu0
          %v832 = vadd.f32 %v736, %v831
          %v833 = vpop.f32.mrf.mxu0
          %834 = vmatprep.mubr.bf16.mxu0 0
          %835 = vmatmul.mubr.bf16.gmra.mxu0 %v709
          %v836 = vpop.f32.mrf.mxu0
          %v837 = vadd.f32 %v736, %v836
          %v838 = vpop.f32.mrf.mxu0
          %v839 = vpop.f32.mrf.mxu0
          %v840 = vadd.f32 %v736, %v839
          %v841 = vpop.f32.mrf.mxu0
          %842 = vmatprep.mubr.bf16.mxu0 0
          %843 = vmatmul.mubr.bf16.gmra.mxu0 %v710
          %v844 = vpop.f32.mrf.mxu0
          %v845 = vadd.f32 %v736, %v844
          %v846 = vpop.f32.mrf.mxu0
          %v847 = vpop.f32.mrf.mxu0
          %v848 = vadd.f32 %v736, %v847
          %v849 = vpop.f32.mrf.mxu0
          %850 = vmatprep.mubr.bf16.mxu0 0
          %851 = vmatmul.mubr.bf16.gmra.mxu0 %v711
          %v852 = vpop.f32.mrf.mxu0
          %v853 = vadd.f32 %v736, %v852
          %v854 = vpop.f32.mrf.mxu0
          %v855 = vpop.f32.mrf.mxu0
          %v856 = vadd.f32 %v736, %v855
          %v857 = vpop.f32.mrf.mxu0
          %858 = vmatprep.mubr.bf16.mxu0 0
          %859 = vmatmul.mubr.bf16.gmra.mxu0 %v712
          %v860 = vpop.f32.mrf.mxu0
          %v861 = vadd.f32 %v736, %v860
          %v862 = vpop.f32.mrf.mxu0
          %v863 = vpop.f32.mrf.mxu0
          %v864 = vadd.f32 %v736, %v863
          %v865 = vpop.f32.mrf.mxu0
          %866 = vmatprep.mubr.bf16.mxu0 0
          %867 = vmatmul.mubr.bf16.gmra.mxu0 %v713
          %v868 = vpop.f32.mrf.mxu0
          %v869 = vadd.f32 %v736, %v868
          %v870 = vpop.f32.mrf.mxu0
          %v871 = vpop.f32.mrf.mxu0
          %v872 = vadd.f32 %v736, %v871
          %v873 = vpop.f32.mrf.mxu0
          %874 = vmatprep.mubr.bf16.mxu0 0
          %875 = vmatmul.mubr.bf16.gmra.mxu0 %v714
          %v876 = vpop.f32.mrf.mxu0
          %v877 = vadd.f32 %v736, %v876
          %v878 = vpop.f32.mrf.mxu0
          %v879 = vpop.f32.mrf.mxu0
          %v880 = vadd.f32 %v736, %v879
          %v881 = vpop.f32.mrf.mxu0
          %882 = vdwg.mxu0
          %v883 = vld [vmem:[%s318] sm:$0xf]
          %v884 = vld [vmem:[%s318 + $0x4] sm:$0xf]
          %v885 = vld [vmem:[%s318 + $0x8] sm:$0xf]
          %v886 = vld [vmem:[%s318 + $0xc] sm:$0xf]
          %v887 = vld [vmem:[%s318 + $0x10] sm:$0xf]
          %v888 = vld [vmem:[%s318 + $0x14] sm:$0xf]
          %v889 = vld [vmem:[%s318 + $0x18] sm:$0xf]
          %v890 = vld [vmem:[%s318 + $0x1c] sm:$0xf]
          %v891 = vld [vmem:[%s318 + $0x20] sm:$0xf]
          %v892 = vld [vmem:[%s318 + $0x24] sm:$0xf]
          %v893 = vld [vmem:[%s318 + $0x28] sm:$0xf]
          %v894 = vld [vmem:[%s318 + $0x2c] sm:$0xf]
          %v895 = vld [vmem:[%s318 + $0x30] sm:$0xf]
          %v896 = vld [vmem:[%s318 + $0x34] sm:$0xf]
          %v897 = vld [vmem:[%s318 + $0x38] sm:$0xf]
          %v898 = vld [vmem:[%s318 + $0x3c] sm:$0xf]
          %v899 = vunpack.c.l.bf16 %v883
          %v900 = vunpack.c.l.bf16 %v884
          %v901 = vunpack.c.l.bf16 %v885
          %v902 = vunpack.c.l.bf16 %v886
          %v903 = vunpack.c.l.bf16 %v887
          %v904 = vunpack.c.l.bf16 %v888
          %v905 = vunpack.c.l.bf16 %v889
          %v906 = vunpack.c.l.bf16 %v890
          %v907 = vunpack.c.l.bf16 %v891
          %v908 = vunpack.c.l.bf16 %v892
          %v909 = vunpack.c.l.bf16 %v893
          %v910 = vunpack.c.l.bf16 %v894
          %v911 = vunpack.c.l.bf16 %v895
          %v912 = vunpack.c.l.bf16 %v896
          %v913 = vunpack.c.l.bf16 %v897
          %v914 = vunpack.c.l.bf16 %v898
          %v915 = vadd.f32 %v821, %v899
          %v916 = vadd.f32 %v824, %v900
          %v917 = vadd.f32 %v829, %v901
          %v918 = vadd.f32 %v832, %v902
          %v919 = vadd.f32 %v837, %v903
          %v920 = vadd.f32 %v840, %v904
          %v921 = vadd.f32 %v845, %v905
          %v922 = vadd.f32 %v848, %v906
          %v923 = vadd.f32 %v853, %v907
          %v924 = vadd.f32 %v856, %v908
          %v925 = vadd.f32 %v861, %v909
          %v926 = vadd.f32 %v864, %v910
          %v927 = vadd.f32 %v869, %v911
          %v928 = vadd.f32 %v872, %v912
          %v929 = vadd.f32 %v877, %v913
          %v930 = vadd.f32 %v880, %v914
          %vm931 = vcmp.ge.f32.partialorder %v915, 0.0
          %vm932 = vcmp.ge.f32.partialorder %v916, 0.0
          %vm933 = vcmp.ge.f32.partialorder %v917, 0.0
          %vm934 = vcmp.ge.f32.partialorder %v918, 0.0
          %vm935 = vcmp.ge.f32.partialorder %v919, 0.0
          %vm936 = vcmp.ge.f32.partialorder %v920, 0.0
          %vm937 = vcmp.ge.f32.partialorder %v921, 0.0
          %vm938 = vcmp.ge.f32.partialorder %v922, 0.0
          %vm939 = vcmp.ge.f32.partialorder %v923, 0.0
          %vm940 = vcmp.ge.f32.partialorder %v924, 0.0
          %vm941 = vcmp.ge.f32.partialorder %v925, 0.0
          %vm942 = vcmp.ge.f32.partialorder %v926, 0.0
          %vm943 = vcmp.ge.f32.partialorder %v927, 0.0
          %vm944 = vcmp.ge.f32.partialorder %v928, 0.0
          %vm945 = vcmp.ge.f32.partialorder %v929, 0.0
          %vm946 = vcmp.ge.f32.partialorder %v930, 0.0
          %v947 = vmul.f32 %v915, 0.01
          %v948 = vmul.f32 %v916, 0.01
          %v949 = vmul.f32 %v917, 0.01
          %v950 = vmul.f32 %v918, 0.01
          %v951 = vmul.f32 %v919, 0.01
          %v952 = vmul.f32 %v920, 0.01
          %v953 = vmul.f32 %v921, 0.01
          %v954 = vmul.f32 %v922, 0.01
          %v955 = vmul.f32 %v923, 0.01
          %v956 = vmul.f32 %v924, 0.01
          %v957 = vmul.f32 %v925, 0.01
          %v958 = vmul.f32 %v926, 0.01
          %v959 = vmul.f32 %v927, 0.01
          %v960 = vmul.f32 %v928, 0.01
          %v961 = vmul.f32 %v929, 0.01
          %v962 = vmul.f32 %v930, 0.01
          %v963 = vsel %vm931, %v915, %v947
          %v964 = vsel %vm932, %v916, %v948
          %v965 = vsel %vm933, %v917, %v949
          %v966 = vsel %vm934, %v918, %v950
          %v967 = vsel %vm935, %v919, %v951
          %v968 = vsel %vm936, %v920, %v952
          %v969 = vsel %vm937, %v921, %v953
          %v970 = vsel %vm938, %v922, %v954
          %v971 = vsel %vm939, %v923, %v955
          %v972 = vsel %vm940, %v924, %v956
          %v973 = vsel %vm941, %v925, %v957
          %v974 = vsel %vm942, %v926, %v958
          %v975 = vsel %vm943, %v927, %v959
          %v976 = vsel %vm944, %v928, %v960
          %v977 = vsel %vm945, %v929, %v961
          %v978 = vsel %vm946, %v930, %v962
          %979 = vst [vmem:[%s305] sm:$0xff] %v963
          %980 = vst [vmem:[%s305 + $0x8] sm:$0xff] %v964
          %981 = vst [vmem:[%s305 + $0x10] sm:$0xff] %v965
          %982 = vst [vmem:[%s305 + $0x18] sm:$0xff] %v966
          %983 = vst [vmem:[%s305 + $0x20] sm:$0xff] %v967
          %984 = vst [vmem:[%s305 + $0x28] sm:$0xff] %v968
          %985 = vst [vmem:[%s305 + $0x30] sm:$0xff] %v969
          %986 = vst [vmem:[%s305 + $0x38] sm:$0xff] %v970
          %987 = vst [vmem:[%s305 + $0x40] sm:$0xff] %v971
          %988 = vst [vmem:[%s305 + $0x48] sm:$0xff] %v972
          %989 = vst [vmem:[%s305 + $0x50] sm:$0xff] %v973
          %990 = vst [vmem:[%s305 + $0x58] sm:$0xff] %v974
          %991 = vst [vmem:[%s305 + $0x60] sm:$0xff] %v975
          %992 = vst [vmem:[%s305 + $0x68] sm:$0xff] %v976
          %993 = vst [vmem:[%s305 + $0x70] sm:$0xff] %v977
          %994 = vst [vmem:[%s305 + $0x78] sm:$0xff] %v978
        $region71: #{gcn_forward.9} parent=58 // pred_fallthru
          _
        %s995 = sand.u32 %s161, 1
        %s996 = scalar_lea.sflag [#allocation5], %s995
        %s997 = sand.u32 %s161, 1
        %s998 = smul.addr %s997, 128
        %s999 = scalar_lea.vmem [#allocation4], %s998
        // Predicated region
        $region72: #{gcn_forward.9} parent=58 // pred_check
          %p1000 = pneg %p171
        $region73: #{gcn_forward.9} parent=58 // pred_check_branch
          %1002 = sbr.rel (%p1000) target = $region75
        $region74: #{gcn_forward.9} parent=58 // pred_region
          %s1003 = smul.u32 16, %s23
          %s1005 = ssub.s32 2048, 2048
          %1006 = vsyncadd %s996, %s1005
          %s1007 = smul.addr %s1003, 128
          %s1008 = scalar_lea.hbm %s5, %s1007
          %s1009 = sshll.u32 %s999, 4
          %s1010 = int_to_ptr.vmem [resolvable:$true] %s1009
          %1015 = dma.vmem_to_hbm [thread:$0]  %s1010, 2048, %s1008, %s996, 128, 128, 8
        $region75: #{gcn_forward.9} parent=58 // pred_fallthru
          _
      $region59: #{gcn_forward.9} parent=5 // pred_fallthru
        _
      %p1016 = scmp.le.s32.totalorder 2, %s14
      // Predicated region
      $region76: #{gcn_forward.9} parent=5 // pred_check
        %p1017 = pneg %p1016
      $region77: #{gcn_forward.9} parent=5 // pred_check_branch
        %1019 = sbr.rel (%p1017) target = $region79
      $region78: #{gcn_forward.9} parent=5 // pred_region
        %s1020 = ssub.s32 %s14, 2
        // Predicated region
        $region80: #{gcn_forward.9} parent=78 // pred_check
          %p1021 = pneg %p177
        $region81: #{gcn_forward.9} parent=78 // pred_check_branch
          %1023 = sbr.rel (%p1021) target = $region83
        $region82: #{gcn_forward.9} parent=78 // pred_region
          %s1024 = sand.u32 %s162, 1
          %s1025 = scalar_lea.sflag [#allocation5], %s1024
          %s1026 = sand.u32 %s162, 1
          %s1027 = smul.addr %s1026, 128
          %s1028 = scalar_lea.vmem [#allocation4], %s1027
          %1029 = dma.done %s1025, 2048
        $region83: #{gcn_forward.9} parent=78 // pred_fallthru
          _
      $region79: #{gcn_forward.9} parent=5 // pred_fallthru
        _
    $region6: #{gcn_forward.9} parent=1 // loop_footer
      %s18 = sadd.s32 1, %s14
    $region7: #{gcn_forward.9} parent=1 // loop_footer_branch
      %13 = sbr.rel target = $region3
    $region8: #{gcn_forward.9} parent=1 // loop_exit
      _
    %1030 = vsyncpa [#allocation5], 1
    %s1031 = scalar_lea.sflag [#allocation5], 1
    %1032 = vsyncpa %s1031, 1

// kernel: gcn_forward.7
$region0: #{gcn_forward.7}
  #allocation0 [shape = 'u32[]', space=smem, size = 0x4, offset = 0x4, fixed_abs, tag = 'smem constant byte address 0x4 - core index']
  #allocation1 [shape = 'u32[144,128]{1,0:T(1,128)}', space=vmem, size = 0x12000, scoped, tag = 'internal scratch']
  #allocation2 [shape = 'f32[128,128]{1,0:T(8,128)}', space=vmem, size = 0x10000, scoped, tag = 'scratch operand']
  %s0 = inlined_call_operand.vmem [shape: s8[512,512], index: 0, kind: input, shape index: {}]
  %s1 = inlined_call_operand.vmem [shape: bf16[512,128], index: 1, kind: input, shape index: {}]
  %s2 = inlined_call_operand.vmem [shape: bf16[128,128], index: 2, kind: input, shape index: {}]
  %s3 = inlined_call_operand.vmem [shape: f32[1,128], index: 3, kind: input, shape index: {}]
  %s4 = inlined_call_operand.vmem [shape: bf16[512,128], index: 4, kind: input, shape index: {}]
  %s5 = inlined_call_operand.vmem [shape: bf16[128,256], index: 5, kind: input, shape index: {}]
  %s6 = inlined_call_operand.vmem [shape: f32[1,128], index: 6, kind: input, shape index: {}]
  %s7 = inlined_call_operand.vmem [shape: bf16[512,128], index: 7, kind: input, shape index: {}]
  %s8 = inlined_call_operand.vmem [shape: bf16[512,128], index: 8, kind: output, shape index: {0}]
  %s9 = inlined_call_operand.vmem [shape: bf16[512,128], index: 9, kind: output, shape index: {1}]
  %10 = xla_tuple %s8, %s9
  %s11 = sld [smem:[#allocation0]]
  $region104: #{gcn_forward.7} parent=0
    _
  %s13 = ssub.s32 1, %s11
  %s14 = scalar_select 0, %s13, %s11
  $region1: #{gcn_forward.7} parent=0
    #allocation3 [shape = 'u8[65536]{0}', space=vmem, size = 0x10000, scoped, tag = 'input window, operand 0']
    loop: start=0, step=1, limit=10
    $region2: #{gcn_forward.7} parent=1 // loop_pre_header
      _
    $region3: #{gcn_forward.7} parent=1 // loop_header
      %s16 = sphi 0, %s20
      %p17 = scmp.ge.s32.totalorder %s16, 10
      %s23 = sphi 0, %s35
      %s24 = sphi 0, %s31
      %s25 = sphi 0, %s23
      %s26 = sphi 0, %s24
      %s27 = sphi 0, %s25
      %s28 = sphi 0, %s26
      %s40 = sphi 0, %s42
      %s43 = sphi 0, %s40
      %s44 = sphi 0, %s43
      %s60 = sphi 0, %s44
      %s66 = sphi 0, %s68
      %s69 = sphi 0, %s66
      %s70 = sphi 0, %s69
      %s86 = sphi 0, %s70
      %s90 = sphi 0, %s90
      %s92 = sphi 0, %s90
      %s93 = sphi 0, %s92
      %s107 = sphi 0, %s93
      %s111 = sphi 0, %s111
      %s113 = sphi 0, %s111
      %s114 = sphi 0, %s113
      %s128 = sphi 0, %s114
      %s134 = sphi 0, %s136
      %s137 = sphi 0, %s134
      %s138 = sphi 0, %s137
      %s154 = sphi 0, %s138
      %s158 = sphi 0, %s158
      %s160 = sphi 0, %s158
      %s161 = sphi 0, %s160
      %s175 = sphi 0, %s161
      %s179 = sphi 0, %s179
      %s181 = sphi 0, %s179
      %s182 = sphi 0, %s181
      %s196 = sphi 0, %s182
      %s202 = sphi 0, %s204
      %s205 = sphi 0, %s202
      %s206 = sphi 0, %s205
      %s222 = sphi 0, %s206
      %s228 = sphi 0, %s230
      %s231 = sphi 0, %s228
      %s232 = sphi 0, %s231
      %s248 = sphi 0, %s232
      %s254 = sphi 0, %s256
      %s257 = sphi 0, %s254
      %s258 = sphi 0, %s257
      %s274 = sphi 0, %s258
    $region4: #{gcn_forward.7} parent=1 // loop_header_branch
      %19 = sbr.rel (%p17) target = $region8
    $region5: #{gcn_forward.7} parent=1 // loop_body
      %s21 = ssub.s32 %s16, 1
      %s22 = ssub.s32 %s16, 2
      %s29 = sadd.s32 1, %s24
      %p30 = scmp.ge.s32.totalorder %s29, 2
      %s31 = scalar_select %p30, 0, %s29
      %s32 = sadd.s32 1, %s23
      %s33 = scalar_select %p30, %s32, %s23
      %p34 = scmp.ge.s32.totalorder %s33, 4
      %s35 = scalar_select %p34, 0, %s33
      %s36 = ssub.s32 %s23, %s35
      %s37 = ssub.s32 %s24, %s31
      %s38 = sor.u32 %s36, %s37
      %p39 = scmp.eq.s32.totalorder %s38, 0
      %s41 = sadd.s32 %s40, 1
      %s42 = scalar_select %p39, %s40, %s41
      %p45 = pneg %p39
      %p46 = scmp.eq.s32.totalorder %s16, 7
      %p47 = por %p45, %p46
      %p48 = scmp.ne.s32.totalorder %s40, %s43
      %p49 = scmp.eq.s32.totalorder %s16, 0
      %p50 = por %p48, %p49
      %p51 = scmp.ne.s32.totalorder %s40, %s43
      %p52 = scmp.eq.s32.totalorder %s21, 7
      %p53 = por %p51, %p52
      %p54 = scmp.ne.s32.totalorder %s43, %s44
      %p55 = scmp.eq.s32.totalorder %s21, 0
      %p56 = por %p54, %p55
      %p57 = scmp.ne.s32.totalorder %s43, %s44
      %p58 = scmp.eq.s32.totalorder %s22, 7
      %p59 = por %p57, %p58
      %p61 = scmp.ne.s32.totalorder %s44, %s60
      %p62 = scmp.eq.s32.totalorder %s22, 0
      %p63 = por %p61, %p62
      %s64 = ssub.s32 %s24, %s31
      %p65 = scmp.eq.s32.totalorder %s64, 0
      %s67 = sadd.s32 %s66, 1
      %s68 = scalar_select %p65, %s66, %s67
      %p71 = pneg %p65
      %p72 = scmp.eq.s32.totalorder %s16, 7
      %p73 = por %p71, %p72
      %p74 = scmp.ne.s32.totalorder %s66, %s69
      %p75 = scmp.eq.s32.totalorder %s16, 0
      %p76 = por %p74, %p75
      %p77 = scmp.ne.s32.totalorder %s66, %s69
      %p78 = scmp.eq.s32.totalorder %s21, 7
      %p79 = por %p77, %p78
      %p80 = scmp.ne.s32.totalorder %s69, %s70
      %p81 = scmp.eq.s32.totalorder %s21, 0
      %p82 = por %p80, %p81
      %p83 = scmp.ne.s32.totalorder %s69, %s70
      %p84 = scmp.eq.s32.totalorder %s22, 7
      %p85 = por %p83, %p84
      %p87 = scmp.ne.s32.totalorder %s70, %s86
      %p88 = scmp.eq.s32.totalorder %s22, 0
      %p89 = por %p87, %p88
      %s91 = sadd.s32 %s90, 1
      %p94 = scmp.eq.s32.totalorder %s16, 7
      %p95 = scmp.ne.s32.totalorder %s90, %s92
      %p96 = scmp.eq.s32.totalorder %s16, 0
      %p97 = por %p95, %p96
      %p98 = scmp.ne.s32.totalorder %s90, %s92
      %p99 = scmp.eq.s32.totalorder %s21, 7
      %p100 = por %p98, %p99
      %p101 = scmp.ne.s32.totalorder %s92, %s93
      %p102 = scmp.eq.s32.totalorder %s21, 0
      %p103 = por %p101, %p102
      %p104 = scmp.ne.s32.totalorder %s92, %s93
      %p105 = scmp.eq.s32.totalorder %s22, 7
      %p106 = por %p104, %p105
      %p108 = scmp.ne.s32.totalorder %s93, %s107
      %p109 = scmp.eq.s32.totalorder %s22, 0
      %p110 = por %p108, %p109
      %s112 = sadd.s32 %s111, 1
      %p115 = scmp.eq.s32.totalorder %s16, 7
      %p116 = scmp.ne.s32.totalorder %s111, %s113
      %p117 = scmp.eq.s32.totalorder %s16, 0
      %p118 = por %p116, %p117
      %p119 = scmp.ne.s32.totalorder %s111, %s113
      %p120 = scmp.eq.s32.totalorder %s21, 7
      %p121 = por %p119, %p120
      %p122 = scmp.ne.s32.totalorder %s113, %s114
      %p123 = scmp.eq.s32.totalorder %s21, 0
      %p124 = por %p122, %p123
      %p125 = scmp.ne.s32.totalorder %s113, %s114
      %p126 = scmp.eq.s32.totalorder %s22, 7
      %p127 = por %p125, %p126
      %p129 = scmp.ne.s32.totalorder %s114, %s128
      %p130 = scmp.eq.s32.totalorder %s22, 0
      %p131 = por %p129, %p130
      %s132 = ssub.s32 %s23, %s35
      %p133 = scmp.eq.s32.totalorder %s132, 0
      %s135 = sadd.s32 %s134, 1
      %s136 = scalar_select %p133, %s134, %s135
      %p139 = pneg %p133
      %p140 = scmp.eq.s32.totalorder %s16, 7
      %p141 = por %p139, %p140
      %p142 = scmp.ne.s32.totalorder %s134, %s137
      %p143 = scmp.eq.s32.totalorder %s16, 0
      %p144 = por %p142, %p143
      %p145 = scmp.ne.s32.totalorder %s134, %s137
      %p146 = scmp.eq.s32.totalorder %s21, 7
      %p147 = por %p145, %p146
      %p148 = scmp.ne.s32.totalorder %s137, %s138
      %p149 = scmp.eq.s32.totalorder %s21, 0
      %p150 = por %p148, %p149
      %p151 = scmp.ne.s32.totalorder %s137, %s138
      %p152 = scmp.eq.s32.totalorder %s22, 7
      %p153 = por %p151, %p152
      %p155 = scmp.ne.s32.totalorder %s138, %s154
      %p156 = scmp.eq.s32.totalorder %s22, 0
      %p157 = por %p155, %p156
      %s159 = sadd.s32 %s158, 1
      %p162 = scmp.eq.s32.totalorder %s16, 7
      %p163 = scmp.ne.s32.totalorder %s158, %s160
      %p164 = scmp.eq.s32.totalorder %s16, 0
      %p165 = por %p163, %p164
      %p166 = scmp.ne.s32.totalorder %s158, %s160
      %p167 = scmp.eq.s32.totalorder %s21, 7
      %p168 = por %p166, %p167
      %p169 = scmp.ne.s32.totalorder %s160, %s161
      %p170 = scmp.eq.s32.totalorder %s21, 0
      %p171 = por %p169, %p170
      %p172 = scmp.ne.s32.totalorder %s160, %s161
      %p173 = scmp.eq.s32.totalorder %s22, 7
      %p174 = por %p172, %p173
      %p176 = scmp.ne.s32.totalorder %s161, %s175
      %p177 = scmp.eq.s32.totalorder %s22, 0
      %p178 = por %p176, %p177
      %s180 = sadd.s32 %s179, 1
      %p183 = scmp.eq.s32.totalorder %s16, 7
      %p184 = scmp.ne.s32.totalorder %s179, %s181
      %p185 = scmp.eq.s32.totalorder %s16, 0
      %p186 = por %p184, %p185
      %p187 = scmp.ne.s32.totalorder %s179, %s181
      %p188 = scmp.eq.s32.totalorder %s21, 7
      %p189 = por %p187, %p188
      %p190 = scmp.ne.s32.totalorder %s181, %s182
      %p191 = scmp.eq.s32.totalorder %s21, 0
      %p192 = por %p190, %p191
      %p193 = scmp.ne.s32.totalorder %s181, %s182
      %p194 = scmp.eq.s32.totalorder %s22, 7
      %p195 = por %p193, %p194
      %p197 = scmp.ne.s32.totalorder %s182, %s196
      %p198 = scmp.eq.s32.totalorder %s22, 0
      %p199 = por %p197, %p198
      %s200 = ssub.s32 %s23, %s35
      %p201 = scmp.eq.s32.totalorder %s200, 0
      %s203 = sadd.s32 %s202, 1
      %s204 = scalar_select %p201, %s202, %s203
      %p207 = pneg %p201
      %p208 = scmp.eq.s32.totalorder %s16, 7
      %p209 = por %p207, %p208
      %p210 = scmp.ne.s32.totalorder %s202, %s205
      %p211 = scmp.eq.s32.totalorder %s16, 0
      %p212 = por %p210, %p211
      %p213 = scmp.ne.s32.totalorder %s202, %s205
      %p214 = scmp.eq.s32.totalorder %s21, 7
      %p215 = por %p213, %p214
      %p216 = scmp.ne.s32.totalorder %s205, %s206
      %p217 = scmp.eq.s32.totalorder %s21, 0
      %p218 = por %p216, %p217
      %p219 = scmp.ne.s32.totalorder %s205, %s206
      %p220 = scmp.eq.s32.totalorder %s22, 7
      %p221 = por %p219, %p220
      %p223 = scmp.ne.s32.totalorder %s206, %s222
      %p224 = scmp.eq.s32.totalorder %s22, 0
      %p225 = por %p223, %p224
      %s226 = ssub.s32 %s23, %s35
      %p227 = scmp.eq.s32.totalorder %s226, 0
      %s229 = sadd.s32 %s228, 1
      %s230 = scalar_select %p227, %s228, %s229
      %p233 = pneg %p227
      %p234 = scmp.eq.s32.totalorder %s16, 7
      %p235 = por %p233, %p234
      %p236 = scmp.ne.s32.totalorder %s228, %s231
      %p237 = scmp.eq.s32.totalorder %s16, 0
      %p238 = por %p236, %p237
      %p239 = scmp.ne.s32.totalorder %s228, %s231
      %p240 = scmp.eq.s32.totalorder %s21, 7
      %p241 = por %p239, %p240
      %p242 = scmp.ne.s32.totalorder %s231, %s232
      %p243 = scmp.eq.s32.totalorder %s21, 0
      %p244 = por %p242, %p243
      %p245 = scmp.ne.s32.totalorder %s231, %s232
      %p246 = scmp.eq.s32.totalorder %s22, 7
      %p247 = por %p245, %p246
      %p249 = scmp.ne.s32.totalorder %s232, %s248
      %p250 = scmp.eq.s32.totalorder %s22, 0
      %p251 = por %p249, %p250
      %s252 = ssub.s32 %s23, %s35
      %p253 = scmp.eq.s32.totalorder %s252, 0
      %s255 = sadd.s32 %s254, 1
      %s256 = scalar_select %p253, %s254, %s255
      %p259 = pneg %p253
      %p260 = scmp.eq.s32.totalorder %s16, 7
      %p261 = por %p259, %p260
      %p262 = scmp.ne.s32.totalorder %s254, %s257
      %p263 = scmp.eq.s32.totalorder %s16, 0
      %p264 = por %p262, %p263
      %p265 = scmp.ne.s32.totalorder %s254, %s257
      %p266 = scmp.eq.s32.totalorder %s21, 7
      %p267 = por %p265, %p266
      %p268 = scmp.ne.s32.totalorder %s257, %s258
      %p269 = scmp.eq.s32.totalorder %s21, 0
      %p270 = por %p268, %p269
      %p271 = scmp.ne.s32.totalorder %s257, %s258
      %p272 = scmp.eq.s32.totalorder %s22, 7
      %p273 = por %p271, %p272
      %p275 = scmp.ne.s32.totalorder %s258, %s274
      %p276 = scmp.eq.s32.totalorder %s22, 0
      %p277 = por %p275, %p276
      %p278 = scmp.le.s32.totalorder 1, %s16
      %p279 = scmp.lt.s32.totalorder %s16, 9
      %p280 = pnand %p278, %p279
      %p281 = pneg %p280
      // Predicated region
      $region9: #{gcn_forward.7} parent=5 // pred_check
        _
      $region10: #{gcn_forward.7} parent=5 // pred_check_branch
        %283 = sbr.rel (%p280) target = $region12
      $region11: #{gcn_forward.7} parent=5 // pred_region
        %s284 = ssub.s32 %s16, 1
        // Predicated region
        $region13: #{gcn_forward.7} parent=11 // pred_check
          %p285 = pneg %p103
        $region14: #{gcn_forward.7} parent=11 // pred_check_branch
          %287 = sbr.rel (%p285) target = $region16
        $region15: #{gcn_forward.7} parent=11 // pred_region
          _
        $region16: #{gcn_forward.7} parent=11 // pred_fallthru
          _
        // Predicated region
        $region17: #{gcn_forward.7} parent=11 // pred_check
          %p288 = pneg %p124
        $region18: #{gcn_forward.7} parent=11 // pred_check_branch
          %290 = sbr.rel (%p288) target = $region20
        $region19: #{gcn_forward.7} parent=11 // pred_region
          _
        $region20: #{gcn_forward.7} parent=11 // pred_fallthru
          _
        // Predicated region
        $region21: #{gcn_forward.7} parent=11 // pred_check
          %p291 = pneg %p171
        $region22: #{gcn_forward.7} parent=11 // pred_check_branch
          %293 = sbr.rel (%p291) target = $region24
        $region23: #{gcn_forward.7} parent=11 // pred_region
          _
        $region24: #{gcn_forward.7} parent=11 // pred_fallthru
          _
        // Predicated region
        $region25: #{gcn_forward.7} parent=11 // pred_check
          %p294 = pneg %p192
        $region26: #{gcn_forward.7} parent=11 // pred_check_branch
          %296 = sbr.rel (%p294) target = $region28
        $region27: #{gcn_forward.7} parent=11 // pred_region
          _
        $region28: #{gcn_forward.7} parent=11 // pred_fallthru
          _
      $region12: #{gcn_forward.7} parent=5 // pred_fallthru
        _
      %p297 = scmp.lt.s32.totalorder %s16, 8
      // Predicated region
      $region29: #{gcn_forward.7} parent=5 // pred_check
        %p298 = pneg %p297
      $region30: #{gcn_forward.7} parent=5 // pred_check_branch
        %300 = sbr.rel (%p298) target = $region32
      $region31: #{gcn_forward.7} parent=5 // pred_region
        // Predicated region
        $region33: #{gcn_forward.7} parent=31 // pred_check
          %p301 = pneg %p50
        $region34: #{gcn_forward.7} parent=31 // pred_check_branch
          %303 = sbr.rel (%p301) target = $region36
        $region35: #{gcn_forward.7} parent=31 // pred_region
          %s304 = sand.u32 %s40, 1
          %s305 = sand.u32 %s40, 1
          %s306 = smul.addr %s305, 64
          %s307 = scalar_lea.vmem [#allocation3], %s306
          %s308 = smul.u32 4, %s23
          %s309 = smul.u32 2, %s24
          %s310 = smul.addr %s308, 4
          %s311 = sadd.s32 %s309, %s310
          %s312 = smul.addr %s311, 8
          %s313 = scalar_lea.vmem %s0, %s312
          // Predicated region
          $region37: #{gcn_forward.7} parent=35 // pred_check
            _
          $region38: #{gcn_forward.7} parent=35 // pred_check_branch
            %315 = sbr.rel (0) target = $region40
          $region39: #{gcn_forward.7} parent=35 // pred_region
            // Predicated region
            $region41: #{gcn_forward.7} parent=39 // pred_check
              _
            $region42: #{gcn_forward.7} parent=39 // pred_check_branch
              %317 = sbr.rel (0) target = $region44
            $region43: #{gcn_forward.7} parent=39 // pred_region
              loop: start=0, step=1, limit=1
              $region45: #{gcn_forward.7} parent=43 // loop_pre_header
                _
              $region46: #{gcn_forward.7} parent=43 // loop_header
                %s319 = sphi 0, %s323
                %p320 = scmp.ge.s32.totalorder %s319, 1
                %s324 = sphi %s313, %s313
                %s325 = sphi %s307, %s307
              $region47: #{gcn_forward.7} parent=43 // loop_header_branch
                %322 = sbr.rel (%p320) target = $region51
              $region48: #{gcn_forward.7} parent=43 // loop_body
                %v326 = vld [vmem:[%s324] sm:$0xff]
                %327 = vst [vmem:[%s325] sm:$0xff] %v326
                %v328 = vld [vmem:[%s324 + $0x8] sm:$0xff]
                %329 = vst [vmem:[%s325 + $0x8] sm:$0xff] %v328
                %v330 = vld [vmem:[%s324 + $0x20] sm:$0xff]
                %331 = vst [vmem:[%s325 + $0x10] sm:$0xff] %v330
                %v332 = vld [vmem:[%s324 + $0x28] sm:$0xff]
                %333 = vst [vmem:[%s325 + $0x18] sm:$0xff] %v332
                %v334 = vld [vmem:[%s324 + $0x40] sm:$0xff]
                %335 = vst [vmem:[%s325 + $0x20] sm:$0xff] %v334
                %v336 = vld [vmem:[%s324 + $0x48] sm:$0xff]
                %337 = vst [vmem:[%s325 + $0x28] sm:$0xff] %v336
                %v338 = vld [vmem:[%s324 + $0x60] sm:$0xff]
                %339 = vst [vmem:[%s325 + $0x30] sm:$0xff] %v338
                %v340 = vld [vmem:[%s324 + $0x68] sm:$0xff]
                %341 = vst [vmem:[%s325 + $0x38] sm:$0xff] %v340
              $region49: #{gcn_forward.7} parent=43 // loop_footer
                %s323 = sadd.s32 1, %s319
              $region50: #{gcn_forward.7} parent=43 // loop_footer_branch
                %318 = sbr.rel target = $region46
              $region51: #{gcn_forward.7} parent=43 // loop_exit
                _
            $region44: #{gcn_forward.7} parent=39 // pred_fallthru
              _
            // Predicated region
            $region52: #{gcn_forward.7} parent=39 // pred_check
              _
            $region53: #{gcn_forward.7} parent=39 // pred_check_branch
              %343 = sbr.rel target = $region55
            $region54: #{gcn_forward.7} parent=39 // pred_region
              _
            $region55: #{gcn_forward.7} parent=39 // pred_fallthru
              _
          $region40: #{gcn_forward.7} parent=35 // pred_fallthru
            _
          %344 = vnop
        $region36: #{gcn_forward.7} parent=31 // pred_fallthru
          _
        // Predicated region
        $region56: #{gcn_forward.7} parent=31 // pred_check
          %p345 = pneg %p76
        $region57: #{gcn_forward.7} parent=31 // pred_check_branch
          %347 = sbr.rel (%p345) target = $region59
        $region58: #{gcn_forward.7} parent=31 // pred_region
          %s348 = smul.u32 32, %s24
          %p349 = scmp.lt.s32.totalorder %s348, 63
          %s350 = scalar_select %p349, %s348, 63
          %s351 = smul.addr %s350, 4
          %s352 = scalar_lea.vmem %s1, %s351
          %s353 = smul.u32 32, %s24
        $region59: #{gcn_forward.7} parent=31 // pred_fallthru
          _
        // Predicated region
        $region60: #{gcn_forward.7} parent=31 // pred_check
          %p354 = pneg %p144
        $region61: #{gcn_forward.7} parent=31 // pred_check_branch
          %356 = sbr.rel (%p354) target = $region63
        $region62: #{gcn_forward.7} parent=31 // pred_region
          %s357 = smul.u32 16, %s23
          %p358 = scmp.lt.s32.totalorder %s357, 63
          %s359 = scalar_select %p358, %s357, 63
          %s360 = smul.addr %s359, 4
          %s361 = scalar_lea.vmem %s4, %s360
          %s362 = smul.u32 16, %s23
        $region63: #{gcn_forward.7} parent=31 // pred_fallthru
          _
        // Predicated region
        $region64: #{gcn_forward.7} parent=31 // pred_check
          %p363 = pneg %p212
        $region65: #{gcn_forward.7} parent=31 // pred_check_branch
          %365 = sbr.rel (%p363) target = $region67
        $region66: #{gcn_forward.7} parent=31 // pred_region
          %s366 = smul.u32 16, %s23
          %p367 = scmp.lt.s32.totalorder %s366, 63
          %s368 = scalar_select %p367, %s366, 63
          %s369 = smul.addr %s368, 4
          %s370 = scalar_lea.vmem %s7, %s369
          %s371 = smul.u32 16, %s23
        $region67: #{gcn_forward.7} parent=31 // pred_fallthru
          _
      $region32: #{gcn_forward.7} parent=5 // pred_fallthru
        _
      %p372 = scmp.le.s32.totalorder 1, %s16
      %p373 = scmp.lt.s32.totalorder %s16, 9
      %p374 = pnand %p372, %p373
      %p375 = pneg %p374
      // Predicated region
      $region68: #{gcn_forward.7} parent=5 // pred_check
        _
      $region69: #{gcn_forward.7} parent=5 // pred_check_branch
        %377 = sbr.rel (%p374) target = $region71
      $region70: #{gcn_forward.7} parent=5 // pred_region
        %s378 = ssub.s32 %s16, 1
        %s379 = sand.u32 %s43, 1
        %s380 = sand.u32 %s43, 1
        %s381 = smul.addr %s380, 64
        %s382 = scalar_lea.vmem [#allocation3], %s381
        // Predicated region
        $region72: #{gcn_forward.7} parent=70 // pred_check
          %p383 = pneg %p56
        $region73: #{gcn_forward.7} parent=70 // pred_check_branch
          %385 = sbr.rel (%p383) target = $region75
        $region74: #{gcn_forward.7} parent=70 // pred_region
          _
        $region75: #{gcn_forward.7} parent=70 // pred_fallthru
          _
        %s386 = sand.u32 %s43, 1
        %s387 = sand.u32 %s43, 1
        %s388 = smul.addr %s387, 64
        %s389 = scalar_lea.vmem [#allocation3], %s388
        %p390 = pneg %p56
        %p391 = pneg %p53
        %s392 = smul.u32 32, %s26
        %p393 = scmp.lt.s32.totalorder %s392, 63
        %s394 = scalar_select %p393, %s392, 63
        %s395 = smul.addr %s394, 4
        %s396 = scalar_lea.vmem %s1, %s395
        %p397 = pneg %p82
        %p398 = pneg %p79
        %p399 = pneg %p103
        %p400 = pneg %p100
        %p401 = pneg %p124
        %p402 = pneg %p121
        %s403 = smul.u32 16, %s25
        %p404 = scmp.lt.s32.totalorder %s403, 63
        %s405 = scalar_select %p404, %s403, 63
        %s406 = smul.addr %s405, 4
        %s407 = scalar_lea.vmem %s4, %s406
        %p408 = pneg %p150
        %p409 = pneg %p147
        %p410 = pneg %p171
        %p411 = pneg %p168
        %p412 = pneg %p192
        %p413 = pneg %p189
        %s414 = smul.u32 16, %s25
        %p415 = scmp.lt.s32.totalorder %s414, 63
        %s416 = scalar_select %p415, %s414, 63
        %s417 = smul.addr %s416, 4
        %s418 = scalar_lea.vmem %s7, %s417
        %p419 = pneg %p218
        %p420 = pneg %p215
        %p421 = pneg %p244
        %p422 = pneg %p241
        %s423 = smul.u32 16, %s25
        %p424 = scmp.lt.s32.totalorder %s423, 63
        %s425 = scalar_select %p424, %s423, 63
        %s426 = smul.addr %s425, 4
        %s427 = scalar_lea.vmem %s8, %s426
        %p428 = pneg %p270
        %p429 = pneg %p267
        %s430 = smul.u32 16, %s25
        %p431 = scmp.lt.s32.totalorder %s430, 63
        %s432 = scalar_select %p431, %s430, 63
        %s433 = smul.addr %s432, 4
        %s434 = scalar_lea.vmem %s9, %s433
        %s435 = smul.u32 4, %s25
        %s436 = smul.u32 2, %s26
        %s437 = smul.u32 32, %s26
        %p438 = scmp.lt.s32.totalorder %s437, 63
        %s439 = scalar_select %p438, %s437, 63
        %s440 = smul.addr %s439, 4
        %s441 = scalar_lea.vmem %s1, %s440
        %s442 = smul.u32 32, %s26
        %s443 = smul.u32 16, %s25
        %p444 = scmp.lt.s32.totalorder %s443, 63
        %s445 = scalar_select %p444, %s443, 63
        %s446 = smul.addr %s445, 4
        %s447 = scalar_lea.vmem %s4, %s446
        %s448 = smul.u32 16, %s25
        %s449 = smul.u32 16, %s25
        %p450 = scmp.lt.s32.totalorder %s449, 63
        %s451 = scalar_select %p450, %s449, 63
        %s452 = smul.addr %s451, 4
        %s453 = scalar_lea.vmem %s7, %s452
        %s454 = smul.u32 16, %s25
        %s455 = smul.u32 16, %s25
        %p456 = scmp.lt.s32.totalorder %s455, 63
        %s457 = scalar_select %p456, %s455, 63
        %s458 = smul.addr %s457, 4
        %s459 = scalar_lea.vmem %s8, %s458
        %s460 = smul.u32 16, %s25
        %s461 = smul.u32 16, %s25
        %p462 = scmp.lt.s32.totalorder %s461, 63
        %s463 = scalar_select %p462, %s461, 63
        %s464 = smul.addr %s463, 4
        %s465 = scalar_lea.vmem %s9, %s464
        %s466 = smul.u32 16, %s25
        %p468 = scmp.eq.s32.totalorder %s26, 0
        // Predicated region
        $region76: #{gcn_forward.7} parent=70 // pred_check
          %p469 = pneg %p468
        $region77: #{gcn_forward.7} parent=70 // pred_check_branch
          %471 = sbr.rel (%p469) target = $region79
        $region78: #{gcn_forward.7} parent=70 // pred_region
          %472 = vst [vmem:[#allocation2] sm:$0xff] 0.0
          %473 = vst [vmem:[#allocation2 + $0x8] sm:$0xff] 0.0
          %474 = vst [vmem:[#allocation2 + $0x10] sm:$0xff] 0.0
          %475 = vst [vmem:[#allocation2 + $0x18] sm:$0xff] 0.0
          %476 = vst [vmem:[#allocation2 + $0x20] sm:$0xff] 0.0
          %477 = vst [vmem:[#allocation2 + $0x28] sm:$0xff] 0.0
          %478 = vst [vmem:[#allocation2 + $0x30] sm:$0xff] 0.0
          %479 = vst [vmem:[#allocation2 + $0x38] sm:$0xff] 0.0
          %480 = vst [vmem:[#allocation2 + $0x40] sm:$0xff] 0.0
          %481 = vst [vmem:[#allocation2 + $0x48] sm:$0xff] 0.0
          %482 = vst [vmem:[#allocation2 + $0x50] sm:$0xff] 0.0
          %483 = vst [vmem:[#allocation2 + $0x58] sm:$0xff] 0.0
          %484 = vst [vmem:[#allocation2 + $0x60] sm:$0xff] 0.0
          %485 = vst [vmem:[#allocation2 + $0x68] sm:$0xff] 0.0
          %486 = vst [vmem:[#allocation2 + $0x70] sm:$0xff] 0.0
          %487 = vst [vmem:[#allocation2 + $0x78] sm:$0xff] 0.0
        $region79: #{gcn_forward.7} parent=70 // pred_fallthru
          _
        %v488 = vld [vmem:[%s441] sm:$0xf]
        %v489 = vld [vmem:[%s441 + $0x4] sm:$0xf]
        %v490 = vld [vmem:[%s441 + $0x8] sm:$0xf]
        %v491 = vld [vmem:[%s441 + $0xc] sm:$0xf]
        %v492 = vld [vmem:[%s441 + $0x10] sm:$0xf]
        %v493 = vld [vmem:[%s441 + $0x14] sm:$0xf]
        %v494 = vld [vmem:[%s441 + $0x18] sm:$0xf]
        %v495 = vld [vmem:[%s441 + $0x1c] sm:$0xf]
        %v496 = vld [vmem:[%s441 + $0x20] sm:$0xf]
        %v497 = vld [vmem:[%s441 + $0x24] sm:$0xf]
        %v498 = vld [vmem:[%s441 + $0x28] sm:$0xf]
        %v499 = vld [vmem:[%s441 + $0x2c] sm:$0xf]
        %v500 = vld [vmem:[%s441 + $0x30] sm:$0xf]
        %v501 = vld [vmem:[%s441 + $0x34] sm:$0xf]
        %v502 = vld [vmem:[%s441 + $0x38] sm:$0xf]
        %v503 = vld [vmem:[%s441 + $0x3c] sm:$0xf]
        %v504 = vld [vmem:[%s441 + $0x40] sm:$0xf]
        %v505 = vld [vmem:[%s441 + $0x44] sm:$0xf]
        %v506 = vld [vmem:[%s441 + $0x48] sm:$0xf]
        %v507 = vld [vmem:[%s441 + $0x4c] sm:$0xf]
        %v508 = vld [vmem:[%s441 + $0x50] sm:$0xf]
        %v509 = vld [vmem:[%s441 + $0x54] sm:$0xf]
        %v510 = vld [vmem:[%s441 + $0x58] sm:$0xf]
        %v511 = vld [vmem:[%s441 + $0x5c] sm:$0xf]
        %v512 = vld [vmem:[%s441 + $0x60] sm:$0xf]
        %v513 = vld [vmem:[%s441 + $0x64] sm:$0xf]
        %v514 = vld [vmem:[%s441 + $0x68] sm:$0xf]
        %v515 = vld [vmem:[%s441 + $0x6c] sm:$0xf]
        %v516 = vld [vmem:[%s441 + $0x70] sm:$0xf]
        %v517 = vld [vmem:[%s441 + $0x74] sm:$0xf]
        %v518 = vld [vmem:[%s441 + $0x78] sm:$0xf]
        %v519 = vld [vmem:[%s441 + $0x7c] sm:$0xf]
        %v520 = vld [vmem:[#allocation2] sm:$0xff]
        %v521 = vld [vmem:[#allocation2 + $0x8] sm:$0xff]
        %v522 = vld [vmem:[#allocation2 + $0x10] sm:$0xff]
        %v523 = vld [vmem:[#allocation2 + $0x18] sm:$0xff]
        %v524 = vld [vmem:[#allocation2 + $0x20] sm:$0xff]
        %v525 = vld [vmem:[#allocation2 + $0x28] sm:$0xff]
        %v526 = vld [vmem:[#allocation2 + $0x30] sm:$0xff]
        %v527 = vld [vmem:[#allocation2 + $0x38] sm:$0xff]
        %v528 = vld [vmem:[#allocation2 + $0x40] sm:$0xff]
        %v529 = vld [vmem:[#allocation2 + $0x48] sm:$0xff]
        %v530 = vld [vmem:[#allocation2 + $0x50] sm:$0xff]
        %v531 = vld [vmem:[#allocation2 + $0x58] sm:$0xff]
        %v532 = vld [vmem:[#allocation2 + $0x60] sm:$0xff]
        %v533 = vld [vmem:[#allocation2 + $0x68] sm:$0xff]
        %v534 = vld [vmem:[#allocation2 + $0x70] sm:$0xff]
        %v535 = vld [vmem:[#allocation2 + $0x78] sm:$0xff]
        %v536 = vld [vmem:[%s382] sm:$0xff]
        %v537 = vld [vmem:[%s382 + $0x8] sm:$0xff]
        %v538 = vld [vmem:[%s382 + $0x10] sm:$0xff]
        %v539 = vld [vmem:[%s382 + $0x18] sm:$0xff]
        %v540 = vld [vmem:[%s382 + $0x20] sm:$0xff]
        %v541 = vld [vmem:[%s382 + $0x28] sm:$0xff]
        %v542 = vld [vmem:[%s382 + $0x30] sm:$0xff]
        %v543 = vld [vmem:[%s382 + $0x38] sm:$0xff]
        %v544 = vunpack.c.l.s8.bf16 %v536
        %v545 = vunpack.c.l.s8.bf16 %v537
        %v546 = vunpack.c.h.s8.bf16 %v536
        %v547 = vunpack.c.h.s8.bf16 %v537
        %v548 = vunpack.c.l.s8.bf16 %v538
        %v549 = vunpack.c.l.s8.bf16 %v539
        %v550 = vunpack.c.h.s8.bf16 %v538
        %v551 = vunpack.c.h.s8.bf16 %v539
        %v552 = vunpack.c.l.s8.bf16 %v540
        %v553 = vunpack.c.l.s8.bf16 %v541
        %v554 = vunpack.c.h.s8.bf16 %v540
        %v555 = vunpack.c.h.s8.bf16 %v541
        %v556 = vunpack.c.l.s8.bf16 %v542
        %v557 = vunpack.c.l.s8.bf16 %v543
        %v558 = vunpack.c.h.s8.bf16 %v542
        %v559 = vunpack.c.h.s8.bf16 %v543
        %v592 = vunpack.c.l.b16 %v488
        %v593 = vunpack.c.l.b16 %v489
        %v594 = vunpack.c.l.b16 %v490
        %v595 = vunpack.c.l.b16 %v491
        %v596 = vunpack.c.l.b16 %v492
        %v597 = vunpack.c.l.b16 %v493
        %v598 = vunpack.c.l.b16 %v494
        %v599 = vunpack.c.l.b16 %v495
        %v600 = vunpack.c.l.b16 %v496
        %v601 = vunpack.c.l.b16 %v497
        %v602 = vunpack.c.l.b16 %v498
        %v603 = vunpack.c.l.b16 %v499
        %v604 = vunpack.c.l.b16 %v500
        %v605 = vunpack.c.l.b16 %v501
        %v606 = vunpack.c.l.b16 %v502
        %v607 = vunpack.c.l.b16 %v503
        %v608 = vunpack.c.l.b16 %v504
        %v609 = vunpack.c.l.b16 %v505
        %v610 = vunpack.c.l.b16 %v506
        %v611 = vunpack.c.l.b16 %v507
        %v612 = vunpack.c.l.b16 %v508
        %v613 = vunpack.c.l.b16 %v509
        %v614 = vunpack.c.l.b16 %v510
        %v615 = vunpack.c.l.b16 %v511
        %v616 = vunpack.c.l.b16 %v512
        %v617 = vunpack.c.l.b16 %v513
        %v618 = vunpack.c.l.b16 %v514
        %v619 = vunpack.c.l.b16 %v515
        %v620 = vunpack.c.l.b16 %v516
        %v621 = vunpack.c.l.b16 %v517
        %v622 = vunpack.c.l.b16 %v518
        %v623 = vunpack.c.l.b16 %v519
        %v624 = vpack.c.b16 %v593, %v592
        %v625 = vpack.c.b16 %v595, %v594
        %v626 = vpack.c.b16 %v597, %v596
        %v627 = vpack.c.b16 %v599, %v598
        %v628 = vpack.c.b16 %v601, %v600
        %v629 = vpack.c.b16 %v603, %v602
        %v630 = vpack.c.b16 %v605, %v604
        %v631 = vpack.c.b16 %v607, %v606
        %v632 = vpack.c.b16 %v609, %v608
        %v633 = vpack.c.b16 %v611, %v610
        %v634 = vpack.c.b16 %v613, %v612
        %v635 = vpack.c.b16 %v615, %v614
        %v636 = vpack.c.b16 %v617, %v616
        %v637 = vpack.c.b16 %v619, %v618
        %v638 = vpack.c.b16 %v621, %v620
        %v639 = vpack.c.b16 %v623, %v622
        %656 = vmatprep.subr.bf16.mxu0 0
        %657 = vmatpush1.bf16.msra.mxu0 %v631
        %658 = vmatprep.subr.bf16.mxu0 0
        %659 = vmatpush1.bf16.msra.mxu0 %v630
        %660 = vmatprep.subr.bf16.mxu0 0
        %661 = vmatpush1.bf16.msra.mxu0 %v629
        %662 = vmatprep.subr.bf16.mxu0 0
        %663 = vmatpush1.bf16.msra.mxu0 %v628
        %664 = vmatprep.subr.bf16.mxu0 0
        %665 = vmatpush1.bf16.msra.mxu0 %v627
        %666 = vmatprep.subr.bf16.mxu0 0
        %667 = vmatpush1.bf16.msra.mxu0 %v626
        %668 = vmatprep.subr.bf16.mxu0 0
        %669 = vmatpush1.bf16.msra.mxu0 %v625
        %670 = vmatprep.subr.bf16.mxu0 0
        %671 = vmatpush1.bf16.msra.mxu0 %v624
        %672 = vmatprep.subr.bf16.mxu0 0
        %673 = vmatpush2.bf16.msra.mxu0 %v639
        %674 = vmatprep.subr.bf16.mxu0 0
        %675 = vmatpush2.bf16.msra.mxu0 %v638
        %676 = vmatprep.subr.bf16.mxu0 0
        %677 = vmatpush2.bf16.msra.mxu0 %v637
        %678 = vmatprep.subr.bf16.mxu0 0
        %679 = vmatpush2.bf16.msra.mxu0 %v636
        %680 = vmatprep.subr.bf16.mxu0 0
        %681 = vmatpush2.bf16.msra.mxu0 %v635
        %682 = vmatprep.subr.bf16.mxu0 0
        %683 = vmatpush2.bf16.msra.mxu0 %v634
        %684 = vmatprep.subr.bf16.mxu0 0
        %685 = vmatpush2.bf16.msra.mxu0 %v633
        %686 = vmatprep.subr.bf16.mxu0 0
        %687 = vmatpush2.bf16.msra.mxu0 %v632
        %688 = vmatprep.mubr.bf16.mxu0 %v545
        %689 = vmatmul.mubr.bf16.gmra.mxu0 %v544
        %v690 = vpop.f32.mrf.mxu0
        %v691 = vadd.f32 0.0, %v690
        %v692 = vpop.f32.mrf.mxu0
        %v693 = vpop.f32.mrf.mxu0
        %v694 = vadd.f32 0.0, %v693
        %v695 = vpop.f32.mrf.mxu0
        %696 = vmatprep.mubr.bf16.mxu0 %v547
        %697 = vmatmul.mubr.bf16.gmra.mxu0 %v546
        %v698 = vpop.f32.mrf.mxu0
        %v699 = vadd.f32 0.0, %v698
        %v700 = vpop.f32.mrf.mxu0
        %v701 = vpop.f32.mrf.mxu0
        %v702 = vadd.f32 0.0, %v701
        %v703 = vpop.f32.mrf.mxu0
        %704 = vmatprep.mubr.bf16.mxu0 %v549
        %705 = vmatmul.mubr.bf16.gmra.mxu0 %v548
        %v706 = vpop.f32.mrf.mxu0
        %v707 = vadd.f32 0.0, %v706
        %v708 = vpop.f32.mrf.mxu0
        %v709 = vpop.f32.mrf.mxu0
        %v710 = vadd.f32 0.0, %v709
        %v711 = vpop.f32.mrf.mxu0
        %712 = vmatprep.mubr.bf16.mxu0 %v551
        %713 = vmatmul.mubr.bf16.gmra.mxu0 %v550
        %v714 = vpop.f32.mrf.mxu0
        %v715 = vadd.f32 0.0, %v714
        %v716 = vpop.f32.mrf.mxu0
        %v717 = vpop.f32.mrf.mxu0
        %v718 = vadd.f32 0.0, %v717
        %v719 = vpop.f32.mrf.mxu0
        %720 = vmatprep.mubr.bf16.mxu0 %v553
        %721 = vmatmul.mubr.bf16.gmra.mxu0 %v552
        %v722 = vpop.f32.mrf.mxu0
        %v723 = vadd.f32 0.0, %v722
        %v724 = vpop.f32.mrf.mxu0
        %v725 = vpop.f32.mrf.mxu0
        %v726 = vadd.f32 0.0, %v725
        %v727 = vpop.f32.mrf.mxu0
        %728 = vmatprep.mubr.bf16.mxu0 %v555
        %729 = vmatmul.mubr.bf16.gmra.mxu0 %v554
        %v730 = vpop.f32.mrf.mxu0
        %v731 = vadd.f32 0.0, %v730
        %v732 = vpop.f32.mrf.mxu0
        %v733 = vpop.f32.mrf.mxu0
        %v734 = vadd.f32 0.0, %v733
        %v735 = vpop.f32.mrf.mxu0
        %736 = vmatprep.mubr.bf16.mxu0 %v557
        %737 = vmatmul.mubr.bf16.gmra.mxu0 %v556
        %v738 = vpop.f32.mrf.mxu0
        %v739 = vadd.f32 0.0, %v738
        %v740 = vpop.f32.mrf.mxu0
        %v741 = vpop.f32.mrf.mxu0
        %v742 = vadd.f32 0.0, %v741
        %v743 = vpop.f32.mrf.mxu0
        %744 = vmatprep.mubr.bf16.mxu0 %v559
        %745 = vmatmul.mubr.bf16.gmra.mxu0 %v558
        %v746 = vpop.f32.mrf.mxu0
        %v747 = vadd.f32 0.0, %v746
        %v748 = vpop.f32.mrf.mxu0
        %v749 = vpop.f32.mrf.mxu0
        %v750 = vadd.f32 0.0, %v749
        %v751 = vpop.f32.mrf.mxu0
        %752 = vdwg.mxu0
        %v753 = vadd.f32 %v520, %v691
        %v754 = vadd.f32 %v521, %v694
        %v755 = vadd.f32 %v522, %v699
        %v756 = vadd.f32 %v523, %v702
        %v757 = vadd.f32 %v524, %v707
        %v758 = vadd.f32 %v525, %v710
        %v759 = vadd.f32 %v526, %v715
        %v760 = vadd.f32 %v527, %v718
        %v761 = vadd.f32 %v528, %v723
        %v762 = vadd.f32 %v529, %v726
        %v763 = vadd.f32 %v530, %v731
        %v764 = vadd.f32 %v531, %v734
        %v765 = vadd.f32 %v532, %v739
        %v766 = vadd.f32 %v533, %v742
        %v767 = vadd.f32 %v534, %v747
        %v768 = vadd.f32 %v535, %v750
        %769 = vst [vmem:[#allocation2] sm:$0xff] %v753
        %770 = vst [vmem:[#allocation2 + $0x8] sm:$0xff] %v754
        %771 = vst [vmem:[#allocation2 + $0x10] sm:$0xff] %v755
        %772 = vst [vmem:[#allocation2 + $0x18] sm:$0xff] %v756
        %773 = vst [vmem:[#allocation2 + $0x20] sm:$0xff] %v757
        %774 = vst [vmem:[#allocation2 + $0x28] sm:$0xff] %v758
        %775 = vst [vmem:[#allocation2 + $0x30] sm:$0xff] %v759
        %776 = vst [vmem:[#allocation2 + $0x38] sm:$0xff] %v760
        %777 = vst [vmem:[#allocation2 + $0x40] sm:$0xff] %v761
        %778 = vst [vmem:[#allocation2 + $0x48] sm:$0xff] %v762
        %779 = vst [vmem:[#allocation2 + $0x50] sm:$0xff] %v763
        %780 = vst [vmem:[#allocation2 + $0x58] sm:$0xff] %v764
        %781 = vst [vmem:[#allocation2 + $0x60] sm:$0xff] %v765
        %782 = vst [vmem:[#allocation2 + $0x68] sm:$0xff] %v766
        %783 = vst [vmem:[#allocation2 + $0x70] sm:$0xff] %v767
        %784 = vst [vmem:[#allocation2 + $0x78] sm:$0xff] %v768
        %p785 = scmp.eq.s32.totalorder %s26, 1
        // Predicated region
        $region80: #{gcn_forward.7} parent=70 // pred_check
          %p786 = pneg %p785
        $region81: #{gcn_forward.7} parent=70 // pred_check_branch
          %788 = sbr.rel (%p786) target = $region83
        $region82: #{gcn_forward.7} parent=70 // pred_region
          %v789 = vld [vmem:[#allocation2] sm:$0xff]
          %v790 = vld [vmem:[#allocation2 + $0x8] sm:$0xff]
          %v791 = vld [vmem:[#allocation2 + $0x10] sm:$0xff]
          %v792 = vld [vmem:[#allocation2 + $0x18] sm:$0xff]
          %v793 = vld [vmem:[#allocation2 + $0x20] sm:$0xff]
          %v794 = vld [vmem:[#allocation2 + $0x28] sm:$0xff]
          %v795 = vld [vmem:[#allocation2 + $0x30] sm:$0xff]
          %v796 = vld [vmem:[#allocation2 + $0x38] sm:$0xff]
          %v797 = vld [vmem:[#allocation2 + $0x40] sm:$0xff]
          %v798 = vld [vmem:[#allocation2 + $0x48] sm:$0xff]
          %v799 = vld [vmem:[#allocation2 + $0x50] sm:$0xff]
          %v800 = vld [vmem:[#allocation2 + $0x58] sm:$0xff]
          %v801 = vld [vmem:[#allocation2 + $0x60] sm:$0xff]
          %v802 = vld [vmem:[#allocation2 + $0x68] sm:$0xff]
          %v803 = vld [vmem:[#allocation2 + $0x70] sm:$0xff]
          %v804 = vld [vmem:[#allocation2 + $0x78] sm:$0xff]
          %vm805 = vcmp.ge.f32.partialorder %v789, 0.0
          %vm806 = vcmp.ge.f32.partialorder %v790, 0.0
          %vm807 = vcmp.ge.f32.partialorder %v791, 0.0
          %vm808 = vcmp.ge.f32.partialorder %v792, 0.0
          %vm809 = vcmp.ge.f32.partialorder %v793, 0.0
          %vm810 = vcmp.ge.f32.partialorder %v794, 0.0
          %vm811 = vcmp.ge.f32.partialorder %v795, 0.0
          %vm812 = vcmp.ge.f32.partialorder %v796, 0.0
          %vm813 = vcmp.ge.f32.partialorder %v797, 0.0
          %vm814 = vcmp.ge.f32.partialorder %v798, 0.0
          %vm815 = vcmp.ge.f32.partialorder %v799, 0.0
          %vm816 = vcmp.ge.f32.partialorder %v800, 0.0
          %vm817 = vcmp.ge.f32.partialorder %v801, 0.0
          %vm818 = vcmp.ge.f32.partialorder %v802, 0.0
          %vm819 = vcmp.ge.f32.partialorder %v803, 0.0
          %vm820 = vcmp.ge.f32.partialorder %v804, 0.0
          %v821 = vmul.f32 %v789, 0.01
          %v822 = vmul.f32 %v790, 0.01
          %v823 = vmul.f32 %v791, 0.01
          %v824 = vmul.f32 %v792, 0.01
          %v825 = vmul.f32 %v793, 0.01
          %v826 = vmul.f32 %v794, 0.01
          %v827 = vmul.f32 %v795, 0.01
          %v828 = vmul.f32 %v796, 0.01
          %v829 = vmul.f32 %v797, 0.01
          %v830 = vmul.f32 %v798, 0.01
          %v831 = vmul.f32 %v799, 0.01
          %v832 = vmul.f32 %v800, 0.01
          %v833 = vmul.f32 %v801, 0.01
          %v834 = vmul.f32 %v802, 0.01
          %v835 = vmul.f32 %v803, 0.01
          %v836 = vmul.f32 %v804, 0.01
          %v837 = vsel %vm805, %v789, %v821
          %v838 = vsel %vm806, %v790, %v822
          %v839 = vsel %vm807, %v791, %v823
          %v840 = vsel %vm808, %v792, %v824
          %v841 = vsel %vm809, %v793, %v825
          %v842 = vsel %vm810, %v794, %v826
          %v843 = vsel %vm811, %v795, %v827
          %v844 = vsel %vm812, %v796, %v828
          %v845 = vsel %vm813, %v797, %v829
          %v846 = vsel %vm814, %v798, %v830
          %v847 = vsel %vm815, %v799, %v831
          %v848 = vsel %vm816, %v800, %v832
          %v849 = vsel %vm817, %v801, %v833
          %v850 = vsel %vm818, %v802, %v834
          %v851 = vsel %vm819, %v803, %v835
          %v852 = vsel %vm820, %v804, %v836
          %v853 = vpack.c.bf16 %v838, %v837
          %v854 = vpack.c.bf16 %v840, %v839
          %v855 = vpack.c.bf16 %v842, %v841
          %v856 = vpack.c.bf16 %v844, %v843
          %v857 = vpack.c.bf16 %v846, %v845
          %v858 = vpack.c.bf16 %v848, %v847
          %v859 = vpack.c.bf16 %v850, %v849
          %v860 = vpack.c.bf16 %v852, %v851
          %v861 = vld [vmem:[%s2] sm:$0xf]
          %v862 = vld [vmem:[%s2 + $0x4] sm:$0xf]
          %v863 = vld [vmem:[%s2 + $0x8] sm:$0xf]
          %v864 = vld [vmem:[%s2 + $0xc] sm:$0xf]
          %v865 = vld [vmem:[%s2 + $0x10] sm:$0xf]
          %v866 = vld [vmem:[%s2 + $0x14] sm:$0xf]
          %v867 = vld [vmem:[%s2 + $0x18] sm:$0xf]
          %v868 = vld [vmem:[%s2 + $0x1c] sm:$0xf]
          %v869 = vld [vmem:[%s2 + $0x20] sm:$0xf]
          %v870 = vld [vmem:[%s2 + $0x24] sm:$0xf]
          %v871 = vld [vmem:[%s2 + $0x28] sm:$0xf]
          %v872 = vld [vmem:[%s2 + $0x2c] sm:$0xf]
          %v873 = vld [vmem:[%s2 + $0x30] sm:$0xf]
          %v874 = vld [vmem:[%s2 + $0x34] sm:$0xf]
          %v875 = vld [vmem:[%s2 + $0x38] sm:$0xf]
          %v876 = vld [vmem:[%s2 + $0x3c] sm:$0xf]
          %v877 = vld [vmem:[%s3] sm:$0x1]
          %v879 = vlaneseq
          %v880 = vshrl.u32 %v879, 7
          %v881 = vsub.s32 0, %v880
          %v882 = vrot.slane %v877, %v881
          %v900 = vunpack.c.l.b16 %v861
          %v901 = vunpack.c.l.b16 %v862
          %v902 = vunpack.c.l.b16 %v863
          %v903 = vunpack.c.l.b16 %v864
          %v904 = vunpack.c.l.b16 %v865
          %v905 = vunpack.c.l.b16 %v866
          %v906 = vunpack.c.l.b16 %v867
          %v907 = vunpack.c.l.b16 %v868
          %v908 = vunpack.c.l.b16 %v869
          %v909 = vunpack.c.l.b16 %v870
          %v910 = vunpack.c.l.b16 %v871
          %v911 = vunpack.c.l.b16 %v872
          %v912 = vunpack.c.l.b16 %v873
          %v913 = vunpack.c.l.b16 %v874
          %v914 = vunpack.c.l.b16 %v875
          %v915 = vunpack.c.l.b16 %v876
          %v916 = vpack.c.b16 %v901, %v900
          %v917 = vpack.c.b16 %v903, %v902
          %v918 = vpack.c.b16 %v905, %v904
          %v919 = vpack.c.b16 %v907, %v906
          %v920 = vpack.c.b16 %v909, %v908
          %v921 = vpack.c.b16 %v911, %v910
          %v922 = vpack.c.b16 %v913, %v912
          %v923 = vpack.c.b16 %v915, %v914
          %932 = vmatprep.subr.bf16.mxu0 0
          %933 = vmatpush1.bf16.msra.mxu0 %v923
          %934 = vmatprep.subr.bf16.mxu0 0
          %935 = vmatpush1.bf16.msra.mxu0 %v922
          %936 = vmatprep.subr.bf16.mxu0 0
          %937 = vmatpush1.bf16.msra.mxu0 %v921
          %938 = vmatprep.subr.bf16.mxu0 0
          %939 = vmatpush1.bf16.msra.mxu0 %v920
          %940 = vmatprep.subr.bf16.mxu0 0
          %941 = vmatpush1.bf16.msra.mxu0 %v919
          %942 = vmatprep.subr.bf16.mxu0 0
          %943 = vmatpush1.bf16.msra.mxu0 %v918
          %944 = vmatprep.subr.bf16.mxu0 0
          %945 = vmatpush1.bf16.msra.mxu0 %v917
          %946 = vmatprep.subr.bf16.mxu0 0
          %947 = vmatpush1.bf16.msra.mxu0 %v916
          %948 = vmatprep.subr.bf16.mxu0 0
          %949 = vmatpush2.bf16.msra.mxu0 0
          %950 = vmatprep.subr.bf16.mxu0 0
          %951 = vmatpush2.bf16.msra.mxu0 0
          %952 = vmatprep.subr.bf16.mxu0 0
          %953 = vmatpush2.bf16.msra.mxu0 0
          %954 = vmatprep.subr.bf16.mxu0 0
          %955 = vmatpush2.bf16.msra.mxu0 0
          %956 = vmatprep.subr.bf16.mxu0 0
          %957 = vmatpush2.bf16.msra.mxu0 0
          %958 = vmatprep.subr.bf16.mxu0 0
          %959 = vmatpush2.bf16.msra.mxu0 0
          %960 = vmatprep.subr.bf16.mxu0 0
          %961 = vmatpush2.bf16.msra.mxu0 0
          %962 = vmatprep.subr.bf16.mxu0 0
          %963 = vmatpush2.bf16.msra.mxu0 0
          %964 = vmatprep.mubr.bf16.mxu0 0
          %965 = vmatmul.mubr.bf16.gmra.mxu0 %v853
          %v966 = vpop.f32.mrf.mxu0
          %v967 = vadd.f32 %v882, %v966
          %v968 = vpop.f32.mrf.mxu0
          %v969 = vpop.f32.mrf.mxu0
          %v970 = vadd.f32 %v882, %v969
          %v971 = vpop.f32.mrf.mxu0
          %972 = vmatprep.mubr.bf16.mxu0 0
          %973 = vmatmul.mubr.bf16.gmra.mxu0 %v854
          %v974 = vpop.f32.mrf.mxu0
          %v975 = vadd.f32 %v882, %v974
          %v976 = vpop.f32.mrf.mxu0
          %v977 = vpop.f32.mrf.mxu0
          %v978 = vadd.f32 %v882, %v977
          %v979 = vpop.f32.mrf.mxu0
          %980 = vmatprep.mubr.bf16.mxu0 0
          %981 = vmatmul.mubr.bf16.gmra.mxu0 %v855
          %v982 = vpop.f32.mrf.mxu0
          %v983 = vadd.f32 %v882, %v982
          %v984 = vpop.f32.mrf.mxu0
          %v985 = vpop.f32.mrf.mxu0
          %v986 = vadd.f32 %v882, %v985
          %v987 = vpop.f32.mrf.mxu0
          %988 = vmatprep.mubr.bf16.mxu0 0
          %989 = vmatmul.mubr.bf16.gmra.mxu0 %v856
          %v990 = vpop.f32.mrf.mxu0
          %v991 = vadd.f32 %v882, %v990
          %v992 = vpop.f32.mrf.mxu0
          %v993 = vpop.f32.mrf.mxu0
          %v994 = vadd.f32 %v882, %v993
          %v995 = vpop.f32.mrf.mxu0
          %996 = vmatprep.mubr.bf16.mxu0 0
          %997 = vmatmul.mubr.bf16.gmra.mxu0 %v857
          %v998 = vpop.f32.mrf.mxu0
          %v999 = vadd.f32 %v882, %v998
          %v1000 = vpop.f32.mrf.mxu0
          %v1001 = vpop.f32.mrf.mxu0
          %v1002 = vadd.f32 %v882, %v1001
          %v1003 = vpop.f32.mrf.mxu0
          %1004 = vmatprep.mubr.bf16.mxu0 0
          %1005 = vmatmul.mubr.bf16.gmra.mxu0 %v858
          %v1006 = vpop.f32.mrf.mxu0
          %v1007 = vadd.f32 %v882, %v1006
          %v1008 = vpop.f32.mrf.mxu0
          %v1009 = vpop.f32.mrf.mxu0
          %v1010 = vadd.f32 %v882, %v1009
          %v1011 = vpop.f32.mrf.mxu0
          %1012 = vmatprep.mubr.bf16.mxu0 0
          %1013 = vmatmul.mubr.bf16.gmra.mxu0 %v859
          %v1014 = vpop.f32.mrf.mxu0
          %v1015 = vadd.f32 %v882, %v1014
          %v1016 = vpop.f32.mrf.mxu0
          %v1017 = vpop.f32.mrf.mxu0
          %v1018 = vadd.f32 %v882, %v1017
          %v1019 = vpop.f32.mrf.mxu0
          %1020 = vmatprep.mubr.bf16.mxu0 0
          %1021 = vmatmul.mubr.bf16.gmra.mxu0 %v860
          %v1022 = vpop.f32.mrf.mxu0
          %v1023 = vadd.f32 %v882, %v1022
          %v1024 = vpop.f32.mrf.mxu0
          %v1025 = vpop.f32.mrf.mxu0
          %v1026 = vadd.f32 %v882, %v1025
          %v1027 = vpop.f32.mrf.mxu0
          %1028 = vdwg.mxu0
          %v1029 = vld [vmem:[%s447] sm:$0xf]
          %v1030 = vld [vmem:[%s447 + $0x4] sm:$0xf]
          %v1031 = vld [vmem:[%s447 + $0x8] sm:$0xf]
          %v1032 = vld [vmem:[%s447 + $0xc] sm:$0xf]
          %v1033 = vld [vmem:[%s447 + $0x10] sm:$0xf]
          %v1034 = vld [vmem:[%s447 + $0x14] sm:$0xf]
          %v1035 = vld [vmem:[%s447 + $0x18] sm:$0xf]
          %v1036 = vld [vmem:[%s447 + $0x1c] sm:$0xf]
          %v1037 = vld [vmem:[%s447 + $0x20] sm:$0xf]
          %v1038 = vld [vmem:[%s447 + $0x24] sm:$0xf]
          %v1039 = vld [vmem:[%s447 + $0x28] sm:$0xf]
          %v1040 = vld [vmem:[%s447 + $0x2c] sm:$0xf]
          %v1041 = vld [vmem:[%s447 + $0x30] sm:$0xf]
          %v1042 = vld [vmem:[%s447 + $0x34] sm:$0xf]
          %v1043 = vld [vmem:[%s447 + $0x38] sm:$0xf]
          %v1044 = vld [vmem:[%s447 + $0x3c] sm:$0xf]
          %v1045 = vunpack.c.l.bf16 %v1029
          %v1046 = vunpack.c.l.bf16 %v1030
          %v1047 = vunpack.c.l.bf16 %v1031
          %v1048 = vunpack.c.l.bf16 %v1032
          %v1049 = vunpack.c.l.bf16 %v1033
          %v1050 = vunpack.c.l.bf16 %v1034
          %v1051 = vunpack.c.l.bf16 %v1035
          %v1052 = vunpack.c.l.bf16 %v1036
          %v1053 = vunpack.c.l.bf16 %v1037
          %v1054 = vunpack.c.l.bf16 %v1038
          %v1055 = vunpack.c.l.bf16 %v1039
          %v1056 = vunpack.c.l.bf16 %v1040
          %v1057 = vunpack.c.l.bf16 %v1041
          %v1058 = vunpack.c.l.bf16 %v1042
          %v1059 = vunpack.c.l.bf16 %v1043
          %v1060 = vunpack.c.l.bf16 %v1044
          %v1061 = vadd.f32 %v967, %v1045
          %v1062 = vadd.f32 %v970, %v1046
          %v1063 = vadd.f32 %v975, %v1047
          %v1064 = vadd.f32 %v978, %v1048
          %v1065 = vadd.f32 %v983, %v1049
          %v1066 = vadd.f32 %v986, %v1050
          %v1067 = vadd.f32 %v991, %v1051
          %v1068 = vadd.f32 %v994, %v1052
          %v1069 = vadd.f32 %v999, %v1053
          %v1070 = vadd.f32 %v1002, %v1054
          %v1071 = vadd.f32 %v1007, %v1055
          %v1072 = vadd.f32 %v1010, %v1056
          %v1073 = vadd.f32 %v1015, %v1057
          %v1074 = vadd.f32 %v1018, %v1058
          %v1075 = vadd.f32 %v1023, %v1059
          %v1076 = vadd.f32 %v1026, %v1060
          %vm1077 = vcmp.ge.f32.partialorder %v1061, 0.0
          %vm1078 = vcmp.ge.f32.partialorder %v1062, 0.0
          %vm1079 = vcmp.ge.f32.partialorder %v1063, 0.0
          %vm1080 = vcmp.ge.f32.partialorder %v1064, 0.0
          %vm1081 = vcmp.ge.f32.partialorder %v1065, 0.0
          %vm1082 = vcmp.ge.f32.partialorder %v1066, 0.0
          %vm1083 = vcmp.ge.f32.partialorder %v1067, 0.0
          %vm1084 = vcmp.ge.f32.partialorder %v1068, 0.0
          %vm1085 = vcmp.ge.f32.partialorder %v1069, 0.0
          %vm1086 = vcmp.ge.f32.partialorder %v1070, 0.0
          %vm1087 = vcmp.ge.f32.partialorder %v1071, 0.0
          %vm1088 = vcmp.ge.f32.partialorder %v1072, 0.0
          %vm1089 = vcmp.ge.f32.partialorder %v1073, 0.0
          %vm1090 = vcmp.ge.f32.partialorder %v1074, 0.0
          %vm1091 = vcmp.ge.f32.partialorder %v1075, 0.0
          %vm1092 = vcmp.ge.f32.partialorder %v1076, 0.0
          %v1093 = vmul.f32 %v1061, 0.01
          %v1094 = vmul.f32 %v1062, 0.01
          %v1095 = vmul.f32 %v1063, 0.01
          %v1096 = vmul.f32 %v1064, 0.01
          %v1097 = vmul.f32 %v1065, 0.01
          %v1098 = vmul.f32 %v1066, 0.01
          %v1099 = vmul.f32 %v1067, 0.01
          %v1100 = vmul.f32 %v1068, 0.01
          %v1101 = vmul.f32 %v1069, 0.01
          %v1102 = vmul.f32 %v1070, 0.01
          %v1103 = vmul.f32 %v1071, 0.01
          %v1104 = vmul.f32 %v1072, 0.01
          %v1105 = vmul.f32 %v1073, 0.01
          %v1106 = vmul.f32 %v1074, 0.01
          %v1107 = vmul.f32 %v1075, 0.01
          %v1108 = vmul.f32 %v1076, 0.01
          %v1109 = vsel %vm1077, %v1061, %v1093
          %v1110 = vsel %vm1078, %v1062, %v1094
          %v1111 = vsel %vm1079, %v1063, %v1095
          %v1112 = vsel %vm1080, %v1064, %v1096
          %v1113 = vsel %vm1081, %v1065, %v1097
          %v1114 = vsel %vm1082, %v1066, %v1098
          %v1115 = vsel %vm1083, %v1067, %v1099
          %v1116 = vsel %vm1084, %v1068, %v1100
          %v1117 = vsel %vm1085, %v1069, %v1101
          %v1118 = vsel %vm1086, %v1070, %v1102
          %v1119 = vsel %vm1087, %v1071, %v1103
          %v1120 = vsel %vm1088, %v1072, %v1104
          %v1121 = vsel %vm1089, %v1073, %v1105
          %v1122 = vsel %vm1090, %v1074, %v1106
          %v1123 = vsel %vm1091, %v1075, %v1107
          %v1124 = vsel %vm1092, %v1076, %v1108
          %v1125 = vpack.c.bf16 %v1110, %v1109
          %v1126 = vpack.c.bf16 %v1112, %v1111
          %v1127 = vpack.c.bf16 %v1114, %v1113
          %v1128 = vpack.c.bf16 %v1116, %v1115
          %v1129 = vpack.c.bf16 %v1118, %v1117
          %v1130 = vpack.c.bf16 %v1120, %v1119
          %v1131 = vpack.c.bf16 %v1122, %v1121
          %v1132 = vpack.c.bf16 %v1124, %v1123
          %v1133 = vld [vmem:[%s5] sm:$0xff]
          %v1134 = vld [vmem:[%s5 + $0x8] sm:$0xff]
          %v1135 = vld [vmem:[%s5 + $0x10] sm:$0xff]
          %v1136 = vld [vmem:[%s5 + $0x18] sm:$0xff]
          %v1137 = vld [vmem:[%s5 + $0x20] sm:$0xff]
          %v1138 = vld [vmem:[%s5 + $0x28] sm:$0xff]
          %v1139 = vld [vmem:[%s5 + $0x30] sm:$0xff]
          %v1140 = vld [vmem:[%s5 + $0x38] sm:$0xff]
          %v1141 = vld [vmem:[%s5 + $0x40] sm:$0xff]
          %v1142 = vld [vmem:[%s5 + $0x48] sm:$0xff]
          %v1143 = vld [vmem:[%s5 + $0x50] sm:$0xff]
          %v1144 = vld [vmem:[%s5 + $0x58] sm:$0xff]
          %v1145 = vld [vmem:[%s5 + $0x60] sm:$0xff]
          %v1146 = vld [vmem:[%s5 + $0x68] sm:$0xff]
          %v1147 = vld [vmem:[%s5 + $0x70] sm:$0xff]
          %v1148 = vld [vmem:[%s5 + $0x78] sm:$0xff]
          %v1165 = vunpack.c.l.b16 %v1133
          %v1166 = vunpack.c.h.b16 %v1133
          %v1167 = vunpack.c.l.b16 %v1134
          %v1168 = vunpack.c.h.b16 %v1134
          %v1169 = vunpack.c.l.b16 %v1135
          %v1170 = vunpack.c.h.b16 %v1135
          %v1171 = vunpack.c.l.b16 %v1136
          %v1172 = vunpack.c.h.b16 %v1136
          %v1173 = vunpack.c.l.b16 %v1137
          %v1174 = vunpack.c.h.b16 %v1137
          %v1175 = vunpack.c.l.b16 %v1138
          %v1176 = vunpack.c.h.b16 %v1138
          %v1177 = vunpack.c.l.b16 %v1139
          %v1178 = vunpack.c.h.b16 %v1139
          %v1179 = vunpack.c.l.b16 %v1140
          %v1180 = vunpack.c.h.b16 %v1140
          %v1181 = vunpack.c.l.b16 %v1141
          %v1182 = vunpack.c.h.b16 %v1141
          %v1183 = vunpack.c.l.b16 %v1142
          %v1184 = vunpack.c.h.b16 %v1142
          %v1185 = vunpack.c.l.b16 %v1143
          %v1186 = vunpack.c.h.b16 %v1143
          %v1187 = vunpack.c.l.b16 %v1144
          %v1188 = vunpack.c.h.b16 %v1144
          %v1189 = vunpack.c.l.b16 %v1145
          %v1190 = vunpack.c.h.b16 %v1145
          %v1191 = vunpack.c.l.b16 %v1146
          %v1192 = vunpack.c.h.b16 %v1146
          %v1193 = vunpack.c.l.b16 %v1147
          %v1194 = vunpack.c.h.b16 %v1147
          %v1195 = vunpack.c.l.b16 %v1148
          %v1196 = vunpack.c.h.b16 %v1148
          %v1197 = vpack.c.b16 %v1167, %v1165
          %v1198 = vpack.c.b16 %v1168, %v1166
          %v1199 = vpack.c.b16 %v1171, %v1169
          %v1200 = vpack.c.b16 %v1172, %v1170
          %v1201 = vpack.c.b16 %v1175, %v1173
          %v1202 = vpack.c.b16 %v1176, %v1174
          %v1203 = vpack.c.b16 %v1179, %v1177
          %v1204 = vpack.c.b16 %v1180, %v1178
          %v1205 = vpack.c.b16 %v1183, %v1181
          %v1206 = vpack.c.b16 %v1184, %v1182
          %v1207 = vpack.c.b16 %v1187, %v1185
          %v1208 = vpack.c.b16 %v1188, %v1186
          %v1209 = vpack.c.b16 %v1191, %v1189
          %v1210 = vpack.c.b16 %v1192, %v1190
          %v1211 = vpack.c.b16 %v1195, %v1193
          %v1212 = vpack.c.b16 %v1196, %v1194
          %1229 = vmatprep.subr.bf16.mxu0 %v1212
          %1230 = vmatpush1.bf16.msra.mxu0 %v1211
          %1231 = vmatprep.subr.bf16.mxu0 %v1210
          %1232 = vmatpush1.bf16.msra.mxu0 %v1209
          %1233 = vmatprep.subr.bf16.mxu0 %v1208
          %1234 = vmatpush1.bf16.msra.mxu0 %v1207
          %1235 = vmatprep.subr.bf16.mxu0 %v1206
          %1236 = vmatpush1.bf16.msra.mxu0 %v1205
          %1237 = vmatprep.subr.bf16.mxu0 %v1204
          %1238 = vmatpush1.bf16.msra.mxu0 %v1203
          %1239 = vmatprep.subr.bf16.mxu0 %v1202
          %1240 = vmatpush1.bf16.msra.mxu0 %v1201
          %1241 = vmatprep.subr.bf16.mxu0 %v1200
          %1242 = vmatpush1.bf16.msra.mxu0 %v1199
          %1243 = vmatprep.subr.bf16.mxu0 %v1198
          %1244 = vmatpush1.bf16.msra.mxu0 %v1197
          %1245 = vmatprep.subr.bf16.mxu0 0
          %1246 = vmatpush2.bf16.msra.mxu0 0
          %1247 = vmatprep.subr.bf16.mxu0 0
          %1248 = vmatpush2.bf16.msra.mxu0 0
          %1249 = vmatprep.subr.bf16.mxu0 0
          %1250 = vmatpush2.bf16.msra.mxu0 0
          %1251 = vmatprep.subr.bf16.mxu0 0
          %1252 = vmatpush2.bf16.msra.mxu0 0
          %1253 = vmatprep.subr.bf16.mxu0 0
          %1254 = vmatpush2.bf16.msra.mxu0 0
          %1255 = vmatprep.subr.bf16.mxu0 0
          %1256 = vmatpush2.bf16.msra.mxu0 0
          %1257 = vmatprep.subr.bf16.mxu0 0
          %1258 = vmatpush2.bf16.msra.mxu0 0
          %1259 = vmatprep.subr.bf16.mxu0 0
          %1260 = vmatpush2.bf16.msra.mxu0 0
          %1261 = vmatprep.mubr.bf16.mxu0 0
          %1262 = vmatmul.mubr.bf16.gmra.mxu0 %v1125
          %v1263 = vpop.f32.mrf.mxu0
          %v1264 = vadd.f32 0.0, %v1263
          %v1265 = vpop.f32.mrf.mxu0
          %v1266 = vadd.f32 0.0, %v1265
          %v1267 = vpop.f32.mrf.mxu0
          %v1268 = vadd.f32 0.0, %v1267
          %v1269 = vpop.f32.mrf.mxu0
          %v1270 = vadd.f32 0.0, %v1269
          %1271 = vmatprep.mubr.bf16.mxu0 0
          %1272 = vmatmul.mubr.bf16.gmra.mxu0 %v1126
          %v1273 = vpop.f32.mrf.mxu0
          %v1274 = vadd.f32 0.0, %v1273
          %v1275 = vpop.f32.mrf.mxu0
          %v1276 = vadd.f32 0.0, %v1275
          %v1277 = vpop.f32.mrf.mxu0
          %v1278 = vadd.f32 0.0, %v1277
          %v1279 = vpop.f32.mrf.mxu0
          %v1280 = vadd.f32 0.0, %v1279
          %1281 = vmatprep.mubr.bf16.mxu0 0
          %1282 = vmatmul.mubr.bf16.gmra.mxu0 %v1127
          %v1283 = vpop.f32.mrf.mxu0
          %v1284 = vadd.f32 0.0, %v1283
          %v1285 = vpop.f32.mrf.mxu0
          %v1286 = vadd.f32 0.0, %v1285
          %v1287 = vpop.f32.mrf.mxu0
          %v1288 = vadd.f32 0.0, %v1287
          %v1289 = vpop.f32.mrf.mxu0
          %v1290 = vadd.f32 0.0, %v1289
          %1291 = vmatprep.mubr.bf16.mxu0 0
          %1292 = vmatmul.mubr.bf16.gmra.mxu0 %v1128
          %v1293 = vpop.f32.mrf.mxu0
          %v1294 = vadd.f32 0.0, %v1293
          %v1295 = vpop.f32.mrf.mxu0
          %v1296 = vadd.f32 0.0, %v1295
          %v1297 = vpop.f32.mrf.mxu0
          %v1298 = vadd.f32 0.0, %v1297
          %v1299 = vpop.f32.mrf.mxu0
          %v1300 = vadd.f32 0.0, %v1299
          %1301 = vmatprep.mubr.bf16.mxu0 0
          %1302 = vmatmul.mubr.bf16.gmra.mxu0 %v1129
          %v1303 = vpop.f32.mrf.mxu0
          %v1304 = vadd.f32 0.0, %v1303
          %v1305 = vpop.f32.mrf.mxu0
          %v1306 = vadd.f32 0.0, %v1305
          %v1307 = vpop.f32.mrf.mxu0
          %v1308 = vadd.f32 0.0, %v1307
          %v1309 = vpop.f32.mrf.mxu0
          %v1310 = vadd.f32 0.0, %v1309
          %1311 = vmatprep.mubr.bf16.mxu0 0
          %1312 = vmatmul.mubr.bf16.gmra.mxu0 %v1130
          %v1313 = vpop.f32.mrf.mxu0
          %v1314 = vadd.f32 0.0, %v1313
          %v1315 = vpop.f32.mrf.mxu0
          %v1316 = vadd.f32 0.0, %v1315
          %v1317 = vpop.f32.mrf.mxu0
          %v1318 = vadd.f32 0.0, %v1317
          %v1319 = vpop.f32.mrf.mxu0
          %v1320 = vadd.f32 0.0, %v1319
          %1321 = vmatprep.mubr.bf16.mxu0 0
          %1322 = vmatmul.mubr.bf16.gmra.mxu0 %v1131
          %v1323 = vpop.f32.mrf.mxu0
          %v1324 = vadd.f32 0.0, %v1323
          %v1325 = vpop.f32.mrf.mxu0
          %v1326 = vadd.f32 0.0, %v1325
          %v1327 = vpop.f32.mrf.mxu0
          %v1328 = vadd.f32 0.0, %v1327
          %v1329 = vpop.f32.mrf.mxu0
          %v1330 = vadd.f32 0.0, %v1329
          %1331 = vmatprep.mubr.bf16.mxu0 0
          %1332 = vmatmul.mubr.bf16.gmra.mxu0 %v1132
          %v1333 = vpop.f32.mrf.mxu0
          %v1334 = vadd.f32 0.0, %v1333
          %v1335 = vpop.f32.mrf.mxu0
          %v1336 = vadd.f32 0.0, %v1335
          %v1337 = vpop.f32.mrf.mxu0
          %v1338 = vadd.f32 0.0, %v1337
          %v1339 = vpop.f32.mrf.mxu0
          %v1340 = vadd.f32 0.0, %v1339
          %1341 = vdwg.mxu0
          %v1342 = vpack.c.bf16 %v1268, %v1264
          %v1343 = vpack.c.bf16 %v1278, %v1274
          %v1344 = vpack.c.bf16 %v1288, %v1284
          %v1345 = vpack.c.bf16 %v1298, %v1294
          %v1346 = vpack.c.bf16 %v1308, %v1304
          %v1347 = vpack.c.bf16 %v1318, %v1314
          %v1348 = vpack.c.bf16 %v1328, %v1324
          %v1349 = vpack.c.bf16 %v1338, %v1334
          %v1358 = vunpack.c.l.b16 %v1342
          %v1359 = vunpack.c.h.b16 %v1342
          %v1360 = vunpack.c.l.b16 %v1343
          %v1361 = vunpack.c.h.b16 %v1343
          %v1362 = vunpack.c.l.b16 %v1344
          %v1363 = vunpack.c.h.b16 %v1344
          %v1364 = vunpack.c.l.b16 %v1345
          %v1365 = vunpack.c.h.b16 %v1345
          %v1366 = vunpack.c.l.b16 %v1346
          %v1367 = vunpack.c.h.b16 %v1346
          %v1368 = vunpack.c.l.b16 %v1347
          %v1369 = vunpack.c.h.b16 %v1347
          %v1370 = vunpack.c.l.b16 %v1348
          %v1371 = vunpack.c.h.b16 %v1348
          %v1372 = vunpack.c.l.b16 %v1349
          %v1373 = vunpack.c.h.b16 %v1349
          %v1374 = vpack.c.b16 %v1358, %v1358
          %v1375 = vpack.c.b16 %v1359, %v1359
          %v1376 = vpack.c.b16 %v1360, %v1360
          %v1377 = vpack.c.b16 %v1361, %v1361
          %v1378 = vpack.c.b16 %v1362, %v1362
          %v1379 = vpack.c.b16 %v1363, %v1363
          %v1380 = vpack.c.b16 %v1364, %v1364
          %v1381 = vpack.c.b16 %v1365, %v1365
          %v1382 = vpack.c.b16 %v1366, %v1366
          %v1383 = vpack.c.b16 %v1367, %v1367
          %v1384 = vpack.c.b16 %v1368, %v1368
          %v1385 = vpack.c.b16 %v1369, %v1369
          %v1386 = vpack.c.b16 %v1370, %v1370
          %v1387 = vpack.c.b16 %v1371, %v1371
          %v1388 = vpack.c.b16 %v1372, %v1372
          %v1389 = vpack.c.b16 %v1373, %v1373
          %1406 = vst [vmem:[%s459] sm:$0xf] %v1374
          %1407 = vst [vmem:[%s459 + $0x4] sm:$0xf] %v1375
          %1408 = vst [vmem:[%s459 + $0x8] sm:$0xf] %v1376
          %1409 = vst [vmem:[%s459 + $0xc] sm:$0xf] %v1377
          %1410 = vst [vmem:[%s459 + $0x10] sm:$0xf] %v1378
          %1411 = vst [vmem:[%s459 + $0x14] sm:$0xf] %v1379
          %1412 = vst [vmem:[%s459 + $0x18] sm:$0xf] %v1380
          %1413 = vst [vmem:[%s459 + $0x1c] sm:$0xf] %v1381
          %1414 = vst [vmem:[%s459 + $0x20] sm:$0xf] %v1382
          %1415 = vst [vmem:[%s459 + $0x24] sm:$0xf] %v1383
          %1416 = vst [vmem:[%s459 + $0x28] sm:$0xf] %v1384
          %1417 = vst [vmem:[%s459 + $0x2c] sm:$0xf] %v1385
          %1418 = vst [vmem:[%s459 + $0x30] sm:$0xf] %v1386
          %1419 = vst [vmem:[%s459 + $0x34] sm:$0xf] %v1387
          %1420 = vst [vmem:[%s459 + $0x38] sm:$0xf] %v1388
          %1421 = vst [vmem:[%s459 + $0x3c] sm:$0xf] %v1389
          %v1422 = vld [vmem:[%s6] sm:$0x1]
          %v1424 = vlaneseq
          %v1425 = vshrl.u32 %v1424, 7
          %v1426 = vsub.s32 0, %v1425
          %v1427 = vrot.slane %v1422, %v1426
          %v1429 = vadd.f32 %v1266, %v1427
          %v1430 = vadd.f32 %v1270, %v1427
          %v1431 = vadd.f32 %v1276, %v1427
          %v1432 = vadd.f32 %v1280, %v1427
          %v1433 = vadd.f32 %v1286, %v1427
          %v1434 = vadd.f32 %v1290, %v1427
          %v1435 = vadd.f32 %v1296, %v1427
          %v1436 = vadd.f32 %v1300, %v1427
          %v1437 = vadd.f32 %v1306, %v1427
          %v1438 = vadd.f32 %v1310, %v1427
          %v1439 = vadd.f32 %v1316, %v1427
          %v1440 = vadd.f32 %v1320, %v1427
          %v1441 = vadd.f32 %v1326, %v1427
          %v1442 = vadd.f32 %v1330, %v1427
          %v1443 = vadd.f32 %v1336, %v1427
          %v1444 = vadd.f32 %v1340, %v1427
          %vm1445 = vcmp.ge.f32.partialorder %v1429, 0.0
          %vm1446 = vcmp.ge.f32.partialorder %v1430, 0.0
          %vm1447 = vcmp.ge.f32.partialorder %v1431, 0.0
          %vm1448 = vcmp.ge.f32.partialorder %v1432, 0.0
          %vm1449 = vcmp.ge.f32.partialorder %v1433, 0.0
          %vm1450 = vcmp.ge.f32.partialorder %v1434, 0.0
          %vm1451 = vcmp.ge.f32.partialorder %v1435, 0.0
          %vm1452 = vcmp.ge.f32.partialorder %v1436, 0.0
          %vm1453 = vcmp.ge.f32.partialorder %v1437, 0.0
          %vm1454 = vcmp.ge.f32.partialorder %v1438, 0.0
          %vm1455 = vcmp.ge.f32.partialorder %v1439, 0.0
          %vm1456 = vcmp.ge.f32.partialorder %v1440, 0.0
          %vm1457 = vcmp.ge.f32.partialorder %v1441, 0.0
          %vm1458 = vcmp.ge.f32.partialorder %v1442, 0.0
          %vm1459 = vcmp.ge.f32.partialorder %v1443, 0.0
          %vm1460 = vcmp.ge.f32.partialorder %v1444, 0.0
          %v1461 = vmul.f32 %v1429, 0.01
          %v1462 = vmul.f32 %v1430, 0.01
          %v1463 = vmul.f32 %v1431, 0.01
          %v1464 = vmul.f32 %v1432, 0.01
          %v1465 = vmul.f32 %v1433, 0.01
          %v1466 = vmul.f32 %v1434, 0.01
          %v1467 = vmul.f32 %v1435, 0.01
          %v1468 = vmul.f32 %v1436, 0.01
          %v1469 = vmul.f32 %v1437, 0.01
          %v1470 = vmul.f32 %v1438, 0.01
          %v1471 = vmul.f32 %v1439, 0.01
          %v1472 = vmul.f32 %v1440, 0.01
          %v1473 = vmul.f32 %v1441, 0.01
          %v1474 = vmul.f32 %v1442, 0.01
          %v1475 = vmul.f32 %v1443, 0.01
          %v1476 = vmul.f32 %v1444, 0.01
          %v1477 = vsel %vm1445, %v1429, %v1461
          %v1478 = vsel %vm1446, %v1430, %v1462
          %v1479 = vsel %vm1447, %v1431, %v1463
          %v1480 = vsel %vm1448, %v1432, %v1464
          %v1481 = vsel %vm1449, %v1433, %v1465
          %v1482 = vsel %vm1450, %v1434, %v1466
          %v1483 = vsel %vm1451, %v1435, %v1467
          %v1484 = vsel %vm1452, %v1436, %v1468
          %v1485 = vsel %vm1453, %v1437, %v1469
          %v1486 = vsel %vm1454, %v1438, %v1470
          %v1487 = vsel %vm1455, %v1439, %v1471
          %v1488 = vsel %vm1456, %v1440, %v1472
          %v1489 = vsel %vm1457, %v1441, %v1473
          %v1490 = vsel %vm1458, %v1442, %v1474
          %v1491 = vsel %vm1459, %v1443, %v1475
          %v1492 = vsel %vm1460, %v1444, %v1476
          %v1493 = vld [vmem:[%s453] sm:$0xf]
          %v1494 = vld [vmem:[%s453 + $0x4] sm:$0xf]
          %v1495 = vld [vmem:[%s453 + $0x8] sm:$0xf]
          %v1496 = vld [vmem:[%s453 + $0xc] sm:$0xf]
          %v1497 = vld [vmem:[%s453 + $0x10] sm:$0xf]
          %v1498 = vld [vmem:[%s453 + $0x14] sm:$0xf]
          %v1499 = vld [vmem:[%s453 + $0x18] sm:$0xf]
          %v1500 = vld [vmem:[%s453 + $0x1c] sm:$0xf]
          %v1501 = vld [vmem:[%s453 + $0x20] sm:$0xf]
          %v1502 = vld [vmem:[%s453 + $0x24] sm:$0xf]
          %v1503 = vld [vmem:[%s453 + $0x28] sm:$0xf]
          %v1504 = vld [vmem:[%s453 + $0x2c] sm:$0xf]
          %v1505 = vld [vmem:[%s453 + $0x30] sm:$0xf]
          %v1506 = vld [vmem:[%s453 + $0x34] sm:$0xf]
          %v1507 = vld [vmem:[%s453 + $0x38] sm:$0xf]
          %v1508 = vld [vmem:[%s453 + $0x3c] sm:$0xf]
          %v1509 = vunpack.c.l.bf16 %v1493
          %v1510 = vunpack.c.l.bf16 %v1494
          %v1511 = vunpack.c.l.bf16 %v1495
          %v1512 = vunpack.c.l.bf16 %v1496
          %v1513 = vunpack.c.l.bf16 %v1497
          %v1514 = vunpack.c.l.bf16 %v1498
          %v1515 = vunpack.c.l.bf16 %v1499
          %v1516 = vunpack.c.l.bf16 %v1500
          %v1517 = vunpack.c.l.bf16 %v1501
          %v1518 = vunpack.c.l.bf16 %v1502
          %v1519 = vunpack.c.l.bf16 %v1503
          %v1520 = vunpack.c.l.bf16 %v1504
          %v1521 = vunpack.c.l.bf16 %v1505
          %v1522 = vunpack.c.l.bf16 %v1506
          %v1523 = vunpack.c.l.bf16 %v1507
          %v1524 = vunpack.c.l.bf16 %v1508
          %v1525 = vadd.f32 %v1477, %v1509
          %v1526 = vadd.f32 %v1478, %v1510
          %v1527 = vadd.f32 %v1479, %v1511
          %v1528 = vadd.f32 %v1480, %v1512
          %v1529 = vadd.f32 %v1481, %v1513
          %v1530 = vadd.f32 %v1482, %v1514
          %v1531 = vadd.f32 %v1483, %v1515
          %v1532 = vadd.f32 %v1484, %v1516
          %v1533 = vadd.f32 %v1485, %v1517
          %v1534 = vadd.f32 %v1486, %v1518
          %v1535 = vadd.f32 %v1487, %v1519
          %v1536 = vadd.f32 %v1488, %v1520
          %v1537 = vadd.f32 %v1489, %v1521
          %v1538 = vadd.f32 %v1490, %v1522
          %v1539 = vadd.f32 %v1491, %v1523
          %v1540 = vadd.f32 %v1492, %v1524
          %v1541 = vpack.c.bf16 %v1526, %v1525
          %v1542 = vpack.c.bf16 %v1528, %v1527
          %v1543 = vpack.c.bf16 %v1530, %v1529
          %v1544 = vpack.c.bf16 %v1532, %v1531
          %v1545 = vpack.c.bf16 %v1534, %v1533
          %v1546 = vpack.c.bf16 %v1536, %v1535
          %v1547 = vpack.c.bf16 %v1538, %v1537
          %v1548 = vpack.c.bf16 %v1540, %v1539
          %v1557 = vunpack.c.l.b16 %v1541
          %v1558 = vunpack.c.h.b16 %v1541
          %v1559 = vunpack.c.l.b16 %v1542
          %v1560 = vunpack.c.h.b16 %v1542
          %v1561 = vunpack.c.l.b16 %v1543
          %v1562 = vunpack.c.h.b16 %v1543
          %v1563 = vunpack.c.l.b16 %v1544
          %v1564 = vunpack.c.h.b16 %v1544
          %v1565 = vunpack.c.l.b16 %v1545
          %v1566 = vunpack.c.h.b16 %v1545
          %v1567 = vunpack.c.l.b16 %v1546
          %v1568 = vunpack.c.h.b16 %v1546
          %v1569 = vunpack.c.l.b16 %v1547
          %v1570 = vunpack.c.h.b16 %v1547
          %v1571 = vunpack.c.l.b16 %v1548
          %v1572 = vunpack.c.h.b16 %v1548
          %v1573 = vpack.c.b16 %v1557, %v1557
          %v1574 = vpack.c.b16 %v1558, %v1558
          %v1575 = vpack.c.b16 %v1559, %v1559
          %v1576 = vpack.c.b16 %v1560, %v1560
          %v1577 = vpack.c.b16 %v1561, %v1561
          %v1578 = vpack.c.b16 %v1562, %v1562
          %v1579 = vpack.c.b16 %v1563, %v1563
          %v1580 = vpack.c.b16 %v1564, %v1564
          %v1581 = vpack.c.b16 %v1565, %v1565
          %v1582 = vpack.c.b16 %v1566, %v1566
          %v1583 = vpack.c.b16 %v1567, %v1567
          %v1584 = vpack.c.b16 %v1568, %v1568
          %v1585 = vpack.c.b16 %v1569, %v1569
          %v1586 = vpack.c.b16 %v1570, %v1570
          %v1587 = vpack.c.b16 %v1571, %v1571
          %v1588 = vpack.c.b16 %v1572, %v1572
          %1605 = vst [vmem:[%s465] sm:$0xf] %v1573
          %1606 = vst [vmem:[%s465 + $0x4] sm:$0xf] %v1574
          %1607 = vst [vmem:[%s465 + $0x8] sm:$0xf] %v1575
          %1608 = vst [vmem:[%s465 + $0xc] sm:$0xf] %v1576
          %1609 = vst [vmem:[%s465 + $0x10] sm:$0xf] %v1577
          %1610 = vst [vmem:[%s465 + $0x14] sm:$0xf] %v1578
          %1611 = vst [vmem:[%s465 + $0x18] sm:$0xf] %v1579
          %1612 = vst [vmem:[%s465 + $0x1c] sm:$0xf] %v1580
          %1613 = vst [vmem:[%s465 + $0x20] sm:$0xf] %v1581
          %1614 = vst [vmem:[%s465 + $0x24] sm:$0xf] %v1582
          %1615 = vst [vmem:[%s465 + $0x28] sm:$0xf] %v1583
          %1616 = vst [vmem:[%s465 + $0x2c] sm:$0xf] %v1584
          %1617 = vst [vmem:[%s465 + $0x30] sm:$0xf] %v1585
          %1618 = vst [vmem:[%s465 + $0x34] sm:$0xf] %v1586
          %1619 = vst [vmem:[%s465 + $0x38] sm:$0xf] %v1587
          %1620 = vst [vmem:[%s465 + $0x3c] sm:$0xf] %v1588
        $region83: #{gcn_forward.7} parent=70 // pred_fallthru
          _
        %s1621 = smul.u32 16, %s25
        %p1622 = scmp.lt.s32.totalorder %s1621, 63
        %s1623 = scalar_select %p1622, %s1621, 63
        %s1624 = smul.addr %s1623, 4
        %s1625 = scalar_lea.vmem %s8, %s1624
        %s1626 = smul.u32 16, %s25
        %p1627 = scmp.lt.s32.totalorder %s1626, 63
        %s1628 = scalar_select %p1627, %s1626, 63
        %s1629 = smul.addr %s1628, 4
        %s1630 = scalar_lea.vmem %s9, %s1629
        // Predicated region
        $region84: #{gcn_forward.7} parent=70 // pred_check
          %p1631 = pneg %p241
        $region85: #{gcn_forward.7} parent=70 // pred_check_branch
          %1633 = sbr.rel (%p1631) target = $region87
        $region86: #{gcn_forward.7} parent=70 // pred_region
          %s1634 = smul.u32 16, %s25
        $region87: #{gcn_forward.7} parent=70 // pred_fallthru
          _
        // Predicated region
        $region88: #{gcn_forward.7} parent=70 // pred_check
          %p1635 = pneg %p267
        $region89: #{gcn_forward.7} parent=70 // pred_check_branch
          %1637 = sbr.rel (%p1635) target = $region91
        $region90: #{gcn_forward.7} parent=70 // pred_region
          %s1638 = smul.u32 16, %s25
        $region91: #{gcn_forward.7} parent=70 // pred_fallthru
          _
      $region71: #{gcn_forward.7} parent=5 // pred_fallthru
        _
      %p1639 = scmp.le.s32.totalorder 2, %s16
      // Predicated region
      $region92: #{gcn_forward.7} parent=5 // pred_check
        %p1640 = pneg %p1639
      $region93: #{gcn_forward.7} parent=5 // pred_check_branch
        %1642 = sbr.rel (%p1640) target = $region95
      $region94: #{gcn_forward.7} parent=5 // pred_region
        %s1643 = ssub.s32 %s16, 2
        // Predicated region
        $region96: #{gcn_forward.7} parent=94 // pred_check
          %p1644 = pneg %p247
        $region97: #{gcn_forward.7} parent=94 // pred_check_branch
          %1646 = sbr.rel (%p1644) target = $region99
        $region98: #{gcn_forward.7} parent=94 // pred_region
          %s1647 = smul.u32 16, %s27
          %p1648 = scmp.lt.s32.totalorder %s1647, 63
          %s1649 = scalar_select %p1648, %s1647, 63
          %s1650 = smul.addr %s1649, 4
          %s1651 = scalar_lea.vmem %s8, %s1650
        $region99: #{gcn_forward.7} parent=94 // pred_fallthru
          _
        // Predicated region
        $region100: #{gcn_forward.7} parent=94 // pred_check
          %p1652 = pneg %p273
        $region101: #{gcn_forward.7} parent=94 // pred_check_branch
          %1654 = sbr.rel (%p1652) target = $region103
        $region102: #{gcn_forward.7} parent=94 // pred_region
          %s1655 = smul.u32 16, %s27
          %p1656 = scmp.lt.s32.totalorder %s1655, 63
          %s1657 = scalar_select %p1656, %s1655, 63
          %s1658 = smul.addr %s1657, 4
          %s1659 = scalar_lea.vmem %s9, %s1658
        $region103: #{gcn_forward.7} parent=94 // pred_fallthru
          _
      $region95: #{gcn_forward.7} parent=5 // pred_fallthru
        _
    $region6: #{gcn_forward.7} parent=1 // loop_footer
      %s20 = sadd.s32 1, %s16
    $region7: #{gcn_forward.7} parent=1 // loop_footer_branch
      %15 = sbr.rel target = $region3
    $region8: #{gcn_forward.7} parent=1 // loop_exit
      _

</llo_original>
